<compile_context>
chip_gen: v7x
topology: tpu7x:2x2x1
jax: 0.10.0
libtpu: 0.0.40
codegen_flags: <defaults>
</compile_context>

<pallas_src>
import jax
import jax.numpy as jnp
from jax import lax
from jax.experimental import pallas as pl
from jax.experimental.pallas import tpu as pltpu


def _encoder_layer_kernel(
    x_ref,      # (BB, N, D)  activations, f32
    wq_ref,     # (H, D, D)   per-head Q weights, softmax scale pre-folded (mm dtype)
    wk_ref,     # (H, D, D)
    wv_ref,     # (H, D, D)
    wo_ref,     # (H*D, D)    full output-projection matrix (mm dtype)
    bout_ref,   # (1, D)  f32
    w1_ref,     # (D, F)  mm dtype
    b1_ref,     # (1, F)  f32
    w2_ref,     # (F, D)  mm dtype
    b2_ref,     # (1, D)  f32
    g1_ref,     # (1, D)  f32   norm1 gamma
    be1_ref,    # (1, D)  f32   norm1 beta
    g2_ref,     # (1, D)  f32   norm2 gamma
    be2_ref,    # (1, D)  f32   norm2 beta
    o_ref,      # (BB, N, D)
):
    bb, n, d = x_ref.shape
    h = wq_ref.shape[0]
    mm_dtype = wq_ref.dtype
    exact = jnp.dtype(mm_dtype) == jnp.dtype(jnp.float32)   # strict-check mode

    x = x_ref[...].astype(jnp.float32)          # (BB, N, D)
    x2 = x.reshape(bb * n, d)                   # (BB*N, D)
    xm = x2.astype(mm_dtype)

    # ---- multi-head attention: static unroll over heads, weights indexed on
    # the leading axis (no lane slicing).  Per-head outputs are gathered and
    # concatenated along the lane axis so the output projection is one
    # lane-dense matmul with a 128-deep contraction. ----
    head_outs = []
    for hi in range(h):
        q = jnp.dot(xm, wq_ref[hi], preferred_element_type=jnp.float32).reshape(bb, n, d)
        k = jnp.dot(xm, wk_ref[hi], preferred_element_type=jnp.float32).reshape(bb, n, d)
        v = jnp.dot(xm, wv_ref[hi], preferred_element_type=jnp.float32).reshape(bb, n, d)

        # scores: contraction on the minor axis -> natural MXU form, no explicit k.T
        dots = jnp.einsum(
            "bnd,bmd->bnm",
            q.astype(mm_dtype), k.astype(mm_dtype),
            preferred_element_type=jnp.float32)                 # (BB, N, N), scale folded in wq

        m = jnp.max(dots, axis=-1, keepdims=True)
        e = jnp.exp(dots - m)
        s = jnp.sum(e, axis=-1, keepdims=True)
        # EUP reciprocal in the fast path; exact divide for the f32 check.
        p = (e / s) if exact else (e * pl.reciprocal(s, approx=True))

        ho = jnp.einsum(
            "bnm,bmd->bnd",
            p.astype(mm_dtype), v.astype(mm_dtype),
            preferred_element_type=jnp.float32)                 # (BB, N, D)
        head_outs.append(ho.reshape(bb * n, d))

    heads = jnp.concatenate(head_outs, axis=-1)                 # (BB*N, H*D) lane-dense
    attn_out = jnp.dot(heads.astype(mm_dtype), wo_ref[...],
                       preferred_element_type=jnp.float32) + bout_ref[...]

    # ---- residual + LayerNorm 1 (dropout1 == identity) ----
    src = x2 + attn_out
    mu = jnp.mean(src, axis=-1, keepdims=True)
    var = jnp.mean((src - mu) ** 2, axis=-1, keepdims=True)
    src = (src - mu) * lax.rsqrt(var + 1e-5) * g1_ref[...] + be1_ref[...]

    # ---- feed-forward (ReLU, dropout == identity) ----
    h1 = jnp.dot(src.astype(mm_dtype), w1_ref[...],
                 preferred_element_type=jnp.float32) + b1_ref[...]
    h1 = jnp.maximum(h1, 0.0)
    ff = jnp.dot(h1.astype(mm_dtype), w2_ref[...],
                 preferred_element_type=jnp.float32) + b2_ref[...]

    # ---- residual + LayerNorm 2 (dropout2 == identity) ----
    src2 = src + ff
    mu2 = jnp.mean(src2, axis=-1, keepdims=True)
    var2 = jnp.mean((src2 - mu2) ** 2, axis=-1, keepdims=True)
    out = (src2 - mu2) * lax.rsqrt(var2 + 1e-5) * g2_ref[...] + be2_ref[...]

    o_ref[...] = out.reshape(bb, n, d).astype(o_ref.dtype)


def prepare_params(params, *, num_heads, compute_dtype=jnp.bfloat16):
    """One-time weight re-layout (would be cached at model-load time):
       per-head (H, D, D) Q/K/V weights with the softmax scale folded into Q,
       full (H*D, D) output projection, matmul weights cast to compute_dtype;
       biases / LN params stay f32."""
    (wqkv, wout, bout, w1, b1, w2, b2, g1, be1, g2, be2) = params
    D = wqkv.shape[0]
    H = num_heads
    HD = H * D
    assert wqkv.shape == (D, 3 * HD) and wout.shape == (HD, D)
    scale = jnp.float32(D) ** -0.5

    def split_heads(w):                      # (D, H*D) -> (H, D, D), head-major cols
        return jnp.transpose(w.reshape(D, H, D), (1, 0, 2))

    wq = split_heads(wqkv[:, 0 * HD:1 * HD]) * scale   # fold softmax scale
    wk = split_heads(wqkv[:, 1 * HD:2 * HD])
    wv = split_heads(wqkv[:, 2 * HD:3 * HD])

    c = compute_dtype
    f = jnp.float32
    return (wq.astype(c), wk.astype(c), wv.astype(c), wout.astype(c),
            bout.astype(f),
            w1.astype(c), b1.astype(f),
            w2.astype(c), b2.astype(f),
            g1.astype(f), be1.astype(f), g2.astype(f), be2.astype(f))


def transformer_encoder_layer(x, params, *, num_heads,
                              compute_dtype=jnp.bfloat16, block_b=None):
    """x: (B, N, D) float32. Returns (B, N, D)."""
    B, N, D = x.shape
    H = num_heads
    prepped = prepare_params(params, num_heads=num_heads, compute_dtype=compute_dtype)
    F = prepped[5].shape[1]                 # dim_feedforward

    if block_b is None:                     # pick a batch block that divides B
        block_b = next(d for d in (8, 4, 2, 1) if B % d == 0)
    grid = (B // block_b,)

    def full_spec(a):
        r = a.ndim
        return pl.BlockSpec(a.shape, lambda b, _r=r: (0,) * _r)

    # Cost estimate for XLA scheduling around the custom call.
    flops = int(2 * B * N * D * 3 * H * D          # qkv projections
                + 2 * B * H * N * N * D * 2        # scores + attn @ v
                + 2 * B * N * H * D * D            # output projection
                + 2 * B * N * D * F * 2)           # feed-forward
    transcendentals = int(B * H * N * N)           # softmax exp
    bytes_accessed = int(2 * x.size * x.dtype.itemsize
                         + sum(int(a.size) * a.dtype.itemsize for a in prepped))

    # VMEM budget sized to the actual tile plan (double-buffered blocks + headroom).
    plan_bytes = (2 * (2 * block_b * N * D * 4)
                  + 2 * sum(int(a.size) * a.dtype.itemsize for a in prepped))
    vmem_limit = int(min(max(plan_bytes + (8 << 20), 32 << 20), 96 << 20))

    return pl.pallas_call(
        _encoder_layer_kernel,
        out_shape=jax.ShapeDtypeStruct((B, N, D), x.dtype),
        grid_spec=pltpu.PrefetchScalarGridSpec(
            num_scalar_prefetch=0,
            grid=grid,
            in_specs=[pl.BlockSpec((block_b, N, D), lambda b: (b, 0, 0))]
                     + [full_spec(a) for a in prepped],
            out_specs=pl.BlockSpec((block_b, N, D), lambda b: (b, 0, 0)),
        ),
        compiler_params=pltpu.CompilerParams(
            dimension_semantics=("parallel",),
            vmem_limit_bytes=vmem_limit,
        ),
        cost_estimate=pl.CostEstimate(flops=flops,
                                      transcendentals=transcendentals,
                                      bytes_accessed=bytes_accessed),
    )(x, *prepped)


def reference_encoder_layer(x, params, *, num_heads):
    """Pure-JAX reference mirroring the PyTorch forward (eval mode, f32)."""
    (wqkv, wout, bout, w1, b1, w2, b2, g1, be1, g2, be2) = params
    B, N, D = x.shape
    H = num_heads
    scale = D ** -0.5

    qkv = x @ wqkv                                  # (B, N, 3*H*D)
    q, k, v = jnp.split(qkv, 3, axis=-1)            # each (B, N, H*D)

    def to_heads(t):
        return jnp.transpose(t.reshape(B, N, H, D), (0, 2, 1, 3))  # (B, H, N, D)

    q, k, v = map(to_heads, (q, k, v))
    dots = jnp.einsum("bhid,bhjd->bhij", q, k) * scale
    attn = jax.nn.softmax(dots, axis=-1)
    out = jnp.einsum("bhij,bhjd->bhid", attn, v)    # (B, H, N, D)
    out = jnp.transpose(out, (0, 2, 1, 3)).reshape(B, N, H * D)
    attn_out = out @ wout + bout

    def layer_norm(t, g, b):
        mu = jnp.mean(t, axis=-1, keepdims=True)
        var = jnp.mean((t - mu) ** 2, axis=-1, keepdims=True)
        return (t - mu) / jnp.sqrt(var + 1e-5) * g + b

    src = layer_norm(x + attn_out, g1, be1)
    ff = jnp.maximum(src @ w1 + b1, 0.0) @ w2 + b2
    return layer_norm(src + ff, g2, be2)


if __name__ == "__main__":
    # Small shapes consistent with the module.
    B, N = 2, 8
    D_MODEL, N_HEAD, D_FF = 32, 4, 64
    INNER = D_MODEL * N_HEAD                # MultiHeadAttention: dim_head == d_model

    key = jax.random.PRNGKey(0)
    ks = jax.random.split(key, 8)

    x = jax.random.normal(ks[0], (B, N, D_MODEL), dtype=jnp.float32)

    def init(k, shape, fan_in):
        return jax.random.uniform(k, shape, jnp.float32, -1.0, 1.0) / jnp.sqrt(fan_in)

    wqkv = init(ks[1], (D_MODEL, 3 * INNER), D_MODEL)        # to_qkv (no bias)
    wout = init(ks[2], (INNER, D_MODEL), INNER)              # to_out linear
    bout = init(ks[3], (1, D_MODEL), INNER)
    w1 = init(ks[4], (D_MODEL, D_FF), D_MODEL)               # linear1
    b1 = init(ks[5], (1, D_FF), D_MODEL)
    w2 = init(ks[6], (D_FF, D_MODEL), D_FF)                  # linear2
    b2 = init(ks[7], (1, D_MODEL), D_FF)
    g1 = jnp.ones((1, D_MODEL), jnp.float32)                 # norm1 weight
    be1 = jnp.zeros((1, D_MODEL), jnp.float32)               # norm1 bias
    g2 = jnp.ones((1, D_MODEL), jnp.float32)                 # norm2 weight
    be2 = jnp.zeros((1, D_MODEL), jnp.float32)               # norm2 bias

    params = (wqkv, wout, bout, w1, b1, w2, b2, g1, be1, g2, be2)

    ref = reference_encoder_layer(x, params, num_heads=N_HEAD)

    # 1) Strict structural/numerical check: f32 matmul path, exact divide.
    out_f32 = jax.block_until_ready(
        transformer_encoder_layer(x, params, num_heads=N_HEAD,
                                  compute_dtype=jnp.float32))
    assert out_f32.shape == (B, N, D_MODEL)
    assert jnp.allclose(out_f32, ref, atol=1e-4, rtol=1e-4), "f32 mismatch vs reference"

    # 2) Fast path: bf16 MXU operands, f32 accumulation / softmax / LayerNorm.
    out_bf16 = jax.block_until_ready(
        transformer_encoder_layer(x, params, num_heads=N_HEAD,
                                  compute_dtype=jnp.bfloat16))
    assert out_bf16.shape == (B, N, D_MODEL)
    assert bool(jnp.all(jnp.isfinite(out_bf16)))
    assert jnp.allclose(out_bf16, ref, atol=1e-1, rtol=1e-1), "bf16 path drifted too far"

    print("KERNEL_OK")
</pallas_src>

<mosaic_0001>
module attributes {stable_mosaic.version = 11 : i64} {
  func.func @_encoder_layer_kernel(%arg0: i32, %arg1: memref<2x8x32xf32, #tpu.memory_space<vmem>>, %arg2: memref<4x32x32xf32, #tpu.memory_space<vmem>>, %arg3: memref<4x32x32xf32, #tpu.memory_space<vmem>>, %arg4: memref<4x32x32xf32, #tpu.memory_space<vmem>>, %arg5: memref<128x32xf32, #tpu.memory_space<vmem>>, %arg6: memref<1x32xf32, #tpu.memory_space<vmem>>, %arg7: memref<32x64xf32, #tpu.memory_space<vmem>>, %arg8: memref<1x64xf32, #tpu.memory_space<vmem>>, %arg9: memref<64x32xf32, #tpu.memory_space<vmem>>, %arg10: memref<1x32xf32, #tpu.memory_space<vmem>>, %arg11: memref<1x32xf32, #tpu.memory_space<vmem>>, %arg12: memref<1x32xf32, #tpu.memory_space<vmem>>, %arg13: memref<1x32xf32, #tpu.memory_space<vmem>>, %arg14: memref<1x32xf32, #tpu.memory_space<vmem>>, %arg15: memref<2x8x32xf32, #tpu.memory_space<vmem>>) attributes {dimension_semantics = [#tpu.dimension_semantics<parallel>], iteration_bounds = array<i64: 1>, scalar_prefetch = 0 : i64, scratch_operands = 0 : i64, tpu.core_type = #tpu.core_type<tc>, window_params = [{transform_indices = @transform_0, window_bounds = array<i64: 2, 8, 32>}, {pipeline_mode = #tpu.pipeline_mode<synchronous>, transform_indices = @transform_1, window_bounds = array<i64: 4, 32, 32>}, {pipeline_mode = #tpu.pipeline_mode<synchronous>, transform_indices = @transform_2, window_bounds = array<i64: 4, 32, 32>}, {pipeline_mode = #tpu.pipeline_mode<synchronous>, transform_indices = @transform_3, window_bounds = array<i64: 4, 32, 32>}, {pipeline_mode = #tpu.pipeline_mode<synchronous>, transform_indices = @transform_4, window_bounds = array<i64: 128, 32>}, {pipeline_mode = #tpu.pipeline_mode<synchronous>, transform_indices = @transform_5, window_bounds = array<i64: 1, 32>}, {pipeline_mode = #tpu.pipeline_mode<synchronous>, transform_indices = @transform_6, window_bounds = array<i64: 32, 64>}, {pipeline_mode = #tpu.pipeline_mode<synchronous>, transform_indices = @transform_7, window_bounds = array<i64: 1, 64>}, {pipeline_mode = #tpu.pipeline_mode<synchronous>, transform_indices = @transform_8, window_bounds = array<i64: 64, 32>}, {pipeline_mode = #tpu.pipeline_mode<synchronous>, transform_indices = @transform_9, window_bounds = array<i64: 1, 32>}, {pipeline_mode = #tpu.pipeline_mode<synchronous>, transform_indices = @transform_10, window_bounds = array<i64: 1, 32>}, {pipeline_mode = #tpu.pipeline_mode<synchronous>, transform_indices = @transform_11, window_bounds = array<i64: 1, 32>}, {pipeline_mode = #tpu.pipeline_mode<synchronous>, transform_indices = @transform_12, window_bounds = array<i64: 1, 32>}, {pipeline_mode = #tpu.pipeline_mode<synchronous>, transform_indices = @transform_13, window_bounds = array<i64: 1, 32>}, {transform_indices = @transform_14, window_bounds = array<i64: 2, 8, 32>}]} {
    %c0 = arith.constant 0 : index
    %c0_0 = arith.constant 0 : index
    %c0_1 = arith.constant 0 : index
    %0 = vector.load %arg1[%c0, %c0_0, %c0_1] : memref<2x8x32xf32, #tpu.memory_space<vmem>>, vector<2x8x32xf32>
    %1 = vector.shape_cast %0 : vector<2x8x32xf32> to vector<16x32xf32>
    %c0_2 = arith.constant 0 : index
    %c0_3 = arith.constant 0 : index
    %c0_4 = arith.constant 0 : index
    %2 = vector.load %arg2[%c0_2, %c0_3, %c0_4] : memref<4x32x32xf32, #tpu.memory_space<vmem>>, vector<1x32x32xf32>
    %3 = vector.shape_cast %2 : vector<1x32x32xf32> to vector<32x32xf32>
    %cst = arith.constant dense<0.000000e+00> : vector<16x32xf32>
    %4 = tpu.matmul %1, %3, %cst {dimension_numbers = #tpu.dot_dimension_numbers<[1], [0], [0], [1], [0, 0, 1, 1], [], []>} : vector<16x32xf32>, vector<32x32xf32>, vector<16x32xf32> -> vector<16x32xf32>
    %5 = vector.shape_cast %4 : vector<16x32xf32> to vector<2x8x32xf32>
    %c0_5 = arith.constant 0 : index
    %c0_6 = arith.constant 0 : index
    %c0_7 = arith.constant 0 : index
    %6 = vector.load %arg3[%c0_5, %c0_6, %c0_7] : memref<4x32x32xf32, #tpu.memory_space<vmem>>, vector<1x32x32xf32>
    %7 = vector.shape_cast %6 : vector<1x32x32xf32> to vector<32x32xf32>
    %cst_8 = arith.constant dense<0.000000e+00> : vector<16x32xf32>
    %8 = tpu.matmul %1, %7, %cst_8 {dimension_numbers = #tpu.dot_dimension_numbers<[1], [0], [0], [1], [0, 0, 1, 1], [], []>} : vector<16x32xf32>, vector<32x32xf32>, vector<16x32xf32> -> vector<16x32xf32>
    %9 = vector.shape_cast %8 : vector<16x32xf32> to vector<2x8x32xf32>
    %c0_9 = arith.constant 0 : index
    %c0_10 = arith.constant 0 : index
    %c0_11 = arith.constant 0 : index
    %10 = vector.load %arg4[%c0_9, %c0_10, %c0_11] : memref<4x32x32xf32, #tpu.memory_space<vmem>>, vector<1x32x32xf32>
    %11 = vector.shape_cast %10 : vector<1x32x32xf32> to vector<32x32xf32>
    %cst_12 = arith.constant dense<0.000000e+00> : vector<16x32xf32>
    %12 = tpu.matmul %1, %11, %cst_12 {dimension_numbers = #tpu.dot_dimension_numbers<[1], [0], [0], [1], [0, 0, 1, 1], [], []>} : vector<16x32xf32>, vector<32x32xf32>, vector<16x32xf32> -> vector<16x32xf32>
    %13 = vector.shape_cast %12 : vector<16x32xf32> to vector<2x8x32xf32>
    "tpu.trace_start"() <{level = 10 : i32, message = "bnd,bmd->bnm"}> : () -> ()
    %cst_13 = arith.constant dense<0.000000e+00> : vector<2x8x8xf32>
    %14 = tpu.matmul %5, %9, %cst_13 {dimension_numbers = #tpu.dot_dimension_numbers<[2], [2], [1], [1], [0, 0, 0, 1, 1, 1], [0], [0]>} : vector<2x8x32xf32>, vector<2x8x32xf32>, vector<2x8x8xf32> -> vector<2x8x8xf32>
    "tpu.trace_stop"() : () -> ()
    %cst_14 = arith.constant dense<0xFF800000> : vector<2x8xf32>
    %15 = vector.multi_reduction <maximumf>, %14, %cst_14 [2] : vector<2x8x8xf32> to vector<2x8xf32>
    %16 = vector.shape_cast %15 : vector<2x8xf32> to vector<2x8x1xf32>
    %17 = vector.broadcast %16 : vector<2x8x1xf32> to vector<2x8x8xf32>
    %18 = arith.subf %14, %17 : vector<2x8x8xf32>
    %19 = math.exp %18 : vector<2x8x8xf32>
    %cst_15 = arith.constant dense<0.000000e+00> : vector<2x8xf32>
    %20 = vector.multi_reduction <add>, %19, %cst_15 [2] : vector<2x8x8xf32> to vector<2x8xf32>
    %21 = vector.shape_cast %20 : vector<2x8xf32> to vector<2x8x1xf32>
    %22 = vector.broadcast %21 : vector<2x8x1xf32> to vector<2x8x8xf32>
    %23 = arith.divf %19, %22 : vector<2x8x8xf32>
    "tpu.trace_start"() <{level = 10 : i32, message = "bnm,bmd->bnd"}> : () -> ()
    %cst_16 = arith.constant dense<0.000000e+00> : vector<2x8x32xf32>
    %24 = tpu.matmul %23, %13, %cst_16 {dimension_numbers = #tpu.dot_dimension_numbers<[2], [1], [1], [2], [0, 0, 0, 1, 1, 2], [0], [0]>} : vector<2x8x8xf32>, vector<2x8x32xf32>, vector<2x8x32xf32> -> vector<2x8x32xf32>
    "tpu.trace_stop"() : () -> ()
    %25 = vector.shape_cast %24 : vector<2x8x32xf32> to vector<16x32xf32>
    %c1 = arith.constant 1 : index
    %c0_17 = arith.constant 0 : index
    %c0_18 = arith.constant 0 : index
    %26 = vector.load %arg2[%c1, %c0_17, %c0_18] : memref<4x32x32xf32, #tpu.memory_space<vmem>>, vector<1x32x32xf32>
    %27 = vector.shape_cast %26 : vector<1x32x32xf32> to vector<32x32xf32>
    %cst_19 = arith.constant dense<0.000000e+00> : vector<16x32xf32>
    %28 = tpu.matmul %1, %27, %cst_19 {dimension_numbers = #tpu.dot_dimension_numbers<[1], [0], [0], [1], [0, 0, 1, 1], [], []>} : vector<16x32xf32>, vector<32x32xf32>, vector<16x32xf32> -> vector<16x32xf32>
    %29 = vector.shape_cast %28 : vector<16x32xf32> to vector<2x8x32xf32>
    %c1_20 = arith.constant 1 : index
    %c0_21 = arith.constant 0 : index
    %c0_22 = arith.constant 0 : index
    %30 = vector.load %arg3[%c1_20, %c0_21, %c0_22] : memref<4x32x32xf32, #tpu.memory_space<vmem>>, vector<1x32x32xf32>
    %31 = vector.shape_cast %30 : vector<1x32x32xf32> to vector<32x32xf32>
    %cst_23 = arith.constant dense<0.000000e+00> : vector<16x32xf32>
    %32 = tpu.matmul %1, %31, %cst_23 {dimension_numbers = #tpu.dot_dimension_numbers<[1], [0], [0], [1], [0, 0, 1, 1], [], []>} : vector<16x32xf32>, vector<32x32xf32>, vector<16x32xf32> -> vector<16x32xf32>
    %33 = vector.shape_cast %32 : vector<16x32xf32> to vector<2x8x32xf32>
    %c1_24 = arith.constant 1 : index
    %c0_25 = arith.constant 0 : index
    %c0_26 = arith.constant 0 : index
    %34 = vector.load %arg4[%c1_24, %c0_25, %c0_26] : memref<4x32x32xf32, #tpu.memory_space<vmem>>, vector<1x32x32xf32>
    %35 = vector.shape_cast %34 : vector<1x32x32xf32> to vector<32x32xf32>
    %cst_27 = arith.constant dense<0.000000e+00> : vector<16x32xf32>
    %36 = tpu.matmul %1, %35, %cst_27 {dimension_numbers = #tpu.dot_dimension_numbers<[1], [0], [0], [1], [0, 0, 1, 1], [], []>} : vector<16x32xf32>, vector<32x32xf32>, vector<16x32xf32> -> vector<16x32xf32>
    %37 = vector.shape_cast %36 : vector<16x32xf32> to vector<2x8x32xf32>
    "tpu.trace_start"() <{level = 10 : i32, message = "bnd,bmd->bnm"}> : () -> ()
    %cst_28 = arith.constant dense<0.000000e+00> : vector<2x8x8xf32>
    %38 = tpu.matmul %29, %33, %cst_28 {dimension_numbers = #tpu.dot_dimension_numbers<[2], [2], [1], [1], [0, 0, 0, 1, 1, 1], [0], [0]>} : vector<2x8x32xf32>, vector<2x8x32xf32>, vector<2x8x8xf32> -> vector<2x8x8xf32>
    "tpu.trace_stop"() : () -> ()
    %cst_29 = arith.constant dense<0xFF800000> : vector<2x8xf32>
    %39 = vector.multi_reduction <maximumf>, %38, %cst_29 [2] : vector<2x8x8xf32> to vector<2x8xf32>
    %40 = vector.shape_cast %39 : vector<2x8xf32> to vector<2x8x1xf32>
    %41 = vector.broadcast %40 : vector<2x8x1xf32> to vector<2x8x8xf32>
    %42 = arith.subf %38, %41 : vector<2x8x8xf32>
    %43 = math.exp %42 : vector<2x8x8xf32>
    %cst_30 = arith.constant dense<0.000000e+00> : vector<2x8xf32>
    %44 = vector.multi_reduction <add>, %43, %cst_30 [2] : vector<2x8x8xf32> to vector<2x8xf32>
    %45 = vector.shape_cast %44 : vector<2x8xf32> to vector<2x8x1xf32>
    %46 = vector.broadcast %45 : vector<2x8x1xf32> to vector<2x8x8xf32>
    %47 = arith.divf %43, %46 : vector<2x8x8xf32>
    "tpu.trace_start"() <{level = 10 : i32, message = "bnm,bmd->bnd"}> : () -> ()
    %cst_31 = arith.constant dense<0.000000e+00> : vector<2x8x32xf32>
    %48 = tpu.matmul %47, %37, %cst_31 {dimension_numbers = #tpu.dot_dimension_numbers<[2], [1], [1], [2], [0, 0, 0, 1, 1, 2], [0], [0]>} : vector<2x8x8xf32>, vector<2x8x32xf32>, vector<2x8x32xf32> -> vector<2x8x32xf32>
    "tpu.trace_stop"() : () -> ()
    %49 = vector.shape_cast %48 : vector<2x8x32xf32> to vector<16x32xf32>
    %c2 = arith.constant 2 : index
    %c0_32 = arith.constant 0 : index
    %c0_33 = arith.constant 0 : index
    %50 = vector.load %arg2[%c2, %c0_32, %c0_33] : memref<4x32x32xf32, #tpu.memory_space<vmem>>, vector<1x32x32xf32>
    %51 = vector.shape_cast %50 : vector<1x32x32xf32> to vector<32x32xf32>
    %cst_34 = arith.constant dense<0.000000e+00> : vector<16x32xf32>
    %52 = tpu.matmul %1, %51, %cst_34 {dimension_numbers = #tpu.dot_dimension_numbers<[1], [0], [0], [1], [0, 0, 1, 1], [], []>} : vector<16x32xf32>, vector<32x32xf32>, vector<16x32xf32> -> vector<16x32xf32>
    %53 = vector.shape_cast %52 : vector<16x32xf32> to vector<2x8x32xf32>
    %c2_35 = arith.constant 2 : index
    %c0_36 = arith.constant 0 : index
    %c0_37 = arith.constant 0 : index
    %54 = vector.load %arg3[%c2_35, %c0_36, %c0_37] : memref<4x32x32xf32, #tpu.memory_space<vmem>>, vector<1x32x32xf32>
    %55 = vector.shape_cast %54 : vector<1x32x32xf32> to vector<32x32xf32>
    %cst_38 = arith.constant dense<0.000000e+00> : vector<16x32xf32>
    %56 = tpu.matmul %1, %55, %cst_38 {dimension_numbers = #tpu.dot_dimension_numbers<[1], [0], [0], [1], [0, 0, 1, 1], [], []>} : vector<16x32xf32>, vector<32x32xf32>, vector<16x32xf32> -> vector<16x32xf32>
    %57 = vector.shape_cast %56 : vector<16x32xf32> to vector<2x8x32xf32>
    %c2_39 = arith.constant 2 : index
    %c0_40 = arith.constant 0 : index
    %c0_41 = arith.constant 0 : index
    %58 = vector.load %arg4[%c2_39, %c0_40, %c0_41] : memref<4x32x32xf32, #tpu.memory_space<vmem>>, vector<1x32x32xf32>
    %59 = vector.shape_cast %58 : vector<1x32x32xf32> to vector<32x32xf32>
    %cst_42 = arith.constant dense<0.000000e+00> : vector<16x32xf32>
    %60 = tpu.matmul %1, %59, %cst_42 {dimension_numbers = #tpu.dot_dimension_numbers<[1], [0], [0], [1], [0, 0, 1, 1], [], []>} : vector<16x32xf32>, vector<32x32xf32>, vector<16x32xf32> -> vector<16x32xf32>
    %61 = vector.shape_cast %60 : vector<16x32xf32> to vector<2x8x32xf32>
    "tpu.trace_start"() <{level = 10 : i32, message = "bnd,bmd->bnm"}> : () -> ()
    %cst_43 = arith.constant dense<0.000000e+00> : vector<2x8x8xf32>
    %62 = tpu.matmul %53, %57, %cst_43 {dimension_numbers = #tpu.dot_dimension_numbers<[2], [2], [1], [1], [0, 0, 0, 1, 1, 1], [0], [0]>} : vector<2x8x32xf32>, vector<2x8x32xf32>, vector<2x8x8xf32> -> vector<2x8x8xf32>
    "tpu.trace_stop"() : () -> ()
    %cst_44 = arith.constant dense<0xFF800000> : vector<2x8xf32>
    %63 = vector.multi_reduction <maximumf>, %62, %cst_44 [2] : vector<2x8x8xf32> to vector<2x8xf32>
    %64 = vector.shape_cast %63 : vector<2x8xf32> to vector<2x8x1xf32>
    %65 = vector.broadcast %64 : vector<2x8x1xf32> to vector<2x8x8xf32>
    %66 = arith.subf %62, %65 : vector<2x8x8xf32>
    %67 = math.exp %66 : vector<2x8x8xf32>
    %cst_45 = arith.constant dense<0.000000e+00> : vector<2x8xf32>
    %68 = vector.multi_reduction <add>, %67, %cst_45 [2] : vector<2x8x8xf32> to vector<2x8xf32>
    %69 = vector.shape_cast %68 : vector<2x8xf32> to vector<2x8x1xf32>
    %70 = vector.broadcast %69 : vector<2x8x1xf32> to vector<2x8x8xf32>
    %71 = arith.divf %67, %70 : vector<2x8x8xf32>
    "tpu.trace_start"() <{level = 10 : i32, message = "bnm,bmd->bnd"}> : () -> ()
    %cst_46 = arith.constant dense<0.000000e+00> : vector<2x8x32xf32>
    %72 = tpu.matmul %71, %61, %cst_46 {dimension_numbers = #tpu.dot_dimension_numbers<[2], [1], [1], [2], [0, 0, 0, 1, 1, 2], [0], [0]>} : vector<2x8x8xf32>, vector<2x8x32xf32>, vector<2x8x32xf32> -> vector<2x8x32xf32>
    "tpu.trace_stop"() : () -> ()
    %73 = vector.shape_cast %72 : vector<2x8x32xf32> to vector<16x32xf32>
    %c3 = arith.constant 3 : index
    %c0_47 = arith.constant 0 : index
    %c0_48 = arith.constant 0 : index
    %74 = vector.load %arg2[%c3, %c0_47, %c0_48] : memref<4x32x32xf32, #tpu.memory_space<vmem>>, vector<1x32x32xf32>
    %75 = vector.shape_cast %74 : vector<1x32x32xf32> to vector<32x32xf32>
    %cst_49 = arith.constant dense<0.000000e+00> : vector<16x32xf32>
    %76 = tpu.matmul %1, %75, %cst_49 {dimension_numbers = #tpu.dot_dimension_numbers<[1], [0], [0], [1], [0, 0, 1, 1], [], []>} : vector<16x32xf32>, vector<32x32xf32>, vector<16x32xf32> -> vector<16x32xf32>
    %77 = vector.shape_cast %76 : vector<16x32xf32> to vector<2x8x32xf32>
    %c3_50 = arith.constant 3 : index
    %c0_51 = arith.constant 0 : index
    %c0_52 = arith.constant 0 : index
    %78 = vector.load %arg3[%c3_50, %c0_51, %c0_52] : memref<4x32x32xf32, #tpu.memory_space<vmem>>, vector<1x32x32xf32>
    %79 = vector.shape_cast %78 : vector<1x32x32xf32> to vector<32x32xf32>
    %cst_53 = arith.constant dense<0.000000e+00> : vector<16x32xf32>
    %80 = tpu.matmul %1, %79, %cst_53 {dimension_numbers = #tpu.dot_dimension_numbers<[1], [0], [0], [1], [0, 0, 1, 1], [], []>} : vector<16x32xf32>, vector<32x32xf32>, vector<16x32xf32> -> vector<16x32xf32>
    %81 = vector.shape_cast %80 : vector<16x32xf32> to vector<2x8x32xf32>
    %c3_54 = arith.constant 3 : index
    %c0_55 = arith.constant 0 : index
    %c0_56 = arith.constant 0 : index
    %82 = vector.load %arg4[%c3_54, %c0_55, %c0_56] : memref<4x32x32xf32, #tpu.memory_space<vmem>>, vector<1x32x32xf32>
    %83 = vector.shape_cast %82 : vector<1x32x32xf32> to vector<32x32xf32>
    %cst_57 = arith.constant dense<0.000000e+00> : vector<16x32xf32>
    %84 = tpu.matmul %1, %83, %cst_57 {dimension_numbers = #tpu.dot_dimension_numbers<[1], [0], [0], [1], [0, 0, 1, 1], [], []>} : vector<16x32xf32>, vector<32x32xf32>, vector<16x32xf32> -> vector<16x32xf32>
    %85 = vector.shape_cast %84 : vector<16x32xf32> to vector<2x8x32xf32>
    "tpu.trace_start"() <{level = 10 : i32, message = "bnd,bmd->bnm"}> : () -> ()
    %cst_58 = arith.constant dense<0.000000e+00> : vector<2x8x8xf32>
    %86 = tpu.matmul %77, %81, %cst_58 {dimension_numbers = #tpu.dot_dimension_numbers<[2], [2], [1], [1], [0, 0, 0, 1, 1, 1], [0], [0]>} : vector<2x8x32xf32>, vector<2x8x32xf32>, vector<2x8x8xf32> -> vector<2x8x8xf32>
    "tpu.trace_stop"() : () -> ()
    %cst_59 = arith.constant dense<0xFF800000> : vector<2x8xf32>
    %87 = vector.multi_reduction <maximumf>, %86, %cst_59 [2] : vector<2x8x8xf32> to vector<2x8xf32>
    %88 = vector.shape_cast %87 : vector<2x8xf32> to vector<2x8x1xf32>
    %89 = vector.broadcast %88 : vector<2x8x1xf32> to vector<2x8x8xf32>
    %90 = arith.subf %86, %89 : vector<2x8x8xf32>
    %91 = math.exp %90 : vector<2x8x8xf32>
    %cst_60 = arith.constant dense<0.000000e+00> : vector<2x8xf32>
    %92 = vector.multi_reduction <add>, %91, %cst_60 [2] : vector<2x8x8xf32> to vector<2x8xf32>
    %93 = vector.shape_cast %92 : vector<2x8xf32> to vector<2x8x1xf32>
    %94 = vector.broadcast %93 : vector<2x8x1xf32> to vector<2x8x8xf32>
    %95 = arith.divf %91, %94 : vector<2x8x8xf32>
    "tpu.trace_start"() <{level = 10 : i32, message = "bnm,bmd->bnd"}> : () -> ()
    %cst_61 = arith.constant dense<0.000000e+00> : vector<2x8x32xf32>
    %96 = tpu.matmul %95, %85, %cst_61 {dimension_numbers = #tpu.dot_dimension_numbers<[2], [1], [1], [2], [0, 0, 0, 1, 1, 2], [0], [0]>} : vector<2x8x8xf32>, vector<2x8x32xf32>, vector<2x8x32xf32> -> vector<2x8x32xf32>
    "tpu.trace_stop"() : () -> ()
    %97 = vector.shape_cast %96 : vector<2x8x32xf32> to vector<16x32xf32>
    %98 = tpu.concatenate %25, %49, %73, %97 in 1 : vector<16x32xf32>, vector<16x32xf32>, vector<16x32xf32>, vector<16x32xf32> -> vector<16x128xf32>
    %c0_62 = arith.constant 0 : index
    %c0_63 = arith.constant 0 : index
    %99 = vector.load %arg5[%c0_62, %c0_63] : memref<128x32xf32, #tpu.memory_space<vmem>>, vector<128x32xf32>
    %cst_64 = arith.constant dense<0.000000e+00> : vector<16x32xf32>
    %100 = tpu.matmul %98, %99, %cst_64 {dimension_numbers = #tpu.dot_dimension_numbers<[1], [0], [0], [1], [0, 0, 1, 1], [], []>} : vector<16x128xf32>, vector<128x32xf32>, vector<16x32xf32> -> vector<16x32xf32>
    %c0_65 = arith.constant 0 : index
    %c0_66 = arith.constant 0 : index
    %101 = vector.load %arg6[%c0_65, %c0_66] : memref<1x32xf32, #tpu.memory_space<vmem>>, vector<1x32xf32>
    %102 = vector.broadcast %101 : vector<1x32xf32> to vector<16x32xf32>
    %103 = arith.addf %100, %102 : vector<16x32xf32>
    %104 = arith.addf %1, %103 : vector<16x32xf32>
    %cst_67 = arith.constant dense<0.000000e+00> : vector<16xf32>
    %105 = vector.multi_reduction <add>, %104, %cst_67 [1] : vector<16x32xf32> to vector<16xf32>
    %106 = vector.shape_cast %105 : vector<16xf32> to vector<16x1xf32>
    %cst_68 = arith.constant 3.200000e+01 : f32
    %107 = vector.broadcast %cst_68 : f32 to vector<16x1xf32>
    %108 = arith.divf %106, %107 : vector<16x1xf32>
    %109 = vector.broadcast %108 : vector<16x1xf32> to vector<16x32xf32>
    %110 = arith.subf %104, %109 : vector<16x32xf32>
    %111 = arith.mulf %110, %110 : vector<16x32xf32>
    %cst_69 = arith.constant dense<0.000000e+00> : vector<16xf32>
    %112 = vector.multi_reduction <add>, %111, %cst_69 [1] : vector<16x32xf32> to vector<16xf32>
    %113 = vector.shape_cast %112 : vector<16xf32> to vector<16x1xf32>
    %cst_70 = arith.constant 3.200000e+01 : f32
    %114 = vector.broadcast %cst_70 : f32 to vector<16x1xf32>
    %115 = arith.divf %113, %114 : vector<16x1xf32>
    %116 = vector.broadcast %108 : vector<16x1xf32> to vector<16x32xf32>
    %117 = arith.subf %104, %116 : vector<16x32xf32>
    %cst_71 = arith.constant 9.99999974E-6 : f32
    %118 = vector.broadcast %cst_71 : f32 to vector<16x1xf32>
    %119 = arith.addf %115, %118 : vector<16x1xf32>
    %120 = math.rsqrt %119 : vector<16x1xf32>
    %121 = vector.broadcast %120 : vector<16x1xf32> to vector<16x32xf32>
    %122 = arith.mulf %117, %121 : vector<16x32xf32>
    %c0_72 = arith.constant 0 : index
    %c0_73 = arith.constant 0 : index
    %123 = vector.load %arg11[%c0_72, %c0_73] : memref<1x32xf32, #tpu.memory_space<vmem>>, vector<1x32xf32>
    %124 = vector.broadcast %123 : vector<1x32xf32> to vector<16x32xf32>
    %125 = arith.mulf %122, %124 : vector<16x32xf32>
    %c0_74 = arith.constant 0 : index
    %c0_75 = arith.constant 0 : index
    %126 = vector.load %arg12[%c0_74, %c0_75] : memref<1x32xf32, #tpu.memory_space<vmem>>, vector<1x32xf32>
    %127 = vector.broadcast %126 : vector<1x32xf32> to vector<16x32xf32>
    %128 = arith.addf %125, %127 : vector<16x32xf32>
    %c0_76 = arith.constant 0 : index
    %c0_77 = arith.constant 0 : index
    %129 = vector.load %arg7[%c0_76, %c0_77] : memref<32x64xf32, #tpu.memory_space<vmem>>, vector<32x64xf32>
    %cst_78 = arith.constant dense<0.000000e+00> : vector<16x64xf32>
    %130 = tpu.matmul %128, %129, %cst_78 {dimension_numbers = #tpu.dot_dimension_numbers<[1], [0], [0], [1], [0, 0, 1, 1], [], []>} : vector<16x32xf32>, vector<32x64xf32>, vector<16x64xf32> -> vector<16x64xf32>
    %c0_79 = arith.constant 0 : index
    %c0_80 = arith.constant 0 : index
    %131 = vector.load %arg8[%c0_79, %c0_80] : memref<1x64xf32, #tpu.memory_space<vmem>>, vector<1x64xf32>
    %132 = vector.broadcast %131 : vector<1x64xf32> to vector<16x64xf32>
    %133 = arith.addf %130, %132 : vector<16x64xf32>
    %cst_81 = arith.constant 0.000000e+00 : f32
    %134 = vector.broadcast %cst_81 : f32 to vector<16x64xf32>
    %135 = arith.maximumf %133, %134 : vector<16x64xf32>
    %c0_82 = arith.constant 0 : index
    %c0_83 = arith.constant 0 : index
    %136 = vector.load %arg9[%c0_82, %c0_83] : memref<64x32xf32, #tpu.memory_space<vmem>>, vector<64x32xf32>
    %cst_84 = arith.constant dense<0.000000e+00> : vector<16x32xf32>
    %137 = tpu.matmul %135, %136, %cst_84 {dimension_numbers = #tpu.dot_dimension_numbers<[1], [0], [0], [1], [0, 0, 1, 1], [], []>} : vector<16x64xf32>, vector<64x32xf32>, vector<16x32xf32> -> vector<16x32xf32>
    %c0_85 = arith.constant 0 : index
    %c0_86 = arith.constant 0 : index
    %138 = vector.load %arg10[%c0_85, %c0_86] : memref<1x32xf32, #tpu.memory_space<vmem>>, vector<1x32xf32>
    %139 = vector.broadcast %138 : vector<1x32xf32> to vector<16x32xf32>
    %140 = arith.addf %137, %139 : vector<16x32xf32>
    %141 = arith.addf %128, %140 : vector<16x32xf32>
    %cst_87 = arith.constant dense<0.000000e+00> : vector<16xf32>
    %142 = vector.multi_reduction <add>, %141, %cst_87 [1] : vector<16x32xf32> to vector<16xf32>
    %143 = vector.shape_cast %142 : vector<16xf32> to vector<16x1xf32>
    %cst_88 = arith.constant 3.200000e+01 : f32
    %144 = vector.broadcast %cst_88 : f32 to vector<16x1xf32>
    %145 = arith.divf %143, %144 : vector<16x1xf32>
    %146 = vector.broadcast %145 : vector<16x1xf32> to vector<16x32xf32>
    %147 = arith.subf %141, %146 : vector<16x32xf32>
    %148 = arith.mulf %147, %147 : vector<16x32xf32>
    %cst_89 = arith.constant dense<0.000000e+00> : vector<16xf32>
    %149 = vector.multi_reduction <add>, %148, %cst_89 [1] : vector<16x32xf32> to vector<16xf32>
    %150 = vector.shape_cast %149 : vector<16xf32> to vector<16x1xf32>
    %cst_90 = arith.constant 3.200000e+01 : f32
    %151 = vector.broadcast %cst_90 : f32 to vector<16x1xf32>
    %152 = arith.divf %150, %151 : vector<16x1xf32>
    %153 = vector.broadcast %145 : vector<16x1xf32> to vector<16x32xf32>
    %154 = arith.subf %141, %153 : vector<16x32xf32>
    %cst_91 = arith.constant 9.99999974E-6 : f32
    %155 = vector.broadcast %cst_91 : f32 to vector<16x1xf32>
    %156 = arith.addf %152, %155 : vector<16x1xf32>
    %157 = math.rsqrt %156 : vector<16x1xf32>
    %158 = vector.broadcast %157 : vector<16x1xf32> to vector<16x32xf32>
    %159 = arith.mulf %154, %158 : vector<16x32xf32>
    %c0_92 = arith.constant 0 : index
    %c0_93 = arith.constant 0 : index
    %160 = vector.load %arg13[%c0_92, %c0_93] : memref<1x32xf32, #tpu.memory_space<vmem>>, vector<1x32xf32>
    %161 = vector.broadcast %160 : vector<1x32xf32> to vector<16x32xf32>
    %162 = arith.mulf %159, %161 : vector<16x32xf32>
    %c0_94 = arith.constant 0 : index
    %c0_95 = arith.constant 0 : index
    %163 = vector.load %arg14[%c0_94, %c0_95] : memref<1x32xf32, #tpu.memory_space<vmem>>, vector<1x32xf32>
    %164 = vector.broadcast %163 : vector<1x32xf32> to vector<16x32xf32>
    %165 = arith.addf %162, %164 : vector<16x32xf32>
    %166 = vector.shape_cast %165 : vector<16x32xf32> to vector<2x8x32xf32>
    %c0_96 = arith.constant 0 : index
    %c0_97 = arith.constant 0 : index
    %c0_98 = arith.constant 0 : index
    %167 = vector.load %arg15[%c0_96, %c0_97, %c0_98] : memref<2x8x32xf32, #tpu.memory_space<vmem>>, vector<2x8x32xf32>
    tpu.vector_store %arg15[%c0_96, %c0_97, %c0_98], %166 {strides = array<i32>} : memref<2x8x32xf32, #tpu.memory_space<vmem>>, vector<2x8x32xf32>,
    return
  }
  func.func @transform_0(%arg0: i32) -> (i32, i32, i32) {
    %c0_i32 = arith.constant 0 : i32
    %c0_i32_0 = arith.constant 0 : i32
    %c0_i32_1 = arith.constant 0 : i32
    return %arg0, %c0_i32, %c0_i32_0 : i32, i32, i32
  }
  func.func @transform_1(%arg0: i32) -> (i32, i32, i32) {
    %c0_i32 = arith.constant 0 : i32
    %c0_i32_0 = arith.constant 0 : i32
    %c0_i32_1 = arith.constant 0 : i32
    %c0_i32_2 = arith.constant 0 : i32
    return %c0_i32, %c0_i32_0, %c0_i32_1 : i32, i32, i32
  }
  func.func @transform_2(%arg0: i32) -> (i32, i32, i32) {
    %c0_i32 = arith.constant 0 : i32
    %c0_i32_0 = arith.constant 0 : i32
    %c0_i32_1 = arith.constant 0 : i32
    %c0_i32_2 = arith.constant 0 : i32
    return %c0_i32, %c0_i32_0, %c0_i32_1 : i32, i32, i32
  }
  func.func @transform_3(%arg0: i32) -> (i32, i32, i32) {
    %c0_i32 = arith.constant 0 : i32
    %c0_i32_0 = arith.constant 0 : i32
    %c0_i32_1 = arith.constant 0 : i32
    %c0_i32_2 = arith.constant 0 : i32
    return %c0_i32, %c0_i32_0, %c0_i32_1 : i32, i32, i32
  }
  func.func @transform_4(%arg0: i32) -> (i32, i32) {
    %c0_i32 = arith.constant 0 : i32
    %c0_i32_0 = arith.constant 0 : i32
    %c0_i32_1 = arith.constant 0 : i32
    return %c0_i32, %c0_i32_0 : i32, i32
  }
  func.func @transform_5(%arg0: i32) -> (i32, i32) {
    %c0_i32 = arith.constant 0 : i32
    %c0_i32_0 = arith.constant 0 : i32
    %c0_i32_1 = arith.constant 0 : i32
    return %c0_i32, %c0_i32_0 : i32, i32
  }
  func.func @transform_6(%arg0: i32) -> (i32, i32) {
    %c0_i32 = arith.constant 0 : i32
    %c0_i32_0 = arith.constant 0 : i32
    %c0_i32_1 = arith.constant 0 : i32
    return %c0_i32, %c0_i32_0 : i32, i32
  }
  func.func @transform_7(%arg0: i32) -> (i32, i32) {
    %c0_i32 = arith.constant 0 : i32
    %c0_i32_0 = arith.constant 0 : i32
    %c0_i32_1 = arith.constant 0 : i32
    return %c0_i32, %c0_i32_0 : i32, i32
  }
  func.func @transform_8(%arg0: i32) -> (i32, i32) {
    %c0_i32 = arith.constant 0 : i32
    %c0_i32_0 = arith.constant 0 : i32
    %c0_i32_1 = arith.constant 0 : i32
    return %c0_i32, %c0_i32_0 : i32, i32
  }
  func.func @transform_9(%arg0: i32) -> (i32, i32) {
    %c0_i32 = arith.constant 0 : i32
    %c0_i32_0 = arith.constant 0 : i32
    %c0_i32_1 = arith.constant 0 : i32
    return %c0_i32, %c0_i32_0 : i32, i32
  }
  func.func @transform_10(%arg0: i32) -> (i32, i32) {
    %c0_i32 = arith.constant 0 : i32
    %c0_i32_0 = arith.constant 0 : i32
    %c0_i32_1 = arith.constant 0 : i32
    return %c0_i32, %c0_i32_0 : i32, i32
  }
  func.func @transform_11(%arg0: i32) -> (i32, i32) {
    %c0_i32 = arith.constant 0 : i32
    %c0_i32_0 = arith.constant 0 : i32
    %c0_i32_1 = arith.constant 0 : i32
    return %c0_i32, %c0_i32_0 : i32, i32
  }
  func.func @transform_12(%arg0: i32) -> (i32, i32) {
    %c0_i32 = arith.constant 0 : i32
    %c0_i32_0 = arith.constant 0 : i32
    %c0_i32_1 = arith.constant 0 : i32
    return %c0_i32, %c0_i32_0 : i32, i32
  }
  func.func @transform_13(%arg0: i32) -> (i32, i32) {
    %c0_i32 = arith.constant 0 : i32
    %c0_i32_0 = arith.constant 0 : i32
    %c0_i32_1 = arith.constant 0 : i32
    return %c0_i32, %c0_i32_0 : i32, i32
  }
  func.func @transform_14(%arg0: i32) -> (i32, i32, i32) {
    %c0_i32 = arith.constant 0 : i32
    %c0_i32_0 = arith.constant 0 : i32
    %c0_i32_1 = arith.constant 0 : i32
    return %arg0, %c0_i32, %c0_i32_0 : i32, i32, i32
  }
}

</mosaic_0001>

<llo_original>
// kernel: tpu_custom_call.1
$region0: #{tpu_custom_call.1}
  #allocation0 [shape = 'u32[]', space=smem, size = 0x4, offset = 0x4, fixed_abs, tag = 'smem constant byte address 0x4 - core index']
  #allocation1 [shape = 'u32[144,128]{1,0:T(1,128)}', space=vmem, size = 0x12000, scoped, tag = 'internal scratch']
  %s0 = inlined_call_operand.hbm [shape: f32[2,8,32], index: 0, kind: input, shape index: {}]
  %s1 = inlined_call_operand.vmem [shape: f32[4,32,32], index: 1, kind: input, shape index: {}]
  %s2 = inlined_call_operand.vmem [shape: f32[4,32,32], index: 2, kind: input, shape index: {}]
  %s3 = inlined_call_operand.hbm [shape: f32[4,32,32], index: 3, kind: input, shape index: {}]
  %s4 = inlined_call_operand.vmem [shape: f32[128,32], index: 4, kind: input, shape index: {}]
  %s5 = inlined_call_operand.vmem [shape: f32[1,32], index: 5, kind: input, shape index: {}]
  %s6 = inlined_call_operand.hbm [shape: f32[32,64], index: 6, kind: input, shape index: {}]
  %s7 = inlined_call_operand.vmem [shape: f32[1,64], index: 7, kind: input, shape index: {}]
  %s8 = inlined_call_operand.vmem [shape: f32[64,32], index: 8, kind: input, shape index: {}]
  %s9 = inlined_call_operand.vmem [shape: f32[1,32], index: 9, kind: input, shape index: {}]
  %s10 = inlined_call_operand.vmem [shape: f32[1,32], index: 10, kind: input, shape index: {}]
  %s11 = inlined_call_operand.vmem [shape: f32[1,32], index: 11, kind: input, shape index: {}]
  %s12 = inlined_call_operand.vmem [shape: f32[1,32], index: 12, kind: input, shape index: {}]
  %s13 = inlined_call_operand.vmem [shape: f32[1,32], index: 13, kind: input, shape index: {}]
  %s14 = inlined_call_operand.hbm [shape: f32[2,8,32], index: 14, kind: output, shape index: {}]
  %s15 = sld [smem:[#allocation0]]
  $region78: #{tpu_custom_call.1} parent=0
    _
  %s17 = ssub.s32 1, %s15
  %s18 = scalar_select 0, %s17, %s15
  $region1: #{tpu_custom_call.1} parent=0
    #allocation2 [shape = 'u8[8192]{0}', space=vmem, size = 0x2000, scoped, tag = 'input window, operand 0, single buffered']
    #allocation3 [shape = 's32[1]{0}', space=sflag, size = 0x4, scoped, tag = 'scoped memory for tpu_custom_call.1']
    #allocation4 [shape = 's32[1]{0}', space=sflag, size = 0x4, scoped, tag = 'scoped memory for tpu_custom_call.1']
    #allocation5 [shape = 'u8[65536]{0}', space=vmem, size = 0x10000, scoped, tag = 'input window, operand 3, single buffered']
    #allocation6 [shape = 's32[1]{0}', space=sflag, size = 0x4, scoped, tag = 'scoped memory for tpu_custom_call.1']
    #allocation7 [shape = 'u8[16384]{0}', space=vmem, size = 0x4000, scoped, tag = 'input window, operand 6, single buffered']
    #allocation8 [shape = 'u8[8192]{0}', space=vmem, size = 0x2000, scoped, tag = 'output window, operand 0, single buffered']
    %19 = vsyncpa [#allocation3], 0
    %20 = vsyncpa [#allocation6], 0
    %21 = vsyncpa [#allocation4], 0
    // Predicated region
    $region2: #{tpu_custom_call.1} parent=1 // pred_check
      _
    $region3: #{tpu_custom_call.1} parent=1 // pred_check_branch
      %23 = sbr.rel (0) target = $region5
    $region4: #{tpu_custom_call.1} parent=1 // pred_region
      %s25 = ssub.s32 256, 256
      %26 = vsyncadd [#allocation3], %s25
      %s27 = sshll.u32 [#allocation2], 4
      %s28 = int_to_ptr.vmem [resolvable:$true] %s27
      %33 = dma.hbm_to_vmem [thread:$0]  %s0, 256, %s28, [#allocation3], 128, 128, 8
    $region5: #{tpu_custom_call.1} parent=1 // pred_fallthru
      _
    // Predicated region
    $region6: #{tpu_custom_call.1} parent=1 // pred_check
      _
    $region7: #{tpu_custom_call.1} parent=1 // pred_check_branch
      %35 = sbr.rel (0) target = $region9
    $region8: #{tpu_custom_call.1} parent=1 // pred_region
      _
    $region9: #{tpu_custom_call.1} parent=1 // pred_fallthru
      _
    // Predicated region
    $region10: #{tpu_custom_call.1} parent=1 // pred_check
      _
    $region11: #{tpu_custom_call.1} parent=1 // pred_check_branch
      %37 = sbr.rel (0) target = $region13
    $region12: #{tpu_custom_call.1} parent=1 // pred_region
      _
    $region13: #{tpu_custom_call.1} parent=1 // pred_fallthru
      _
    // Predicated region
    $region14: #{tpu_custom_call.1} parent=1 // pred_check
      _
    $region15: #{tpu_custom_call.1} parent=1 // pred_check_branch
      %39 = sbr.rel (0) target = $region17
    $region16: #{tpu_custom_call.1} parent=1 // pred_region
      %s41 = ssub.s32 2048, 2048
      %42 = vsyncadd [#allocation6], %s41
      %s43 = sshll.u32 [#allocation5], 4
      %s44 = int_to_ptr.vmem [resolvable:$true] %s43
      %49 = dma.hbm_to_vmem [thread:$0]  %s3, 2048, %s44, [#allocation6], 128, 128, 8
    $region17: #{tpu_custom_call.1} parent=1 // pred_fallthru
      _
    // Predicated region
    $region18: #{tpu_custom_call.1} parent=1 // pred_check
      _
    $region19: #{tpu_custom_call.1} parent=1 // pred_check_branch
      %51 = sbr.rel (0) target = $region21
    $region20: #{tpu_custom_call.1} parent=1 // pred_region
      _
    $region21: #{tpu_custom_call.1} parent=1 // pred_fallthru
      _
    // Predicated region
    $region22: #{tpu_custom_call.1} parent=1 // pred_check
      _
    $region23: #{tpu_custom_call.1} parent=1 // pred_check_branch
      %53 = sbr.rel (0) target = $region25
    $region24: #{tpu_custom_call.1} parent=1 // pred_region
      _
    $region25: #{tpu_custom_call.1} parent=1 // pred_fallthru
      _
    // Predicated region
    $region26: #{tpu_custom_call.1} parent=1 // pred_check
      _
    $region27: #{tpu_custom_call.1} parent=1 // pred_check_branch
      %55 = sbr.rel (0) target = $region29
    $region28: #{tpu_custom_call.1} parent=1 // pred_region
      %s57 = ssub.s32 512, 512
      %58 = vsyncadd [#allocation6], %s57
      %s59 = sshll.u32 [#allocation7], 4
      %s60 = int_to_ptr.vmem [resolvable:$true] %s59
      %65 = dma.hbm_to_vmem [thread:$0]  %s6, 512, %s60, [#allocation6], 128, 128, 8
    $region29: #{tpu_custom_call.1} parent=1 // pred_fallthru
      _
    // Predicated region
    $region30: #{tpu_custom_call.1} parent=1 // pred_check
      _
    $region31: #{tpu_custom_call.1} parent=1 // pred_check_branch
      %67 = sbr.rel (0) target = $region33
    $region32: #{tpu_custom_call.1} parent=1 // pred_region
      _
    $region33: #{tpu_custom_call.1} parent=1 // pred_fallthru
      _
    // Predicated region
    $region34: #{tpu_custom_call.1} parent=1 // pred_check
      _
    $region35: #{tpu_custom_call.1} parent=1 // pred_check_branch
      %69 = sbr.rel (0) target = $region37
    $region36: #{tpu_custom_call.1} parent=1 // pred_region
      _
    $region37: #{tpu_custom_call.1} parent=1 // pred_fallthru
      _
    // Predicated region
    $region38: #{tpu_custom_call.1} parent=1 // pred_check
      _
    $region39: #{tpu_custom_call.1} parent=1 // pred_check_branch
      %71 = sbr.rel (0) target = $region41
    $region40: #{tpu_custom_call.1} parent=1 // pred_region
      _
    $region41: #{tpu_custom_call.1} parent=1 // pred_fallthru
      _
    // Predicated region
    $region42: #{tpu_custom_call.1} parent=1 // pred_check
      _
    $region43: #{tpu_custom_call.1} parent=1 // pred_check_branch
      %73 = sbr.rel (0) target = $region45
    $region44: #{tpu_custom_call.1} parent=1 // pred_region
      _
    $region45: #{tpu_custom_call.1} parent=1 // pred_fallthru
      _
    // Predicated region
    $region46: #{tpu_custom_call.1} parent=1 // pred_check
      _
    $region47: #{tpu_custom_call.1} parent=1 // pred_check_branch
      %75 = sbr.rel (0) target = $region49
    $region48: #{tpu_custom_call.1} parent=1 // pred_region
      _
    $region49: #{tpu_custom_call.1} parent=1 // pred_fallthru
      _
    // Predicated region
    $region50: #{tpu_custom_call.1} parent=1 // pred_check
      _
    $region51: #{tpu_custom_call.1} parent=1 // pred_check_branch
      %77 = sbr.rel (0) target = $region53
    $region52: #{tpu_custom_call.1} parent=1 // pred_region
      _
    $region53: #{tpu_custom_call.1} parent=1 // pred_fallthru
      _
    // Predicated region
    $region54: #{tpu_custom_call.1} parent=1 // pred_check
      _
    $region55: #{tpu_custom_call.1} parent=1 // pred_check_branch
      %79 = sbr.rel (0) target = $region57
    $region56: #{tpu_custom_call.1} parent=1 // pred_region
      _
    $region57: #{tpu_custom_call.1} parent=1 // pred_fallthru
      _
    // Predicated region
    $region58: #{tpu_custom_call.1} parent=1 // pred_check
      _
    $region59: #{tpu_custom_call.1} parent=1 // pred_check_branch
      %81 = sbr.rel (0) target = $region61
    $region60: #{tpu_custom_call.1} parent=1 // pred_region
      %82 = dma.done [#allocation3], 256
    $region61: #{tpu_custom_call.1} parent=1 // pred_fallthru
      _
    // Predicated region
    $region62: #{tpu_custom_call.1} parent=1 // pred_check
      _
    $region63: #{tpu_custom_call.1} parent=1 // pred_check_branch
      %84 = sbr.rel (0) target = $region65
    $region64: #{tpu_custom_call.1} parent=1 // pred_region
      %85 = dma.done [#allocation6], 2048
    $region65: #{tpu_custom_call.1} parent=1 // pred_fallthru
      _
    // Predicated region
    $region66: #{tpu_custom_call.1} parent=1 // pred_check
      _
    $region67: #{tpu_custom_call.1} parent=1 // pred_check_branch
      %87 = sbr.rel (0) target = $region69
    $region68: #{tpu_custom_call.1} parent=1 // pred_region
      %88 = dma.done [#allocation6], 512
    $region69: #{tpu_custom_call.1} parent=1 // pred_fallthru
      _
    %v89 = vld [vmem:[#allocation2] sm:$0xff]
    %v90 = vld [vmem:[#allocation2 + $0x8] sm:$0xff]
    %v91 = vld [vmem:[%s1] sm:$0xff]
    %v92 = vld [vmem:[%s1 + $0x8] sm:$0xff]
    %v93 = vld [vmem:[%s1 + $0x10] sm:$0xff]
    %v94 = vld [vmem:[%s1 + $0x18] sm:$0xff]
    %vm95 = vcmask 261120
    %v97 = vsel %vm95, %v89, 0
    %v100 = vsel %vm95, %v90, 0
    %102 = vmatprep.subr.mxu0 0.0
    %103 = vmatpush1.msra.mxu0 %v91
    %104 = vmatprep.subr.mxu0 0.0
    %105 = vmatpush1.msra.mxu0 %v92
    %106 = vmatprep.subr.mxu0 0.0
    %107 = vmatpush1.msra.mxu0 %v93
    %108 = vmatprep.subr.mxu0 0.0
    %109 = vmatpush1.msra.mxu0 %v94
    %110 = vmatprep.subr.mxu0 0.0
    %111 = vmatpush1.msra.mxu0 0.0
    %112 = vmatprep.subr.mxu0 0.0
    %113 = vmatpush1.msra.mxu0 0.0
    %114 = vmatprep.subr.mxu0 0.0
    %115 = vmatpush1.msra.mxu0 0.0
    %116 = vmatprep.subr.mxu0 0.0
    %117 = vmatpush1.msra.mxu0 0.0
    %118 = vmatprep.subr.mxu0 0.0
    %119 = vmatpush1.msra.mxu0 0.0
    %120 = vmatprep.subr.mxu0 0.0
    %121 = vmatpush1.msra.mxu0 0.0
    %122 = vmatprep.subr.mxu0 0.0
    %123 = vmatpush1.msra.mxu0 0.0
    %124 = vmatprep.subr.mxu0 0.0
    %125 = vmatpush1.msra.mxu0 0.0
    %126 = vmatprep.subr.mxu0 0.0
    %127 = vmatpush1.msra.mxu0 0.0
    %128 = vmatprep.subr.mxu0 0.0
    %129 = vmatpush1.msra.mxu0 0.0
    %130 = vmatprep.subr.mxu0 0.0
    %131 = vmatpush1.msra.mxu0 0.0
    %132 = vmatprep.subr.mxu0 0.0
    %133 = vmatpush1.msra.mxu0 0.0
    %134 = vmatprep.subr.mxu0 0.0
    %135 = vmatpush1.msra.mxu0 0.0
    %136 = vmatprep.subr.mxu0 0.0
    %137 = vmatpush1.msra.mxu0 0.0
    %138 = vmatprep.subr.mxu0 0.0
    %139 = vmatpush1.msra.mxu0 0.0
    %140 = vmatprep.subr.mxu0 0.0
    %141 = vmatpush1.msra.mxu0 0.0
    %142 = vmatprep.subr.mxu0 0.0
    %143 = vmatpush1.msra.mxu0 0.0
    %144 = vmatprep.subr.mxu0 0.0
    %145 = vmatpush1.msra.mxu0 0.0
    %146 = vmatprep.subr.mxu0 0.0
    %147 = vmatpush1.msra.mxu0 0.0
    %148 = vmatprep.subr.mxu0 0.0
    %149 = vmatpush1.msra.mxu0 0.0
    %150 = vmatprep.subr.mxu0 0.0
    %151 = vmatpush1.msra.mxu0 0.0
    %152 = vmatprep.subr.mxu0 0.0
    %153 = vmatpush1.msra.mxu0 0.0
    %154 = vmatprep.subr.mxu0 0.0
    %155 = vmatpush1.msra.mxu0 0.0
    %156 = vmatprep.subr.mxu0 0.0
    %157 = vmatpush1.msra.mxu0 0.0
    %158 = vmatprep.subr.mxu0 0.0
    %159 = vmatpush1.msra.mxu0 0.0
    %160 = vmatprep.subr.mxu0 0.0
    %161 = vmatpush1.msra.mxu0 0.0
    %162 = vmatprep.subr.mxu0 0.0
    %163 = vmatpush1.msra.mxu0 0.0
    %164 = vmatprep.subr.mxu0 0.0
    %165 = vmatpush1.msra.mxu0 0.0
    %166 = vmatprep.mubr.f32.mxu0 0.0
    %167 = vmatmul.mubr.f32.gmra.mrb[0].mxu0 %v97
    %v168 = vpop.f32.mrb[0].mxu0
    %v169 = vadd.f32 0.0, %v168
    %v170 = vpop.f32.mrb[0].mxu0
    %171 = vmatprep.mubr.f32.mxu0 0.0
    %172 = vmatmul.mubr.f32.gmra.mrb[0].mxu0 %v100
    %v173 = vpop.f32.mrb[0].mxu0
    %v174 = vadd.f32 0.0, %v173
    %v175 = vpop.f32.mrb[0].mxu0
    %176 = vdwg.mxu0
    %v177 = vld [vmem:[%s2] sm:$0xff]
    %v178 = vld [vmem:[%s2 + $0x8] sm:$0xff]
    %v179 = vld [vmem:[%s2 + $0x10] sm:$0xff]
    %v180 = vld [vmem:[%s2 + $0x18] sm:$0xff]
    %181 = vmatprep.subr.mxu0 0.0
    %182 = vmatpush1.msra.mxu0 %v177
    %183 = vmatprep.subr.mxu0 0.0
    %184 = vmatpush1.msra.mxu0 %v178
    %185 = vmatprep.subr.mxu0 0.0
    %186 = vmatpush1.msra.mxu0 %v179
    %187 = vmatprep.subr.mxu0 0.0
    %188 = vmatpush1.msra.mxu0 %v180
    %189 = vmatprep.subr.mxu0 0.0
    %190 = vmatpush1.msra.mxu0 0.0
    %191 = vmatprep.subr.mxu0 0.0
    %192 = vmatpush1.msra.mxu0 0.0
    %193 = vmatprep.subr.mxu0 0.0
    %194 = vmatpush1.msra.mxu0 0.0
    %195 = vmatprep.subr.mxu0 0.0
    %196 = vmatpush1.msra.mxu0 0.0
    %197 = vmatprep.subr.mxu0 0.0
    %198 = vmatpush1.msra.mxu0 0.0
    %199 = vmatprep.subr.mxu0 0.0
    %200 = vmatpush1.msra.mxu0 0.0
    %201 = vmatprep.subr.mxu0 0.0
    %202 = vmatpush1.msra.mxu0 0.0
    %203 = vmatprep.subr.mxu0 0.0
    %204 = vmatpush1.msra.mxu0 0.0
    %205 = vmatprep.subr.mxu0 0.0
    %206 = vmatpush1.msra.mxu0 0.0
    %207 = vmatprep.subr.mxu0 0.0
    %208 = vmatpush1.msra.mxu0 0.0
    %209 = vmatprep.subr.mxu0 0.0
    %210 = vmatpush1.msra.mxu0 0.0
    %211 = vmatprep.subr.mxu0 0.0
    %212 = vmatpush1.msra.mxu0 0.0
    %213 = vmatprep.subr.mxu0 0.0
    %214 = vmatpush1.msra.mxu0 0.0
    %215 = vmatprep.subr.mxu0 0.0
    %216 = vmatpush1.msra.mxu0 0.0
    %217 = vmatprep.subr.mxu0 0.0
    %218 = vmatpush1.msra.mxu0 0.0
    %219 = vmatprep.subr.mxu0 0.0
    %220 = vmatpush1.msra.mxu0 0.0
    %221 = vmatprep.subr.mxu0 0.0
    %222 = vmatpush1.msra.mxu0 0.0
    %223 = vmatprep.subr.mxu0 0.0
    %224 = vmatpush1.msra.mxu0 0.0
    %225 = vmatprep.subr.mxu0 0.0
    %226 = vmatpush1.msra.mxu0 0.0
    %227 = vmatprep.subr.mxu0 0.0
    %228 = vmatpush1.msra.mxu0 0.0
    %229 = vmatprep.subr.mxu0 0.0
    %230 = vmatpush1.msra.mxu0 0.0
    %231 = vmatprep.subr.mxu0 0.0
    %232 = vmatpush1.msra.mxu0 0.0
    %233 = vmatprep.subr.mxu0 0.0
    %234 = vmatpush1.msra.mxu0 0.0
    %235 = vmatprep.subr.mxu0 0.0
    %236 = vmatpush1.msra.mxu0 0.0
    %237 = vmatprep.subr.mxu0 0.0
    %238 = vmatpush1.msra.mxu0 0.0
    %239 = vmatprep.subr.mxu0 0.0
    %240 = vmatpush1.msra.mxu0 0.0
    %241 = vmatprep.subr.mxu0 0.0
    %242 = vmatpush1.msra.mxu0 0.0
    %243 = vmatprep.subr.mxu0 0.0
    %244 = vmatpush1.msra.mxu0 0.0
    %245 = vmatprep.mubr.f32.mxu0 0.0
    %246 = vmatmul.mubr.f32.gmra.mrb[0].mxu0 %v97
    %v247 = vpop.f32.mrb[0].mxu0
    %v248 = vadd.f32 0.0, %v247
    %v249 = vpop.f32.mrb[0].mxu0
    %250 = vmatprep.mubr.f32.mxu0 0.0
    %251 = vmatmul.mubr.f32.gmra.mrb[0].mxu0 %v100
    %v252 = vpop.f32.mrb[0].mxu0
    %v253 = vadd.f32 0.0, %v252
    %v254 = vpop.f32.mrb[0].mxu0
    %255 = vdwg.mxu0
    %v256 = vld [vmem:[#allocation5] sm:$0xff]
    %v257 = vld [vmem:[#allocation5 + $0x8] sm:$0xff]
    %v258 = vld [vmem:[#allocation5 + $0x10] sm:$0xff]
    %v259 = vld [vmem:[#allocation5 + $0x18] sm:$0xff]
    %260 = vmatprep.subr.mxu0 0.0
    %261 = vmatpush1.msra.mxu0 %v256
    %262 = vmatprep.subr.mxu0 0.0
    %263 = vmatpush1.msra.mxu0 %v257
    %264 = vmatprep.subr.mxu0 0.0
    %265 = vmatpush1.msra.mxu0 %v258
    %266 = vmatprep.subr.mxu0 0.0
    %267 = vmatpush1.msra.mxu0 %v259
    %268 = vmatprep.subr.mxu0 0.0
    %269 = vmatpush1.msra.mxu0 0.0
    %270 = vmatprep.subr.mxu0 0.0
    %271 = vmatpush1.msra.mxu0 0.0
    %272 = vmatprep.subr.mxu0 0.0
    %273 = vmatpush1.msra.mxu0 0.0
    %274 = vmatprep.subr.mxu0 0.0
    %275 = vmatpush1.msra.mxu0 0.0
    %276 = vmatprep.subr.mxu0 0.0
    %277 = vmatpush1.msra.mxu0 0.0
    %278 = vmatprep.subr.mxu0 0.0
    %279 = vmatpush1.msra.mxu0 0.0
    %280 = vmatprep.subr.mxu0 0.0
    %281 = vmatpush1.msra.mxu0 0.0
    %282 = vmatprep.subr.mxu0 0.0
    %283 = vmatpush1.msra.mxu0 0.0
    %284 = vmatprep.subr.mxu0 0.0
    %285 = vmatpush1.msra.mxu0 0.0
    %286 = vmatprep.subr.mxu0 0.0
    %287 = vmatpush1.msra.mxu0 0.0
    %288 = vmatprep.subr.mxu0 0.0
    %289 = vmatpush1.msra.mxu0 0.0
    %290 = vmatprep.subr.mxu0 0.0
    %291 = vmatpush1.msra.mxu0 0.0
    %292 = vmatprep.subr.mxu0 0.0
    %293 = vmatpush1.msra.mxu0 0.0
    %294 = vmatprep.subr.mxu0 0.0
    %295 = vmatpush1.msra.mxu0 0.0
    %296 = vmatprep.subr.mxu0 0.0
    %297 = vmatpush1.msra.mxu0 0.0
    %298 = vmatprep.subr.mxu0 0.0
    %299 = vmatpush1.msra.mxu0 0.0
    %300 = vmatprep.subr.mxu0 0.0
    %301 = vmatpush1.msra.mxu0 0.0
    %302 = vmatprep.subr.mxu0 0.0
    %303 = vmatpush1.msra.mxu0 0.0
    %304 = vmatprep.subr.mxu0 0.0
    %305 = vmatpush1.msra.mxu0 0.0
    %306 = vmatprep.subr.mxu0 0.0
    %307 = vmatpush1.msra.mxu0 0.0
    %308 = vmatprep.subr.mxu0 0.0
    %309 = vmatpush1.msra.mxu0 0.0
    %310 = vmatprep.subr.mxu0 0.0
    %311 = vmatpush1.msra.mxu0 0.0
    %312 = vmatprep.subr.mxu0 0.0
    %313 = vmatpush1.msra.mxu0 0.0
    %314 = vmatprep.subr.mxu0 0.0
    %315 = vmatpush1.msra.mxu0 0.0
    %316 = vmatprep.subr.mxu0 0.0
    %317 = vmatpush1.msra.mxu0 0.0
    %318 = vmatprep.subr.mxu0 0.0
    %319 = vmatpush1.msra.mxu0 0.0
    %320 = vmatprep.subr.mxu0 0.0
    %321 = vmatpush1.msra.mxu0 0.0
    %322 = vmatprep.subr.mxu0 0.0
    %323 = vmatpush1.msra.mxu0 0.0
    %324 = vmatprep.mubr.f32.mxu0 0.0
    %325 = vmatmul.mubr.f32.gmra.mrb[0].mxu0 %v97
    %v326 = vpop.f32.mrb[0].mxu0
    %v327 = vadd.f32 0.0, %v326
    %v328 = vpop.f32.mrb[0].mxu0
    %329 = vmatprep.mubr.f32.mxu0 0.0
    %330 = vmatmul.mubr.f32.gmra.mrb[0].mxu0 %v100
    %v331 = vpop.f32.mrb[0].mxu0
    %v332 = vadd.f32 0.0, %v331
    %v333 = vpop.f32.mrb[0].mxu0
    %334 = vdwg.mxu0
    %v336 = vsel %vm95, %v169, 0
    %v339 = vsel %vm95, %v248, 0
    %341 = vmatprep.subr.mxu0 0.0
    %342 = vmatpush1.xpose.msra.mxu0 %v339
    %343 = vmatprep.subr.mxu0 0.0
    %344 = vmatpush1.xpose.msra.mxu0 0.0
    %345 = vmatprep.subr.mxu0 0.0
    %346 = vmatpush1.xpose.msra.mxu0 0.0
    %347 = vmatprep.subr.mxu0 0.0
    %348 = vmatpush1.xpose.msra.mxu0 0.0
    %349 = vmatprep.subr.mxu0 0.0
    %350 = vmatpush1.xpose.msra.mxu0 0.0
    %351 = vmatprep.subr.mxu0 0.0
    %352 = vmatpush1.xpose.msra.mxu0 0.0
    %353 = vmatprep.subr.mxu0 0.0
    %354 = vmatpush1.xpose.msra.mxu0 0.0
    %355 = vmatprep.subr.mxu0 0.0
    %356 = vmatpush1.xpose.msra.mxu0 0.0
    %357 = vmatprep.subr.mxu0 0.0
    %358 = vmatpush1.xpose.msra.mxu0 0.0
    %359 = vmatprep.subr.mxu0 0.0
    %360 = vmatpush1.xpose.msra.mxu0 0.0
    %361 = vmatprep.subr.mxu0 0.0
    %362 = vmatpush1.xpose.msra.mxu0 0.0
    %363 = vmatprep.subr.mxu0 0.0
    %364 = vmatpush1.xpose.msra.mxu0 0.0
    %365 = vmatprep.subr.mxu0 0.0
    %366 = vmatpush1.xpose.msra.mxu0 0.0
    %367 = vmatprep.subr.mxu0 0.0
    %368 = vmatpush1.xpose.msra.mxu0 0.0
    %369 = vmatprep.subr.mxu0 0.0
    %370 = vmatpush1.xpose.msra.mxu0 0.0
    %371 = vmatprep.subr.mxu0 0.0
    %372 = vmatpush1.xpose.msra.mxu0 0.0
    %373 = vmatprep.subr.mxu0 0.0
    %374 = vmatpush1.xpose.msra.mxu0 0.0
    %375 = vmatprep.subr.mxu0 0.0
    %376 = vmatpush1.xpose.msra.mxu0 0.0
    %377 = vmatprep.subr.mxu0 0.0
    %378 = vmatpush1.xpose.msra.mxu0 0.0
    %379 = vmatprep.subr.mxu0 0.0
    %380 = vmatpush1.xpose.msra.mxu0 0.0
    %381 = vmatprep.subr.mxu0 0.0
    %382 = vmatpush1.xpose.msra.mxu0 0.0
    %383 = vmatprep.subr.mxu0 0.0
    %384 = vmatpush1.xpose.msra.mxu0 0.0
    %385 = vmatprep.subr.mxu0 0.0
    %386 = vmatpush1.xpose.msra.mxu0 0.0
    %387 = vmatprep.subr.mxu0 0.0
    %388 = vmatpush1.xpose.msra.mxu0 0.0
    %389 = vmatprep.subr.mxu0 0.0
    %390 = vmatpush1.xpose.msra.mxu0 0.0
    %391 = vmatprep.subr.mxu0 0.0
    %392 = vmatpush1.xpose.msra.mxu0 0.0
    %393 = vmatprep.subr.mxu0 0.0
    %394 = vmatpush1.xpose.msra.mxu0 0.0
    %395 = vmatprep.subr.mxu0 0.0
    %396 = vmatpush1.xpose.msra.mxu0 0.0
    %397 = vmatprep.subr.mxu0 0.0
    %398 = vmatpush1.xpose.msra.mxu0 0.0
    %399 = vmatprep.subr.mxu0 0.0
    %400 = vmatpush1.xpose.msra.mxu0 0.0
    %401 = vmatprep.subr.mxu0 0.0
    %402 = vmatpush1.xpose.msra.mxu0 0.0
    %403 = vmatprep.subr.mxu0 0.0
    %404 = vmatpush1.xpose.msra.mxu0 0.0
    %405 = vmatprep.mubr.f32.mxu0 0.0
    %406 = vmatmul.mubr.f32.gmra.mrb[0].mxu0 %v336
    %v407 = vpop.f32.mrb[0].mxu0
    %v408 = vadd.f32 0.0, %v407
    %v409 = vpop.f32.mrb[0].mxu0
    %410 = vdwg.mxu0
    %v412 = vsel %vm95, %v174, 0
    %v415 = vsel %vm95, %v253, 0
    %417 = vmatprep.subr.mxu0 0.0
    %418 = vmatpush1.xpose.msra.mxu0 %v415
    %419 = vmatprep.subr.mxu0 0.0
    %420 = vmatpush1.xpose.msra.mxu0 0.0
    %421 = vmatprep.subr.mxu0 0.0
    %422 = vmatpush1.xpose.msra.mxu0 0.0
    %423 = vmatprep.subr.mxu0 0.0
    %424 = vmatpush1.xpose.msra.mxu0 0.0
    %425 = vmatprep.subr.mxu0 0.0
    %426 = vmatpush1.xpose.msra.mxu0 0.0
    %427 = vmatprep.subr.mxu0 0.0
    %428 = vmatpush1.xpose.msra.mxu0 0.0
    %429 = vmatprep.subr.mxu0 0.0
    %430 = vmatpush1.xpose.msra.mxu0 0.0
    %431 = vmatprep.subr.mxu0 0.0
    %432 = vmatpush1.xpose.msra.mxu0 0.0
    %433 = vmatprep.subr.mxu0 0.0
    %434 = vmatpush1.xpose.msra.mxu0 0.0
    %435 = vmatprep.subr.mxu0 0.0
    %436 = vmatpush1.xpose.msra.mxu0 0.0
    %437 = vmatprep.subr.mxu0 0.0
    %438 = vmatpush1.xpose.msra.mxu0 0.0
    %439 = vmatprep.subr.mxu0 0.0
    %440 = vmatpush1.xpose.msra.mxu0 0.0
    %441 = vmatprep.subr.mxu0 0.0
    %442 = vmatpush1.xpose.msra.mxu0 0.0
    %443 = vmatprep.subr.mxu0 0.0
    %444 = vmatpush1.xpose.msra.mxu0 0.0
    %445 = vmatprep.subr.mxu0 0.0
    %446 = vmatpush1.xpose.msra.mxu0 0.0
    %447 = vmatprep.subr.mxu0 0.0
    %448 = vmatpush1.xpose.msra.mxu0 0.0
    %449 = vmatprep.subr.mxu0 0.0
    %450 = vmatpush1.xpose.msra.mxu0 0.0
    %451 = vmatprep.subr.mxu0 0.0
    %452 = vmatpush1.xpose.msra.mxu0 0.0
    %453 = vmatprep.subr.mxu0 0.0
    %454 = vmatpush1.xpose.msra.mxu0 0.0
    %455 = vmatprep.subr.mxu0 0.0
    %456 = vmatpush1.xpose.msra.mxu0 0.0
    %457 = vmatprep.subr.mxu0 0.0
    %458 = vmatpush1.xpose.msra.mxu0 0.0
    %459 = vmatprep.subr.mxu0 0.0
    %460 = vmatpush1.xpose.msra.mxu0 0.0
    %461 = vmatprep.subr.mxu0 0.0
    %462 = vmatpush1.xpose.msra.mxu0 0.0
    %463 = vmatprep.subr.mxu0 0.0
    %464 = vmatpush1.xpose.msra.mxu0 0.0
    %465 = vmatprep.subr.mxu0 0.0
    %466 = vmatpush1.xpose.msra.mxu0 0.0
    %467 = vmatprep.subr.mxu0 0.0
    %468 = vmatpush1.xpose.msra.mxu0 0.0
    %469 = vmatprep.subr.mxu0 0.0
    %470 = vmatpush1.xpose.msra.mxu0 0.0
    %471 = vmatprep.subr.mxu0 0.0
    %472 = vmatpush1.xpose.msra.mxu0 0.0
    %473 = vmatprep.subr.mxu0 0.0
    %474 = vmatpush1.xpose.msra.mxu0 0.0
    %475 = vmatprep.subr.mxu0 0.0
    %476 = vmatpush1.xpose.msra.mxu0 0.0
    %477 = vmatprep.subr.mxu0 0.0
    %478 = vmatpush1.xpose.msra.mxu0 0.0
    %479 = vmatprep.subr.mxu0 0.0
    %480 = vmatpush1.xpose.msra.mxu0 0.0
    %481 = vmatprep.mubr.f32.mxu0 0.0
    %482 = vmatmul.mubr.f32.gmra.mrb[0].mxu0 %v412
    %v483 = vpop.f32.mrb[0].mxu0
    %v484 = vadd.f32 0.0, %v483
    %v485 = vpop.f32.mrb[0].mxu0
    %486 = vdwg.mxu0
    %vm487 = vcmask 64512
    %v488 = vsel %vm487, %v408, -inf
    %489 = vmax.xlane.f32.xlu0 %v488
    %v490 = vpop.xlane.xlu0 %489
    %v491 = vsel %vm487, %v484, -inf
    %492 = vmax.xlane.f32.xlu0 %v491
    %v493 = vpop.xlane.xlu0 %492
    %v494 = vsub.f32 %v408, %v490
    %v495 = vsub.f32 %v484, %v493
    %v496 = vmul.f32 %v494, 1.442695
    %v497 = vpow.pop %v496
    %v498 = vmul.f32 %v495, 1.442695
    %v499 = vpow.pop %v498
    %v500 = vsel %vm487, %v497, 0.0
    %501 = vadd.xlane.f32.xlu0 %v500
    %v502 = vpop.xlane.xlu0 %501
    %v503 = vsel %vm487, %v499, 0.0
    %504 = vadd.xlane.f32.xlu0 %v503
    %v505 = vpop.xlane.xlu0 %504
    %v506 = vrcp.pop %v502
    %v507 = vmul.f32 %v497, %v506
    %v508 = vrcp.pop %v505
    %v509 = vmul.f32 %v499, %v508
    %v511 = vsel %vm487, %v507, 0
    %513 = vmatprep.subr.mxu0 0.0
    %514 = vmatpush1.msra.mxu0 %v327
    %515 = vmatprep.subr.mxu0 0.0
    %516 = vmatpush1.msra.mxu0 0.0
    %517 = vmatprep.subr.mxu0 0.0
    %518 = vmatpush1.msra.mxu0 0.0
    %519 = vmatprep.subr.mxu0 0.0
    %520 = vmatpush1.msra.mxu0 0.0
    %521 = vmatprep.subr.mxu0 0.0
    %522 = vmatpush1.msra.mxu0 0.0
    %523 = vmatprep.subr.mxu0 0.0
    %524 = vmatpush1.msra.mxu0 0.0
    %525 = vmatprep.subr.mxu0 0.0
    %526 = vmatpush1.msra.mxu0 0.0
    %527 = vmatprep.subr.mxu0 0.0
    %528 = vmatpush1.msra.mxu0 0.0
    %529 = vmatprep.subr.mxu0 0.0
    %530 = vmatpush1.msra.mxu0 0.0
    %531 = vmatprep.subr.mxu0 0.0
    %532 = vmatpush1.msra.mxu0 0.0
    %533 = vmatprep.subr.mxu0 0.0
    %534 = vmatpush1.msra.mxu0 0.0
    %535 = vmatprep.subr.mxu0 0.0
    %536 = vmatpush1.msra.mxu0 0.0
    %537 = vmatprep.subr.mxu0 0.0
    %538 = vmatpush1.msra.mxu0 0.0
    %539 = vmatprep.subr.mxu0 0.0
    %540 = vmatpush1.msra.mxu0 0.0
    %541 = vmatprep.subr.mxu0 0.0
    %542 = vmatpush1.msra.mxu0 0.0
    %543 = vmatprep.subr.mxu0 0.0
    %544 = vmatpush1.msra.mxu0 0.0
    %545 = vmatprep.subr.mxu0 0.0
    %546 = vmatpush1.msra.mxu0 0.0
    %547 = vmatprep.subr.mxu0 0.0
    %548 = vmatpush1.msra.mxu0 0.0
    %549 = vmatprep.subr.mxu0 0.0
    %550 = vmatpush1.msra.mxu0 0.0
    %551 = vmatprep.subr.mxu0 0.0
    %552 = vmatpush1.msra.mxu0 0.0
    %553 = vmatprep.subr.mxu0 0.0
    %554 = vmatpush1.msra.mxu0 0.0
    %555 = vmatprep.subr.mxu0 0.0
    %556 = vmatpush1.msra.mxu0 0.0
    %557 = vmatprep.subr.mxu0 0.0
    %558 = vmatpush1.msra.mxu0 0.0
    %559 = vmatprep.subr.mxu0 0.0
    %560 = vmatpush1.msra.mxu0 0.0
    %561 = vmatprep.subr.mxu0 0.0
    %562 = vmatpush1.msra.mxu0 0.0
    %563 = vmatprep.subr.mxu0 0.0
    %564 = vmatpush1.msra.mxu0 0.0
    %565 = vmatprep.subr.mxu0 0.0
    %566 = vmatpush1.msra.mxu0 0.0
    %567 = vmatprep.subr.mxu0 0.0
    %568 = vmatpush1.msra.mxu0 0.0
    %569 = vmatprep.subr.mxu0 0.0
    %570 = vmatpush1.msra.mxu0 0.0
    %571 = vmatprep.subr.mxu0 0.0
    %572 = vmatpush1.msra.mxu0 0.0
    %573 = vmatprep.subr.mxu0 0.0
    %574 = vmatpush1.msra.mxu0 0.0
    %575 = vmatprep.subr.mxu0 0.0
    %576 = vmatpush1.msra.mxu0 0.0
    %577 = vmatprep.mubr.f32.mxu0 0.0
    %578 = vmatmul.mubr.f32.gmra.mrb[0].mxu0 %v511
    %v579 = vpop.f32.mrb[0].mxu0
    %v580 = vadd.f32 0.0, %v579
    %v581 = vpop.f32.mrb[0].mxu0
    %582 = vdwg.mxu0
    %v584 = vsel %vm487, %v509, 0
    %586 = vmatprep.subr.mxu0 0.0
    %587 = vmatpush1.msra.mxu0 %v332
    %588 = vmatprep.subr.mxu0 0.0
    %589 = vmatpush1.msra.mxu0 0.0
    %590 = vmatprep.subr.mxu0 0.0
    %591 = vmatpush1.msra.mxu0 0.0
    %592 = vmatprep.subr.mxu0 0.0
    %593 = vmatpush1.msra.mxu0 0.0
    %594 = vmatprep.subr.mxu0 0.0
    %595 = vmatpush1.msra.mxu0 0.0
    %596 = vmatprep.subr.mxu0 0.0
    %597 = vmatpush1.msra.mxu0 0.0
    %598 = vmatprep.subr.mxu0 0.0
    %599 = vmatpush1.msra.mxu0 0.0
    %600 = vmatprep.subr.mxu0 0.0
    %601 = vmatpush1.msra.mxu0 0.0
    %602 = vmatprep.subr.mxu0 0.0
    %603 = vmatpush1.msra.mxu0 0.0
    %604 = vmatprep.subr.mxu0 0.0
    %605 = vmatpush1.msra.mxu0 0.0
    %606 = vmatprep.subr.mxu0 0.0
    %607 = vmatpush1.msra.mxu0 0.0
    %608 = vmatprep.subr.mxu0 0.0
    %609 = vmatpush1.msra.mxu0 0.0
    %610 = vmatprep.subr.mxu0 0.0
    %611 = vmatpush1.msra.mxu0 0.0
    %612 = vmatprep.subr.mxu0 0.0
    %613 = vmatpush1.msra.mxu0 0.0
    %614 = vmatprep.subr.mxu0 0.0
    %615 = vmatpush1.msra.mxu0 0.0
    %616 = vmatprep.subr.mxu0 0.0
    %617 = vmatpush1.msra.mxu0 0.0
    %618 = vmatprep.subr.mxu0 0.0
    %619 = vmatpush1.msra.mxu0 0.0
    %620 = vmatprep.subr.mxu0 0.0
    %621 = vmatpush1.msra.mxu0 0.0
    %622 = vmatprep.subr.mxu0 0.0
    %623 = vmatpush1.msra.mxu0 0.0
    %624 = vmatprep.subr.mxu0 0.0
    %625 = vmatpush1.msra.mxu0 0.0
    %626 = vmatprep.subr.mxu0 0.0
    %627 = vmatpush1.msra.mxu0 0.0
    %628 = vmatprep.subr.mxu0 0.0
    %629 = vmatpush1.msra.mxu0 0.0
    %630 = vmatprep.subr.mxu0 0.0
    %631 = vmatpush1.msra.mxu0 0.0
    %632 = vmatprep.subr.mxu0 0.0
    %633 = vmatpush1.msra.mxu0 0.0
    %634 = vmatprep.subr.mxu0 0.0
    %635 = vmatpush1.msra.mxu0 0.0
    %636 = vmatprep.subr.mxu0 0.0
    %637 = vmatpush1.msra.mxu0 0.0
    %638 = vmatprep.subr.mxu0 0.0
    %639 = vmatpush1.msra.mxu0 0.0
    %640 = vmatprep.subr.mxu0 0.0
    %641 = vmatpush1.msra.mxu0 0.0
    %642 = vmatprep.subr.mxu0 0.0
    %643 = vmatpush1.msra.mxu0 0.0
    %644 = vmatprep.subr.mxu0 0.0
    %645 = vmatpush1.msra.mxu0 0.0
    %646 = vmatprep.subr.mxu0 0.0
    %647 = vmatpush1.msra.mxu0 0.0
    %648 = vmatprep.subr.mxu0 0.0
    %649 = vmatpush1.msra.mxu0 0.0
    %650 = vmatprep.mubr.f32.mxu0 0.0
    %651 = vmatmul.mubr.f32.gmra.mrb[0].mxu0 %v584
    %v652 = vpop.f32.mrb[0].mxu0
    %v653 = vadd.f32 0.0, %v652
    %v654 = vpop.f32.mrb[0].mxu0
    %655 = vdwg.mxu0
    %s656 = scalar_lea.vmem %s1, 32
    %v657 = vld [vmem:[%s656] sm:$0xff]
    %v658 = vld [vmem:[%s656 + $0x8] sm:$0xff]
    %v659 = vld [vmem:[%s656 + $0x10] sm:$0xff]
    %v660 = vld [vmem:[%s656 + $0x18] sm:$0xff]
    %661 = vmatprep.subr.mxu0 0.0
    %662 = vmatpush1.msra.mxu0 %v657
    %663 = vmatprep.subr.mxu0 0.0
    %664 = vmatpush1.msra.mxu0 %v658
    %665 = vmatprep.subr.mxu0 0.0
    %666 = vmatpush1.msra.mxu0 %v659
    %667 = vmatprep.subr.mxu0 0.0
    %668 = vmatpush1.msra.mxu0 %v660
    %669 = vmatprep.subr.mxu0 0.0
    %670 = vmatpush1.msra.mxu0 0.0
    %671 = vmatprep.subr.mxu0 0.0
    %672 = vmatpush1.msra.mxu0 0.0
    %673 = vmatprep.subr.mxu0 0.0
    %674 = vmatpush1.msra.mxu0 0.0
    %675 = vmatprep.subr.mxu0 0.0
    %676 = vmatpush1.msra.mxu0 0.0
    %677 = vmatprep.subr.mxu0 0.0
    %678 = vmatpush1.msra.mxu0 0.0
    %679 = vmatprep.subr.mxu0 0.0
    %680 = vmatpush1.msra.mxu0 0.0
    %681 = vmatprep.subr.mxu0 0.0
    %682 = vmatpush1.msra.mxu0 0.0
    %683 = vmatprep.subr.mxu0 0.0
    %684 = vmatpush1.msra.mxu0 0.0
    %685 = vmatprep.subr.mxu0 0.0
    %686 = vmatpush1.msra.mxu0 0.0
    %687 = vmatprep.subr.mxu0 0.0
    %688 = vmatpush1.msra.mxu0 0.0
    %689 = vmatprep.subr.mxu0 0.0
    %690 = vmatpush1.msra.mxu0 0.0
    %691 = vmatprep.subr.mxu0 0.0
    %692 = vmatpush1.msra.mxu0 0.0
    %693 = vmatprep.subr.mxu0 0.0
    %694 = vmatpush1.msra.mxu0 0.0
    %695 = vmatprep.subr.mxu0 0.0
    %696 = vmatpush1.msra.mxu0 0.0
    %697 = vmatprep.subr.mxu0 0.0
    %698 = vmatpush1.msra.mxu0 0.0
    %699 = vmatprep.subr.mxu0 0.0
    %700 = vmatpush1.msra.mxu0 0.0
    %701 = vmatprep.subr.mxu0 0.0
    %702 = vmatpush1.msra.mxu0 0.0
    %703 = vmatprep.subr.mxu0 0.0
    %704 = vmatpush1.msra.mxu0 0.0
    %705 = vmatprep.subr.mxu0 0.0
    %706 = vmatpush1.msra.mxu0 0.0
    %707 = vmatprep.subr.mxu0 0.0
    %708 = vmatpush1.msra.mxu0 0.0
    %709 = vmatprep.subr.mxu0 0.0
    %710 = vmatpush1.msra.mxu0 0.0
    %711 = vmatprep.subr.mxu0 0.0
    %712 = vmatpush1.msra.mxu0 0.0
    %713 = vmatprep.subr.mxu0 0.0
    %714 = vmatpush1.msra.mxu0 0.0
    %715 = vmatprep.subr.mxu0 0.0
    %716 = vmatpush1.msra.mxu0 0.0
    %717 = vmatprep.subr.mxu0 0.0
    %718 = vmatpush1.msra.mxu0 0.0
    %719 = vmatprep.subr.mxu0 0.0
    %720 = vmatpush1.msra.mxu0 0.0
    %721 = vmatprep.subr.mxu0 0.0
    %722 = vmatpush1.msra.mxu0 0.0
    %723 = vmatprep.subr.mxu0 0.0
    %724 = vmatpush1.msra.mxu0 0.0
    %725 = vmatprep.mubr.f32.mxu0 0.0
    %726 = vmatmul.mubr.f32.gmra.mrb[0].mxu0 %v97
    %v727 = vpop.f32.mrb[0].mxu0
    %v728 = vadd.f32 0.0, %v727
    %v729 = vpop.f32.mrb[0].mxu0
    %730 = vmatprep.mubr.f32.mxu0 0.0
    %731 = vmatmul.mubr.f32.gmra.mrb[0].mxu0 %v100
    %v732 = vpop.f32.mrb[0].mxu0
    %v733 = vadd.f32 0.0, %v732
    %v734 = vpop.f32.mrb[0].mxu0
    %735 = vdwg.mxu0
    %s736 = scalar_lea.vmem %s2, 32
    %v737 = vld [vmem:[%s736] sm:$0xff]
    %v738 = vld [vmem:[%s736 + $0x8] sm:$0xff]
    %v739 = vld [vmem:[%s736 + $0x10] sm:$0xff]
    %v740 = vld [vmem:[%s736 + $0x18] sm:$0xff]
    %741 = vmatprep.subr.mxu0 0.0
    %742 = vmatpush1.msra.mxu0 %v737
    %743 = vmatprep.subr.mxu0 0.0
    %744 = vmatpush1.msra.mxu0 %v738
    %745 = vmatprep.subr.mxu0 0.0
    %746 = vmatpush1.msra.mxu0 %v739
    %747 = vmatprep.subr.mxu0 0.0
    %748 = vmatpush1.msra.mxu0 %v740
    %749 = vmatprep.subr.mxu0 0.0
    %750 = vmatpush1.msra.mxu0 0.0
    %751 = vmatprep.subr.mxu0 0.0
    %752 = vmatpush1.msra.mxu0 0.0
    %753 = vmatprep.subr.mxu0 0.0
    %754 = vmatpush1.msra.mxu0 0.0
    %755 = vmatprep.subr.mxu0 0.0
    %756 = vmatpush1.msra.mxu0 0.0
    %757 = vmatprep.subr.mxu0 0.0
    %758 = vmatpush1.msra.mxu0 0.0
    %759 = vmatprep.subr.mxu0 0.0
    %760 = vmatpush1.msra.mxu0 0.0
    %761 = vmatprep.subr.mxu0 0.0
    %762 = vmatpush1.msra.mxu0 0.0
    %763 = vmatprep.subr.mxu0 0.0
    %764 = vmatpush1.msra.mxu0 0.0
    %765 = vmatprep.subr.mxu0 0.0
    %766 = vmatpush1.msra.mxu0 0.0
    %767 = vmatprep.subr.mxu0 0.0
    %768 = vmatpush1.msra.mxu0 0.0
    %769 = vmatprep.subr.mxu0 0.0
    %770 = vmatpush1.msra.mxu0 0.0
    %771 = vmatprep.subr.mxu0 0.0
    %772 = vmatpush1.msra.mxu0 0.0
    %773 = vmatprep.subr.mxu0 0.0
    %774 = vmatpush1.msra.mxu0 0.0
    %775 = vmatprep.subr.mxu0 0.0
    %776 = vmatpush1.msra.mxu0 0.0
    %777 = vmatprep.subr.mxu0 0.0
    %778 = vmatpush1.msra.mxu0 0.0
    %779 = vmatprep.subr.mxu0 0.0
    %780 = vmatpush1.msra.mxu0 0.0
    %781 = vmatprep.subr.mxu0 0.0
    %782 = vmatpush1.msra.mxu0 0.0
    %783 = vmatprep.subr.mxu0 0.0
    %784 = vmatpush1.msra.mxu0 0.0
    %785 = vmatprep.subr.mxu0 0.0
    %786 = vmatpush1.msra.mxu0 0.0
    %787 = vmatprep.subr.mxu0 0.0
    %788 = vmatpush1.msra.mxu0 0.0
    %789 = vmatprep.subr.mxu0 0.0
    %790 = vmatpush1.msra.mxu0 0.0
    %791 = vmatprep.subr.mxu0 0.0
    %792 = vmatpush1.msra.mxu0 0.0
    %793 = vmatprep.subr.mxu0 0.0
    %794 = vmatpush1.msra.mxu0 0.0
    %795 = vmatprep.subr.mxu0 0.0
    %796 = vmatpush1.msra.mxu0 0.0
    %797 = vmatprep.subr.mxu0 0.0
    %798 = vmatpush1.msra.mxu0 0.0
    %799 = vmatprep.subr.mxu0 0.0
    %800 = vmatpush1.msra.mxu0 0.0
    %801 = vmatprep.subr.mxu0 0.0
    %802 = vmatpush1.msra.mxu0 0.0
    %803 = vmatprep.subr.mxu0 0.0
    %804 = vmatpush1.msra.mxu0 0.0
    %805 = vmatprep.mubr.f32.mxu0 0.0
    %806 = vmatmul.mubr.f32.gmra.mrb[0].mxu0 %v97
    %v807 = vpop.f32.mrb[0].mxu0
    %v808 = vadd.f32 0.0, %v807
    %v809 = vpop.f32.mrb[0].mxu0
    %810 = vmatprep.mubr.f32.mxu0 0.0
    %811 = vmatmul.mubr.f32.gmra.mrb[0].mxu0 %v100
    %v812 = vpop.f32.mrb[0].mxu0
    %v813 = vadd.f32 0.0, %v812
    %v814 = vpop.f32.mrb[0].mxu0
    %815 = vdwg.mxu0
    %s816 = scalar_lea.vmem [#allocation5], 32
    %v817 = vld [vmem:[%s816] sm:$0xff]
    %v818 = vld [vmem:[%s816 + $0x8] sm:$0xff]
    %v819 = vld [vmem:[%s816 + $0x10] sm:$0xff]
    %v820 = vld [vmem:[%s816 + $0x18] sm:$0xff]
    %821 = vmatprep.subr.mxu0 0.0
    %822 = vmatpush1.msra.mxu0 %v817
    %823 = vmatprep.subr.mxu0 0.0
    %824 = vmatpush1.msra.mxu0 %v818
    %825 = vmatprep.subr.mxu0 0.0
    %826 = vmatpush1.msra.mxu0 %v819
    %827 = vmatprep.subr.mxu0 0.0
    %828 = vmatpush1.msra.mxu0 %v820
    %829 = vmatprep.subr.mxu0 0.0
    %830 = vmatpush1.msra.mxu0 0.0
    %831 = vmatprep.subr.mxu0 0.0
    %832 = vmatpush1.msra.mxu0 0.0
    %833 = vmatprep.subr.mxu0 0.0
    %834 = vmatpush1.msra.mxu0 0.0
    %835 = vmatprep.subr.mxu0 0.0
    %836 = vmatpush1.msra.mxu0 0.0
    %837 = vmatprep.subr.mxu0 0.0
    %838 = vmatpush1.msra.mxu0 0.0
    %839 = vmatprep.subr.mxu0 0.0
    %840 = vmatpush1.msra.mxu0 0.0
    %841 = vmatprep.subr.mxu0 0.0
    %842 = vmatpush1.msra.mxu0 0.0
    %843 = vmatprep.subr.mxu0 0.0
    %844 = vmatpush1.msra.mxu0 0.0
    %845 = vmatprep.subr.mxu0 0.0
    %846 = vmatpush1.msra.mxu0 0.0
    %847 = vmatprep.subr.mxu0 0.0
    %848 = vmatpush1.msra.mxu0 0.0
    %849 = vmatprep.subr.mxu0 0.0
    %850 = vmatpush1.msra.mxu0 0.0
    %851 = vmatprep.subr.mxu0 0.0
    %852 = vmatpush1.msra.mxu0 0.0
    %853 = vmatprep.subr.mxu0 0.0
    %854 = vmatpush1.msra.mxu0 0.0
    %855 = vmatprep.subr.mxu0 0.0
    %856 = vmatpush1.msra.mxu0 0.0
    %857 = vmatprep.subr.mxu0 0.0
    %858 = vmatpush1.msra.mxu0 0.0
    %859 = vmatprep.subr.mxu0 0.0
    %860 = vmatpush1.msra.mxu0 0.0
    %861 = vmatprep.subr.mxu0 0.0
    %862 = vmatpush1.msra.mxu0 0.0
    %863 = vmatprep.subr.mxu0 0.0
    %864 = vmatpush1.msra.mxu0 0.0
    %865 = vmatprep.subr.mxu0 0.0
    %866 = vmatpush1.msra.mxu0 0.0
    %867 = vmatprep.subr.mxu0 0.0
    %868 = vmatpush1.msra.mxu0 0.0
    %869 = vmatprep.subr.mxu0 0.0
    %870 = vmatpush1.msra.mxu0 0.0
    %871 = vmatprep.subr.mxu0 0.0
    %872 = vmatpush1.msra.mxu0 0.0
    %873 = vmatprep.subr.mxu0 0.0
    %874 = vmatpush1.msra.mxu0 0.0
    %875 = vmatprep.subr.mxu0 0.0
    %876 = vmatpush1.msra.mxu0 0.0
    %877 = vmatprep.subr.mxu0 0.0
    %878 = vmatpush1.msra.mxu0 0.0
    %879 = vmatprep.subr.mxu0 0.0
    %880 = vmatpush1.msra.mxu0 0.0
    %881 = vmatprep.subr.mxu0 0.0
    %882 = vmatpush1.msra.mxu0 0.0
    %883 = vmatprep.subr.mxu0 0.0
    %884 = vmatpush1.msra.mxu0 0.0
    %885 = vmatprep.mubr.f32.mxu0 0.0
    %886 = vmatmul.mubr.f32.gmra.mrb[0].mxu0 %v97
    %v887 = vpop.f32.mrb[0].mxu0
    %v888 = vadd.f32 0.0, %v887
    %v889 = vpop.f32.mrb[0].mxu0
    %890 = vmatprep.mubr.f32.mxu0 0.0
    %891 = vmatmul.mubr.f32.gmra.mrb[0].mxu0 %v100
    %v892 = vpop.f32.mrb[0].mxu0
    %v893 = vadd.f32 0.0, %v892
    %v894 = vpop.f32.mrb[0].mxu0
    %895 = vdwg.mxu0
    %v897 = vsel %vm95, %v728, 0
    %v900 = vsel %vm95, %v808, 0
    %902 = vmatprep.subr.mxu0 0.0
    %903 = vmatpush1.xpose.msra.mxu0 %v900
    %904 = vmatprep.subr.mxu0 0.0
    %905 = vmatpush1.xpose.msra.mxu0 0.0
    %906 = vmatprep.subr.mxu0 0.0
    %907 = vmatpush1.xpose.msra.mxu0 0.0
    %908 = vmatprep.subr.mxu0 0.0
    %909 = vmatpush1.xpose.msra.mxu0 0.0
    %910 = vmatprep.subr.mxu0 0.0
    %911 = vmatpush1.xpose.msra.mxu0 0.0
    %912 = vmatprep.subr.mxu0 0.0
    %913 = vmatpush1.xpose.msra.mxu0 0.0
    %914 = vmatprep.subr.mxu0 0.0
    %915 = vmatpush1.xpose.msra.mxu0 0.0
    %916 = vmatprep.subr.mxu0 0.0
    %917 = vmatpush1.xpose.msra.mxu0 0.0
    %918 = vmatprep.subr.mxu0 0.0
    %919 = vmatpush1.xpose.msra.mxu0 0.0
    %920 = vmatprep.subr.mxu0 0.0
    %921 = vmatpush1.xpose.msra.mxu0 0.0
    %922 = vmatprep.subr.mxu0 0.0
    %923 = vmatpush1.xpose.msra.mxu0 0.0
    %924 = vmatprep.subr.mxu0 0.0
    %925 = vmatpush1.xpose.msra.mxu0 0.0
    %926 = vmatprep.subr.mxu0 0.0
    %927 = vmatpush1.xpose.msra.mxu0 0.0
    %928 = vmatprep.subr.mxu0 0.0
    %929 = vmatpush1.xpose.msra.mxu0 0.0
    %930 = vmatprep.subr.mxu0 0.0
    %931 = vmatpush1.xpose.msra.mxu0 0.0
    %932 = vmatprep.subr.mxu0 0.0
    %933 = vmatpush1.xpose.msra.mxu0 0.0
    %934 = vmatprep.subr.mxu0 0.0
    %935 = vmatpush1.xpose.msra.mxu0 0.0
    %936 = vmatprep.subr.mxu0 0.0
    %937 = vmatpush1.xpose.msra.mxu0 0.0
    %938 = vmatprep.subr.mxu0 0.0
    %939 = vmatpush1.xpose.msra.mxu0 0.0
    %940 = vmatprep.subr.mxu0 0.0
    %941 = vmatpush1.xpose.msra.mxu0 0.0
    %942 = vmatprep.subr.mxu0 0.0
    %943 = vmatpush1.xpose.msra.mxu0 0.0
    %944 = vmatprep.subr.mxu0 0.0
    %945 = vmatpush1.xpose.msra.mxu0 0.0
    %946 = vmatprep.subr.mxu0 0.0
    %947 = vmatpush1.xpose.msra.mxu0 0.0
    %948 = vmatprep.subr.mxu0 0.0
    %949 = vmatpush1.xpose.msra.mxu0 0.0
    %950 = vmatprep.subr.mxu0 0.0
    %951 = vmatpush1.xpose.msra.mxu0 0.0
    %952 = vmatprep.subr.mxu0 0.0
    %953 = vmatpush1.xpose.msra.mxu0 0.0
    %954 = vmatprep.subr.mxu0 0.0
    %955 = vmatpush1.xpose.msra.mxu0 0.0
    %956 = vmatprep.subr.mxu0 0.0
    %957 = vmatpush1.xpose.msra.mxu0 0.0
    %958 = vmatprep.subr.mxu0 0.0
    %959 = vmatpush1.xpose.msra.mxu0 0.0
    %960 = vmatprep.subr.mxu0 0.0
    %961 = vmatpush1.xpose.msra.mxu0 0.0
    %962 = vmatprep.subr.mxu0 0.0
    %963 = vmatpush1.xpose.msra.mxu0 0.0
    %964 = vmatprep.subr.mxu0 0.0
    %965 = vmatpush1.xpose.msra.mxu0 0.0
    %966 = vmatprep.mubr.f32.mxu0 0.0
    %967 = vmatmul.mubr.f32.gmra.mrb[0].mxu0 %v897
    %v968 = vpop.f32.mrb[0].mxu0
    %v969 = vadd.f32 0.0, %v968
    %v970 = vpop.f32.mrb[0].mxu0
    %971 = vdwg.mxu0
    %v973 = vsel %vm95, %v733, 0
    %v976 = vsel %vm95, %v813, 0
    %978 = vmatprep.subr.mxu0 0.0
    %979 = vmatpush1.xpose.msra.mxu0 %v976
    %980 = vmatprep.subr.mxu0 0.0
    %981 = vmatpush1.xpose.msra.mxu0 0.0
    %982 = vmatprep.subr.mxu0 0.0
    %983 = vmatpush1.xpose.msra.mxu0 0.0
    %984 = vmatprep.subr.mxu0 0.0
    %985 = vmatpush1.xpose.msra.mxu0 0.0
    %986 = vmatprep.subr.mxu0 0.0
    %987 = vmatpush1.xpose.msra.mxu0 0.0
    %988 = vmatprep.subr.mxu0 0.0
    %989 = vmatpush1.xpose.msra.mxu0 0.0
    %990 = vmatprep.subr.mxu0 0.0
    %991 = vmatpush1.xpose.msra.mxu0 0.0
    %992 = vmatprep.subr.mxu0 0.0
    %993 = vmatpush1.xpose.msra.mxu0 0.0
    %994 = vmatprep.subr.mxu0 0.0
    %995 = vmatpush1.xpose.msra.mxu0 0.0
    %996 = vmatprep.subr.mxu0 0.0
    %997 = vmatpush1.xpose.msra.mxu0 0.0
    %998 = vmatprep.subr.mxu0 0.0
    %999 = vmatpush1.xpose.msra.mxu0 0.0
    %1000 = vmatprep.subr.mxu0 0.0
    %1001 = vmatpush1.xpose.msra.mxu0 0.0
    %1002 = vmatprep.subr.mxu0 0.0
    %1003 = vmatpush1.xpose.msra.mxu0 0.0
    %1004 = vmatprep.subr.mxu0 0.0
    %1005 = vmatpush1.xpose.msra.mxu0 0.0
    %1006 = vmatprep.subr.mxu0 0.0
    %1007 = vmatpush1.xpose.msra.mxu0 0.0
    %1008 = vmatprep.subr.mxu0 0.0
    %1009 = vmatpush1.xpose.msra.mxu0 0.0
    %1010 = vmatprep.subr.mxu0 0.0
    %1011 = vmatpush1.xpose.msra.mxu0 0.0
    %1012 = vmatprep.subr.mxu0 0.0
    %1013 = vmatpush1.xpose.msra.mxu0 0.0
    %1014 = vmatprep.subr.mxu0 0.0
    %1015 = vmatpush1.xpose.msra.mxu0 0.0
    %1016 = vmatprep.subr.mxu0 0.0
    %1017 = vmatpush1.xpose.msra.mxu0 0.0
    %1018 = vmatprep.subr.mxu0 0.0
    %1019 = vmatpush1.xpose.msra.mxu0 0.0
    %1020 = vmatprep.subr.mxu0 0.0
    %1021 = vmatpush1.xpose.msra.mxu0 0.0
    %1022 = vmatprep.subr.mxu0 0.0
    %1023 = vmatpush1.xpose.msra.mxu0 0.0
    %1024 = vmatprep.subr.mxu0 0.0
    %1025 = vmatpush1.xpose.msra.mxu0 0.0
    %1026 = vmatprep.subr.mxu0 0.0
    %1027 = vmatpush1.xpose.msra.mxu0 0.0
    %1028 = vmatprep.subr.mxu0 0.0
    %1029 = vmatpush1.xpose.msra.mxu0 0.0
    %1030 = vmatprep.subr.mxu0 0.0
    %1031 = vmatpush1.xpose.msra.mxu0 0.0
    %1032 = vmatprep.subr.mxu0 0.0
    %1033 = vmatpush1.xpose.msra.mxu0 0.0
    %1034 = vmatprep.subr.mxu0 0.0
    %1035 = vmatpush1.xpose.msra.mxu0 0.0
    %1036 = vmatprep.subr.mxu0 0.0
    %1037 = vmatpush1.xpose.msra.mxu0 0.0
    %1038 = vmatprep.subr.mxu0 0.0
    %1039 = vmatpush1.xpose.msra.mxu0 0.0
    %1040 = vmatprep.subr.mxu0 0.0
    %1041 = vmatpush1.xpose.msra.mxu0 0.0
    %1042 = vmatprep.mubr.f32.mxu0 0.0
    %1043 = vmatmul.mubr.f32.gmra.mrb[0].mxu0 %v973
    %v1044 = vpop.f32.mrb[0].mxu0
    %v1045 = vadd.f32 0.0, %v1044
    %v1046 = vpop.f32.mrb[0].mxu0
    %1047 = vdwg.mxu0
    %v1048 = vsel %vm487, %v969, -inf
    %1049 = vmax.xlane.f32.xlu0 %v1048
    %v1050 = vpop.xlane.xlu0 %1049
    %v1051 = vsel %vm487, %v1045, -inf
    %1052 = vmax.xlane.f32.xlu0 %v1051
    %v1053 = vpop.xlane.xlu0 %1052
    %v1054 = vsub.f32 %v969, %v1050
    %v1055 = vsub.f32 %v1045, %v1053
    %v1056 = vmul.f32 %v1054, 1.442695
    %v1057 = vpow.pop %v1056
    %v1058 = vmul.f32 %v1055, 1.442695
    %v1059 = vpow.pop %v1058
    %v1060 = vsel %vm487, %v1057, 0.0
    %1061 = vadd.xlane.f32.xlu0 %v1060
    %v1062 = vpop.xlane.xlu0 %1061
    %v1063 = vsel %vm487, %v1059, 0.0
    %1064 = vadd.xlane.f32.xlu0 %v1063
    %v1065 = vpop.xlane.xlu0 %1064
    %v1066 = vrcp.pop %v1062
    %v1067 = vmul.f32 %v1057, %v1066
    %v1068 = vrcp.pop %v1065
    %v1069 = vmul.f32 %v1059, %v1068
    %v1071 = vsel %vm487, %v1067, 0
    %1073 = vmatprep.subr.mxu0 0.0
    %1074 = vmatpush1.msra.mxu0 %v888
    %1075 = vmatprep.subr.mxu0 0.0
    %1076 = vmatpush1.msra.mxu0 0.0
    %1077 = vmatprep.subr.mxu0 0.0
    %1078 = vmatpush1.msra.mxu0 0.0
    %1079 = vmatprep.subr.mxu0 0.0
    %1080 = vmatpush1.msra.mxu0 0.0
    %1081 = vmatprep.subr.mxu0 0.0
    %1082 = vmatpush1.msra.mxu0 0.0
    %1083 = vmatprep.subr.mxu0 0.0
    %1084 = vmatpush1.msra.mxu0 0.0
    %1085 = vmatprep.subr.mxu0 0.0
    %1086 = vmatpush1.msra.mxu0 0.0
    %1087 = vmatprep.subr.mxu0 0.0
    %1088 = vmatpush1.msra.mxu0 0.0
    %1089 = vmatprep.subr.mxu0 0.0
    %1090 = vmatpush1.msra.mxu0 0.0
    %1091 = vmatprep.subr.mxu0 0.0
    %1092 = vmatpush1.msra.mxu0 0.0
    %1093 = vmatprep.subr.mxu0 0.0
    %1094 = vmatpush1.msra.mxu0 0.0
    %1095 = vmatprep.subr.mxu0 0.0
    %1096 = vmatpush1.msra.mxu0 0.0
    %1097 = vmatprep.subr.mxu0 0.0
    %1098 = vmatpush1.msra.mxu0 0.0
    %1099 = vmatprep.subr.mxu0 0.0
    %1100 = vmatpush1.msra.mxu0 0.0
    %1101 = vmatprep.subr.mxu0 0.0
    %1102 = vmatpush1.msra.mxu0 0.0
    %1103 = vmatprep.subr.mxu0 0.0
    %1104 = vmatpush1.msra.mxu0 0.0
    %1105 = vmatprep.subr.mxu0 0.0
    %1106 = vmatpush1.msra.mxu0 0.0
    %1107 = vmatprep.subr.mxu0 0.0
    %1108 = vmatpush1.msra.mxu0 0.0
    %1109 = vmatprep.subr.mxu0 0.0
    %1110 = vmatpush1.msra.mxu0 0.0
    %1111 = vmatprep.subr.mxu0 0.0
    %1112 = vmatpush1.msra.mxu0 0.0
    %1113 = vmatprep.subr.mxu0 0.0
    %1114 = vmatpush1.msra.mxu0 0.0
    %1115 = vmatprep.subr.mxu0 0.0
    %1116 = vmatpush1.msra.mxu0 0.0
    %1117 = vmatprep.subr.mxu0 0.0
    %1118 = vmatpush1.msra.mxu0 0.0
    %1119 = vmatprep.subr.mxu0 0.0
    %1120 = vmatpush1.msra.mxu0 0.0
    %1121 = vmatprep.subr.mxu0 0.0
    %1122 = vmatpush1.msra.mxu0 0.0
    %1123 = vmatprep.subr.mxu0 0.0
    %1124 = vmatpush1.msra.mxu0 0.0
    %1125 = vmatprep.subr.mxu0 0.0
    %1126 = vmatpush1.msra.mxu0 0.0
    %1127 = vmatprep.subr.mxu0 0.0
    %1128 = vmatpush1.msra.mxu0 0.0
    %1129 = vmatprep.subr.mxu0 0.0
    %1130 = vmatpush1.msra.mxu0 0.0
    %1131 = vmatprep.subr.mxu0 0.0
    %1132 = vmatpush1.msra.mxu0 0.0
    %1133 = vmatprep.subr.mxu0 0.0
    %1134 = vmatpush1.msra.mxu0 0.0
    %1135 = vmatprep.subr.mxu0 0.0
    %1136 = vmatpush1.msra.mxu0 0.0
    %1137 = vmatprep.mubr.f32.mxu0 0.0
    %1138 = vmatmul.mubr.f32.gmra.mrb[0].mxu0 %v1071
    %v1139 = vpop.f32.mrb[0].mxu0
    %v1140 = vadd.f32 0.0, %v1139
    %v1141 = vpop.f32.mrb[0].mxu0
    %1142 = vdwg.mxu0
    %v1144 = vsel %vm487, %v1069, 0
    %1146 = vmatprep.subr.mxu0 0.0
    %1147 = vmatpush1.msra.mxu0 %v893
    %1148 = vmatprep.subr.mxu0 0.0
    %1149 = vmatpush1.msra.mxu0 0.0
    %1150 = vmatprep.subr.mxu0 0.0
    %1151 = vmatpush1.msra.mxu0 0.0
    %1152 = vmatprep.subr.mxu0 0.0
    %1153 = vmatpush1.msra.mxu0 0.0
    %1154 = vmatprep.subr.mxu0 0.0
    %1155 = vmatpush1.msra.mxu0 0.0
    %1156 = vmatprep.subr.mxu0 0.0
    %1157 = vmatpush1.msra.mxu0 0.0
    %1158 = vmatprep.subr.mxu0 0.0
    %1159 = vmatpush1.msra.mxu0 0.0
    %1160 = vmatprep.subr.mxu0 0.0
    %1161 = vmatpush1.msra.mxu0 0.0
    %1162 = vmatprep.subr.mxu0 0.0
    %1163 = vmatpush1.msra.mxu0 0.0
    %1164 = vmatprep.subr.mxu0 0.0
    %1165 = vmatpush1.msra.mxu0 0.0
    %1166 = vmatprep.subr.mxu0 0.0
    %1167 = vmatpush1.msra.mxu0 0.0
    %1168 = vmatprep.subr.mxu0 0.0
    %1169 = vmatpush1.msra.mxu0 0.0
    %1170 = vmatprep.subr.mxu0 0.0
    %1171 = vmatpush1.msra.mxu0 0.0
    %1172 = vmatprep.subr.mxu0 0.0
    %1173 = vmatpush1.msra.mxu0 0.0
    %1174 = vmatprep.subr.mxu0 0.0
    %1175 = vmatpush1.msra.mxu0 0.0
    %1176 = vmatprep.subr.mxu0 0.0
    %1177 = vmatpush1.msra.mxu0 0.0
    %1178 = vmatprep.subr.mxu0 0.0
    %1179 = vmatpush1.msra.mxu0 0.0
    %1180 = vmatprep.subr.mxu0 0.0
    %1181 = vmatpush1.msra.mxu0 0.0
    %1182 = vmatprep.subr.mxu0 0.0
    %1183 = vmatpush1.msra.mxu0 0.0
    %1184 = vmatprep.subr.mxu0 0.0
    %1185 = vmatpush1.msra.mxu0 0.0
    %1186 = vmatprep.subr.mxu0 0.0
    %1187 = vmatpush1.msra.mxu0 0.0
    %1188 = vmatprep.subr.mxu0 0.0
    %1189 = vmatpush1.msra.mxu0 0.0
    %1190 = vmatprep.subr.mxu0 0.0
    %1191 = vmatpush1.msra.mxu0 0.0
    %1192 = vmatprep.subr.mxu0 0.0
    %1193 = vmatpush1.msra.mxu0 0.0
    %1194 = vmatprep.subr.mxu0 0.0
    %1195 = vmatpush1.msra.mxu0 0.0
    %1196 = vmatprep.subr.mxu0 0.0
    %1197 = vmatpush1.msra.mxu0 0.0
    %1198 = vmatprep.subr.mxu0 0.0
    %1199 = vmatpush1.msra.mxu0 0.0
    %1200 = vmatprep.subr.mxu0 0.0
    %1201 = vmatpush1.msra.mxu0 0.0
    %1202 = vmatprep.subr.mxu0 0.0
    %1203 = vmatpush1.msra.mxu0 0.0
    %1204 = vmatprep.subr.mxu0 0.0
    %1205 = vmatpush1.msra.mxu0 0.0
    %1206 = vmatprep.subr.mxu0 0.0
    %1207 = vmatpush1.msra.mxu0 0.0
    %1208 = vmatprep.subr.mxu0 0.0
    %1209 = vmatpush1.msra.mxu0 0.0
    %1210 = vmatprep.mubr.f32.mxu0 0.0
    %1211 = vmatmul.mubr.f32.gmra.mrb[0].mxu0 %v1144
    %v1212 = vpop.f32.mrb[0].mxu0
    %v1213 = vadd.f32 0.0, %v1212
    %v1214 = vpop.f32.mrb[0].mxu0
    %1215 = vdwg.mxu0
    %s1216 = scalar_lea.vmem %s1, 64
    %v1217 = vld [vmem:[%s1216] sm:$0xff]
    %v1218 = vld [vmem:[%s1216 + $0x8] sm:$0xff]
    %v1219 = vld [vmem:[%s1216 + $0x10] sm:$0xff]
    %v1220 = vld [vmem:[%s1216 + $0x18] sm:$0xff]
    %1221 = vmatprep.subr.mxu0 0.0
    %1222 = vmatpush1.msra.mxu0 %v1217
    %1223 = vmatprep.subr.mxu0 0.0
    %1224 = vmatpush1.msra.mxu0 %v1218
    %1225 = vmatprep.subr.mxu0 0.0
    %1226 = vmatpush1.msra.mxu0 %v1219
    %1227 = vmatprep.subr.mxu0 0.0
    %1228 = vmatpush1.msra.mxu0 %v1220
    %1229 = vmatprep.subr.mxu0 0.0
    %1230 = vmatpush1.msra.mxu0 0.0
    %1231 = vmatprep.subr.mxu0 0.0
    %1232 = vmatpush1.msra.mxu0 0.0
    %1233 = vmatprep.subr.mxu0 0.0
    %1234 = vmatpush1.msra.mxu0 0.0
    %1235 = vmatprep.subr.mxu0 0.0
    %1236 = vmatpush1.msra.mxu0 0.0
    %1237 = vmatprep.subr.mxu0 0.0
    %1238 = vmatpush1.msra.mxu0 0.0
    %1239 = vmatprep.subr.mxu0 0.0
    %1240 = vmatpush1.msra.mxu0 0.0
    %1241 = vmatprep.subr.mxu0 0.0
    %1242 = vmatpush1.msra.mxu0 0.0
    %1243 = vmatprep.subr.mxu0 0.0
    %1244 = vmatpush1.msra.mxu0 0.0
    %1245 = vmatprep.subr.mxu0 0.0
    %1246 = vmatpush1.msra.mxu0 0.0
    %1247 = vmatprep.subr.mxu0 0.0
    %1248 = vmatpush1.msra.mxu0 0.0
    %1249 = vmatprep.subr.mxu0 0.0
    %1250 = vmatpush1.msra.mxu0 0.0
    %1251 = vmatprep.subr.mxu0 0.0
    %1252 = vmatpush1.msra.mxu0 0.0
    %1253 = vmatprep.subr.mxu0 0.0
    %1254 = vmatpush1.msra.mxu0 0.0
    %1255 = vmatprep.subr.mxu0 0.0
    %1256 = vmatpush1.msra.mxu0 0.0
    %1257 = vmatprep.subr.mxu0 0.0
    %1258 = vmatpush1.msra.mxu0 0.0
    %1259 = vmatprep.subr.mxu0 0.0
    %1260 = vmatpush1.msra.mxu0 0.0
    %1261 = vmatprep.subr.mxu0 0.0
    %1262 = vmatpush1.msra.mxu0 0.0
    %1263 = vmatprep.subr.mxu0 0.0
    %1264 = vmatpush1.msra.mxu0 0.0
    %1265 = vmatprep.subr.mxu0 0.0
    %1266 = vmatpush1.msra.mxu0 0.0
    %1267 = vmatprep.subr.mxu0 0.0
    %1268 = vmatpush1.msra.mxu0 0.0
    %1269 = vmatprep.subr.mxu0 0.0
    %1270 = vmatpush1.msra.mxu0 0.0
    %1271 = vmatprep.subr.mxu0 0.0
    %1272 = vmatpush1.msra.mxu0 0.0
    %1273 = vmatprep.subr.mxu0 0.0
    %1274 = vmatpush1.msra.mxu0 0.0
    %1275 = vmatprep.subr.mxu0 0.0
    %1276 = vmatpush1.msra.mxu0 0.0
    %1277 = vmatprep.subr.mxu0 0.0
    %1278 = vmatpush1.msra.mxu0 0.0
    %1279 = vmatprep.subr.mxu0 0.0
    %1280 = vmatpush1.msra.mxu0 0.0
    %1281 = vmatprep.subr.mxu0 0.0
    %1282 = vmatpush1.msra.mxu0 0.0
    %1283 = vmatprep.subr.mxu0 0.0
    %1284 = vmatpush1.msra.mxu0 0.0
    %1285 = vmatprep.mubr.f32.mxu0 0.0
    %1286 = vmatmul.mubr.f32.gmra.mrb[0].mxu0 %v97
    %v1287 = vpop.f32.mrb[0].mxu0
    %v1288 = vadd.f32 0.0, %v1287
    %v1289 = vpop.f32.mrb[0].mxu0
    %1290 = vmatprep.mubr.f32.mxu0 0.0
    %1291 = vmatmul.mubr.f32.gmra.mrb[0].mxu0 %v100
    %v1292 = vpop.f32.mrb[0].mxu0
    %v1293 = vadd.f32 0.0, %v1292
    %v1294 = vpop.f32.mrb[0].mxu0
    %1295 = vdwg.mxu0
    %s1296 = scalar_lea.vmem %s2, 64
    %v1297 = vld [vmem:[%s1296] sm:$0xff]
    %v1298 = vld [vmem:[%s1296 + $0x8] sm:$0xff]
    %v1299 = vld [vmem:[%s1296 + $0x10] sm:$0xff]
    %v1300 = vld [vmem:[%s1296 + $0x18] sm:$0xff]
    %1301 = vmatprep.subr.mxu0 0.0
    %1302 = vmatpush1.msra.mxu0 %v1297
    %1303 = vmatprep.subr.mxu0 0.0
    %1304 = vmatpush1.msra.mxu0 %v1298
    %1305 = vmatprep.subr.mxu0 0.0
    %1306 = vmatpush1.msra.mxu0 %v1299
    %1307 = vmatprep.subr.mxu0 0.0
    %1308 = vmatpush1.msra.mxu0 %v1300
    %1309 = vmatprep.subr.mxu0 0.0
    %1310 = vmatpush1.msra.mxu0 0.0
    %1311 = vmatprep.subr.mxu0 0.0
    %1312 = vmatpush1.msra.mxu0 0.0
    %1313 = vmatprep.subr.mxu0 0.0
    %1314 = vmatpush1.msra.mxu0 0.0
    %1315 = vmatprep.subr.mxu0 0.0
    %1316 = vmatpush1.msra.mxu0 0.0
    %1317 = vmatprep.subr.mxu0 0.0
    %1318 = vmatpush1.msra.mxu0 0.0
    %1319 = vmatprep.subr.mxu0 0.0
    %1320 = vmatpush1.msra.mxu0 0.0
    %1321 = vmatprep.subr.mxu0 0.0
    %1322 = vmatpush1.msra.mxu0 0.0
    %1323 = vmatprep.subr.mxu0 0.0
    %1324 = vmatpush1.msra.mxu0 0.0
    %1325 = vmatprep.subr.mxu0 0.0
    %1326 = vmatpush1.msra.mxu0 0.0
    %1327 = vmatprep.subr.mxu0 0.0
    %1328 = vmatpush1.msra.mxu0 0.0
    %1329 = vmatprep.subr.mxu0 0.0
    %1330 = vmatpush1.msra.mxu0 0.0
    %1331 = vmatprep.subr.mxu0 0.0
    %1332 = vmatpush1.msra.mxu0 0.0
    %1333 = vmatprep.subr.mxu0 0.0
    %1334 = vmatpush1.msra.mxu0 0.0
    %1335 = vmatprep.subr.mxu0 0.0
    %1336 = vmatpush1.msra.mxu0 0.0
    %1337 = vmatprep.subr.mxu0 0.0
    %1338 = vmatpush1.msra.mxu0 0.0
    %1339 = vmatprep.subr.mxu0 0.0
    %1340 = vmatpush1.msra.mxu0 0.0
    %1341 = vmatprep.subr.mxu0 0.0
    %1342 = vmatpush1.msra.mxu0 0.0
    %1343 = vmatprep.subr.mxu0 0.0
    %1344 = vmatpush1.msra.mxu0 0.0
    %1345 = vmatprep.subr.mxu0 0.0
    %1346 = vmatpush1.msra.mxu0 0.0
    %1347 = vmatprep.subr.mxu0 0.0
    %1348 = vmatpush1.msra.mxu0 0.0
    %1349 = vmatprep.subr.mxu0 0.0
    %1350 = vmatpush1.msra.mxu0 0.0
    %1351 = vmatprep.subr.mxu0 0.0
    %1352 = vmatpush1.msra.mxu0 0.0
    %1353 = vmatprep.subr.mxu0 0.0
    %1354 = vmatpush1.msra.mxu0 0.0
    %1355 = vmatprep.subr.mxu0 0.0
    %1356 = vmatpush1.msra.mxu0 0.0
    %1357 = vmatprep.subr.mxu0 0.0
    %1358 = vmatpush1.msra.mxu0 0.0
    %1359 = vmatprep.subr.mxu0 0.0
    %1360 = vmatpush1.msra.mxu0 0.0
    %1361 = vmatprep.subr.mxu0 0.0
    %1362 = vmatpush1.msra.mxu0 0.0
    %1363 = vmatprep.subr.mxu0 0.0
    %1364 = vmatpush1.msra.mxu0 0.0
    %1365 = vmatprep.mubr.f32.mxu0 0.0
    %1366 = vmatmul.mubr.f32.gmra.mrb[0].mxu0 %v97
    %v1367 = vpop.f32.mrb[0].mxu0
    %v1368 = vadd.f32 0.0, %v1367
    %v1369 = vpop.f32.mrb[0].mxu0
    %1370 = vmatprep.mubr.f32.mxu0 0.0
    %1371 = vmatmul.mubr.f32.gmra.mrb[0].mxu0 %v100
    %v1372 = vpop.f32.mrb[0].mxu0
    %v1373 = vadd.f32 0.0, %v1372
    %v1374 = vpop.f32.mrb[0].mxu0
    %1375 = vdwg.mxu0
    %s1376 = scalar_lea.vmem [#allocation5], 64
    %v1377 = vld [vmem:[%s1376] sm:$0xff]
    %v1378 = vld [vmem:[%s1376 + $0x8] sm:$0xff]
    %v1379 = vld [vmem:[%s1376 + $0x10] sm:$0xff]
    %v1380 = vld [vmem:[%s1376 + $0x18] sm:$0xff]
    %1381 = vmatprep.subr.mxu0 0.0
    %1382 = vmatpush1.msra.mxu0 %v1377
    %1383 = vmatprep.subr.mxu0 0.0
    %1384 = vmatpush1.msra.mxu0 %v1378
    %1385 = vmatprep.subr.mxu0 0.0
    %1386 = vmatpush1.msra.mxu0 %v1379
    %1387 = vmatprep.subr.mxu0 0.0
    %1388 = vmatpush1.msra.mxu0 %v1380
    %1389 = vmatprep.subr.mxu0 0.0
    %1390 = vmatpush1.msra.mxu0 0.0
    %1391 = vmatprep.subr.mxu0 0.0
    %1392 = vmatpush1.msra.mxu0 0.0
    %1393 = vmatprep.subr.mxu0 0.0
    %1394 = vmatpush1.msra.mxu0 0.0
    %1395 = vmatprep.subr.mxu0 0.0
    %1396 = vmatpush1.msra.mxu0 0.0
    %1397 = vmatprep.subr.mxu0 0.0
    %1398 = vmatpush1.msra.mxu0 0.0
    %1399 = vmatprep.subr.mxu0 0.0
    %1400 = vmatpush1.msra.mxu0 0.0
    %1401 = vmatprep.subr.mxu0 0.0
    %1402 = vmatpush1.msra.mxu0 0.0
    %1403 = vmatprep.subr.mxu0 0.0
    %1404 = vmatpush1.msra.mxu0 0.0
    %1405 = vmatprep.subr.mxu0 0.0
    %1406 = vmatpush1.msra.mxu0 0.0
    %1407 = vmatprep.subr.mxu0 0.0
    %1408 = vmatpush1.msra.mxu0 0.0
    %1409 = vmatprep.subr.mxu0 0.0
    %1410 = vmatpush1.msra.mxu0 0.0
    %1411 = vmatprep.subr.mxu0 0.0
    %1412 = vmatpush1.msra.mxu0 0.0
    %1413 = vmatprep.subr.mxu0 0.0
    %1414 = vmatpush1.msra.mxu0 0.0
    %1415 = vmatprep.subr.mxu0 0.0
    %1416 = vmatpush1.msra.mxu0 0.0
    %1417 = vmatprep.subr.mxu0 0.0
    %1418 = vmatpush1.msra.mxu0 0.0
    %1419 = vmatprep.subr.mxu0 0.0
    %1420 = vmatpush1.msra.mxu0 0.0
    %1421 = vmatprep.subr.mxu0 0.0
    %1422 = vmatpush1.msra.mxu0 0.0
    %1423 = vmatprep.subr.mxu0 0.0
    %1424 = vmatpush1.msra.mxu0 0.0
    %1425 = vmatprep.subr.mxu0 0.0
    %1426 = vmatpush1.msra.mxu0 0.0
    %1427 = vmatprep.subr.mxu0 0.0
    %1428 = vmatpush1.msra.mxu0 0.0
    %1429 = vmatprep.subr.mxu0 0.0
    %1430 = vmatpush1.msra.mxu0 0.0
    %1431 = vmatprep.subr.mxu0 0.0
    %1432 = vmatpush1.msra.mxu0 0.0
    %1433 = vmatprep.subr.mxu0 0.0
    %1434 = vmatpush1.msra.mxu0 0.0
    %1435 = vmatprep.subr.mxu0 0.0
    %1436 = vmatpush1.msra.mxu0 0.0
    %1437 = vmatprep.subr.mxu0 0.0
    %1438 = vmatpush1.msra.mxu0 0.0
    %1439 = vmatprep.subr.mxu0 0.0
    %1440 = vmatpush1.msra.mxu0 0.0
    %1441 = vmatprep.subr.mxu0 0.0
    %1442 = vmatpush1.msra.mxu0 0.0
    %1443 = vmatprep.subr.mxu0 0.0
    %1444 = vmatpush1.msra.mxu0 0.0
    %1445 = vmatprep.mubr.f32.mxu0 0.0
    %1446 = vmatmul.mubr.f32.gmra.mrb[0].mxu0 %v97
    %v1447 = vpop.f32.mrb[0].mxu0
    %v1448 = vadd.f32 0.0, %v1447
    %v1449 = vpop.f32.mrb[0].mxu0
    %1450 = vmatprep.mubr.f32.mxu0 0.0
    %1451 = vmatmul.mubr.f32.gmra.mrb[0].mxu0 %v100
    %v1452 = vpop.f32.mrb[0].mxu0
    %v1453 = vadd.f32 0.0, %v1452
    %v1454 = vpop.f32.mrb[0].mxu0
    %1455 = vdwg.mxu0
    %v1457 = vsel %vm95, %v1288, 0
    %v1460 = vsel %vm95, %v1368, 0
    %1462 = vmatprep.subr.mxu0 0.0
    %1463 = vmatpush1.xpose.msra.mxu0 %v1460
    %1464 = vmatprep.subr.mxu0 0.0
    %1465 = vmatpush1.xpose.msra.mxu0 0.0
    %1466 = vmatprep.subr.mxu0 0.0
    %1467 = vmatpush1.xpose.msra.mxu0 0.0
    %1468 = vmatprep.subr.mxu0 0.0
    %1469 = vmatpush1.xpose.msra.mxu0 0.0
    %1470 = vmatprep.subr.mxu0 0.0
    %1471 = vmatpush1.xpose.msra.mxu0 0.0
    %1472 = vmatprep.subr.mxu0 0.0
    %1473 = vmatpush1.xpose.msra.mxu0 0.0
    %1474 = vmatprep.subr.mxu0 0.0
    %1475 = vmatpush1.xpose.msra.mxu0 0.0
    %1476 = vmatprep.subr.mxu0 0.0
    %1477 = vmatpush1.xpose.msra.mxu0 0.0
    %1478 = vmatprep.subr.mxu0 0.0
    %1479 = vmatpush1.xpose.msra.mxu0 0.0
    %1480 = vmatprep.subr.mxu0 0.0
    %1481 = vmatpush1.xpose.msra.mxu0 0.0
    %1482 = vmatprep.subr.mxu0 0.0
    %1483 = vmatpush1.xpose.msra.mxu0 0.0
    %1484 = vmatprep.subr.mxu0 0.0
    %1485 = vmatpush1.xpose.msra.mxu0 0.0
    %1486 = vmatprep.subr.mxu0 0.0
    %1487 = vmatpush1.xpose.msra.mxu0 0.0
    %1488 = vmatprep.subr.mxu0 0.0
    %1489 = vmatpush1.xpose.msra.mxu0 0.0
    %1490 = vmatprep.subr.mxu0 0.0
    %1491 = vmatpush1.xpose.msra.mxu0 0.0
    %1492 = vmatprep.subr.mxu0 0.0
    %1493 = vmatpush1.xpose.msra.mxu0 0.0
    %1494 = vmatprep.subr.mxu0 0.0
    %1495 = vmatpush1.xpose.msra.mxu0 0.0
    %1496 = vmatprep.subr.mxu0 0.0
    %1497 = vmatpush1.xpose.msra.mxu0 0.0
    %1498 = vmatprep.subr.mxu0 0.0
    %1499 = vmatpush1.xpose.msra.mxu0 0.0
    %1500 = vmatprep.subr.mxu0 0.0
    %1501 = vmatpush1.xpose.msra.mxu0 0.0
    %1502 = vmatprep.subr.mxu0 0.0
    %1503 = vmatpush1.xpose.msra.mxu0 0.0
    %1504 = vmatprep.subr.mxu0 0.0
    %1505 = vmatpush1.xpose.msra.mxu0 0.0
    %1506 = vmatprep.subr.mxu0 0.0
    %1507 = vmatpush1.xpose.msra.mxu0 0.0
    %1508 = vmatprep.subr.mxu0 0.0
    %1509 = vmatpush1.xpose.msra.mxu0 0.0
    %1510 = vmatprep.subr.mxu0 0.0
    %1511 = vmatpush1.xpose.msra.mxu0 0.0
    %1512 = vmatprep.subr.mxu0 0.0
    %1513 = vmatpush1.xpose.msra.mxu0 0.0
    %1514 = vmatprep.subr.mxu0 0.0
    %1515 = vmatpush1.xpose.msra.mxu0 0.0
    %1516 = vmatprep.subr.mxu0 0.0
    %1517 = vmatpush1.xpose.msra.mxu0 0.0
    %1518 = vmatprep.subr.mxu0 0.0
    %1519 = vmatpush1.xpose.msra.mxu0 0.0
    %1520 = vmatprep.subr.mxu0 0.0
    %1521 = vmatpush1.xpose.msra.mxu0 0.0
    %1522 = vmatprep.subr.mxu0 0.0
    %1523 = vmatpush1.xpose.msra.mxu0 0.0
    %1524 = vmatprep.subr.mxu0 0.0
    %1525 = vmatpush1.xpose.msra.mxu0 0.0
    %1526 = vmatprep.mubr.f32.mxu0 0.0
    %1527 = vmatmul.mubr.f32.gmra.mrb[0].mxu0 %v1457
    %v1528 = vpop.f32.mrb[0].mxu0
    %v1529 = vadd.f32 0.0, %v1528
    %v1530 = vpop.f32.mrb[0].mxu0
    %1531 = vdwg.mxu0
    %v1533 = vsel %vm95, %v1293, 0
    %v1536 = vsel %vm95, %v1373, 0
    %1538 = vmatprep.subr.mxu0 0.0
    %1539 = vmatpush1.xpose.msra.mxu0 %v1536
    %1540 = vmatprep.subr.mxu0 0.0
    %1541 = vmatpush1.xpose.msra.mxu0 0.0
    %1542 = vmatprep.subr.mxu0 0.0
    %1543 = vmatpush1.xpose.msra.mxu0 0.0
    %1544 = vmatprep.subr.mxu0 0.0
    %1545 = vmatpush1.xpose.msra.mxu0 0.0
    %1546 = vmatprep.subr.mxu0 0.0
    %1547 = vmatpush1.xpose.msra.mxu0 0.0
    %1548 = vmatprep.subr.mxu0 0.0
    %1549 = vmatpush1.xpose.msra.mxu0 0.0
    %1550 = vmatprep.subr.mxu0 0.0
    %1551 = vmatpush1.xpose.msra.mxu0 0.0
    %1552 = vmatprep.subr.mxu0 0.0
    %1553 = vmatpush1.xpose.msra.mxu0 0.0
    %1554 = vmatprep.subr.mxu0 0.0
    %1555 = vmatpush1.xpose.msra.mxu0 0.0
    %1556 = vmatprep.subr.mxu0 0.0
    %1557 = vmatpush1.xpose.msra.mxu0 0.0
    %1558 = vmatprep.subr.mxu0 0.0
    %1559 = vmatpush1.xpose.msra.mxu0 0.0
    %1560 = vmatprep.subr.mxu0 0.0
    %1561 = vmatpush1.xpose.msra.mxu0 0.0
    %1562 = vmatprep.subr.mxu0 0.0
    %1563 = vmatpush1.xpose.msra.mxu0 0.0
    %1564 = vmatprep.subr.mxu0 0.0
    %1565 = vmatpush1.xpose.msra.mxu0 0.0
    %1566 = vmatprep.subr.mxu0 0.0
    %1567 = vmatpush1.xpose.msra.mxu0 0.0
    %1568 = vmatprep.subr.mxu0 0.0
    %1569 = vmatpush1.xpose.msra.mxu0 0.0
    %1570 = vmatprep.subr.mxu0 0.0
    %1571 = vmatpush1.xpose.msra.mxu0 0.0
    %1572 = vmatprep.subr.mxu0 0.0
    %1573 = vmatpush1.xpose.msra.mxu0 0.0
    %1574 = vmatprep.subr.mxu0 0.0
    %1575 = vmatpush1.xpose.msra.mxu0 0.0
    %1576 = vmatprep.subr.mxu0 0.0
    %1577 = vmatpush1.xpose.msra.mxu0 0.0
    %1578 = vmatprep.subr.mxu0 0.0
    %1579 = vmatpush1.xpose.msra.mxu0 0.0
    %1580 = vmatprep.subr.mxu0 0.0
    %1581 = vmatpush1.xpose.msra.mxu0 0.0
    %1582 = vmatprep.subr.mxu0 0.0
    %1583 = vmatpush1.xpose.msra.mxu0 0.0
    %1584 = vmatprep.subr.mxu0 0.0
    %1585 = vmatpush1.xpose.msra.mxu0 0.0
    %1586 = vmatprep.subr.mxu0 0.0
    %1587 = vmatpush1.xpose.msra.mxu0 0.0
    %1588 = vmatprep.subr.mxu0 0.0
    %1589 = vmatpush1.xpose.msra.mxu0 0.0
    %1590 = vmatprep.subr.mxu0 0.0
    %1591 = vmatpush1.xpose.msra.mxu0 0.0
    %1592 = vmatprep.subr.mxu0 0.0
    %1593 = vmatpush1.xpose.msra.mxu0 0.0
    %1594 = vmatprep.subr.mxu0 0.0
    %1595 = vmatpush1.xpose.msra.mxu0 0.0
    %1596 = vmatprep.subr.mxu0 0.0
    %1597 = vmatpush1.xpose.msra.mxu0 0.0
    %1598 = vmatprep.subr.mxu0 0.0
    %1599 = vmatpush1.xpose.msra.mxu0 0.0
    %1600 = vmatprep.subr.mxu0 0.0
    %1601 = vmatpush1.xpose.msra.mxu0 0.0
    %1602 = vmatprep.mubr.f32.mxu0 0.0
    %1603 = vmatmul.mubr.f32.gmra.mrb[0].mxu0 %v1533
    %v1604 = vpop.f32.mrb[0].mxu0
    %v1605 = vadd.f32 0.0, %v1604
    %v1606 = vpop.f32.mrb[0].mxu0
    %1607 = vdwg.mxu0
    %v1608 = vsel %vm487, %v1529, -inf
    %1609 = vmax.xlane.f32.xlu0 %v1608
    %v1610 = vpop.xlane.xlu0 %1609
    %v1611 = vsel %vm487, %v1605, -inf
    %1612 = vmax.xlane.f32.xlu0 %v1611
    %v1613 = vpop.xlane.xlu0 %1612
    %v1614 = vsub.f32 %v1529, %v1610
    %v1615 = vsub.f32 %v1605, %v1613
    %v1616 = vmul.f32 %v1614, 1.442695
    %v1617 = vpow.pop %v1616
    %v1618 = vmul.f32 %v1615, 1.442695
    %v1619 = vpow.pop %v1618
    %v1620 = vsel %vm487, %v1617, 0.0
    %1621 = vadd.xlane.f32.xlu0 %v1620
    %v1622 = vpop.xlane.xlu0 %1621
    %v1623 = vsel %vm487, %v1619, 0.0
    %1624 = vadd.xlane.f32.xlu0 %v1623
    %v1625 = vpop.xlane.xlu0 %1624
    %v1626 = vrcp.pop %v1622
    %v1627 = vmul.f32 %v1617, %v1626
    %v1628 = vrcp.pop %v1625
    %v1629 = vmul.f32 %v1619, %v1628
    %v1631 = vsel %vm487, %v1627, 0
    %1633 = vmatprep.subr.mxu0 0.0
    %1634 = vmatpush1.msra.mxu0 %v1448
    %1635 = vmatprep.subr.mxu0 0.0
    %1636 = vmatpush1.msra.mxu0 0.0
    %1637 = vmatprep.subr.mxu0 0.0
    %1638 = vmatpush1.msra.mxu0 0.0
    %1639 = vmatprep.subr.mxu0 0.0
    %1640 = vmatpush1.msra.mxu0 0.0
    %1641 = vmatprep.subr.mxu0 0.0
    %1642 = vmatpush1.msra.mxu0 0.0
    %1643 = vmatprep.subr.mxu0 0.0
    %1644 = vmatpush1.msra.mxu0 0.0
    %1645 = vmatprep.subr.mxu0 0.0
    %1646 = vmatpush1.msra.mxu0 0.0
    %1647 = vmatprep.subr.mxu0 0.0
    %1648 = vmatpush1.msra.mxu0 0.0
    %1649 = vmatprep.subr.mxu0 0.0
    %1650 = vmatpush1.msra.mxu0 0.0
    %1651 = vmatprep.subr.mxu0 0.0
    %1652 = vmatpush1.msra.mxu0 0.0
    %1653 = vmatprep.subr.mxu0 0.0
    %1654 = vmatpush1.msra.mxu0 0.0
    %1655 = vmatprep.subr.mxu0 0.0
    %1656 = vmatpush1.msra.mxu0 0.0
    %1657 = vmatprep.subr.mxu0 0.0
    %1658 = vmatpush1.msra.mxu0 0.0
    %1659 = vmatprep.subr.mxu0 0.0
    %1660 = vmatpush1.msra.mxu0 0.0
    %1661 = vmatprep.subr.mxu0 0.0
    %1662 = vmatpush1.msra.mxu0 0.0
    %1663 = vmatprep.subr.mxu0 0.0
    %1664 = vmatpush1.msra.mxu0 0.0
    %1665 = vmatprep.subr.mxu0 0.0
    %1666 = vmatpush1.msra.mxu0 0.0
    %1667 = vmatprep.subr.mxu0 0.0
    %1668 = vmatpush1.msra.mxu0 0.0
    %1669 = vmatprep.subr.mxu0 0.0
    %1670 = vmatpush1.msra.mxu0 0.0
    %1671 = vmatprep.subr.mxu0 0.0
    %1672 = vmatpush1.msra.mxu0 0.0
    %1673 = vmatprep.subr.mxu0 0.0
    %1674 = vmatpush1.msra.mxu0 0.0
    %1675 = vmatprep.subr.mxu0 0.0
    %1676 = vmatpush1.msra.mxu0 0.0
    %1677 = vmatprep.subr.mxu0 0.0
    %1678 = vmatpush1.msra.mxu0 0.0
    %1679 = vmatprep.subr.mxu0 0.0
    %1680 = vmatpush1.msra.mxu0 0.0
    %1681 = vmatprep.subr.mxu0 0.0
    %1682 = vmatpush1.msra.mxu0 0.0
    %1683 = vmatprep.subr.mxu0 0.0
    %1684 = vmatpush1.msra.mxu0 0.0
    %1685 = vmatprep.subr.mxu0 0.0
    %1686 = vmatpush1.msra.mxu0 0.0
    %1687 = vmatprep.subr.mxu0 0.0
    %1688 = vmatpush1.msra.mxu0 0.0
    %1689 = vmatprep.subr.mxu0 0.0
    %1690 = vmatpush1.msra.mxu0 0.0
    %1691 = vmatprep.subr.mxu0 0.0
    %1692 = vmatpush1.msra.mxu0 0.0
    %1693 = vmatprep.subr.mxu0 0.0
    %1694 = vmatpush1.msra.mxu0 0.0
    %1695 = vmatprep.subr.mxu0 0.0
    %1696 = vmatpush1.msra.mxu0 0.0
    %1697 = vmatprep.mubr.f32.mxu0 0.0
    %1698 = vmatmul.mubr.f32.gmra.mrb[0].mxu0 %v1631
    %v1699 = vpop.f32.mrb[0].mxu0
    %v1700 = vadd.f32 0.0, %v1699
    %v1701 = vpop.f32.mrb[0].mxu0
    %1702 = vdwg.mxu0
    %v1704 = vsel %vm487, %v1629, 0
    %1706 = vmatprep.subr.mxu0 0.0
    %1707 = vmatpush1.msra.mxu0 %v1453
    %1708 = vmatprep.subr.mxu0 0.0
    %1709 = vmatpush1.msra.mxu0 0.0
    %1710 = vmatprep.subr.mxu0 0.0
    %1711 = vmatpush1.msra.mxu0 0.0
    %1712 = vmatprep.subr.mxu0 0.0
    %1713 = vmatpush1.msra.mxu0 0.0
    %1714 = vmatprep.subr.mxu0 0.0
    %1715 = vmatpush1.msra.mxu0 0.0
    %1716 = vmatprep.subr.mxu0 0.0
    %1717 = vmatpush1.msra.mxu0 0.0
    %1718 = vmatprep.subr.mxu0 0.0
    %1719 = vmatpush1.msra.mxu0 0.0
    %1720 = vmatprep.subr.mxu0 0.0
    %1721 = vmatpush1.msra.mxu0 0.0
    %1722 = vmatprep.subr.mxu0 0.0
    %1723 = vmatpush1.msra.mxu0 0.0
    %1724 = vmatprep.subr.mxu0 0.0
    %1725 = vmatpush1.msra.mxu0 0.0
    %1726 = vmatprep.subr.mxu0 0.0
    %1727 = vmatpush1.msra.mxu0 0.0
    %1728 = vmatprep.subr.mxu0 0.0
    %1729 = vmatpush1.msra.mxu0 0.0
    %1730 = vmatprep.subr.mxu0 0.0
    %1731 = vmatpush1.msra.mxu0 0.0
    %1732 = vmatprep.subr.mxu0 0.0
    %1733 = vmatpush1.msra.mxu0 0.0
    %1734 = vmatprep.subr.mxu0 0.0
    %1735 = vmatpush1.msra.mxu0 0.0
    %1736 = vmatprep.subr.mxu0 0.0
    %1737 = vmatpush1.msra.mxu0 0.0
    %1738 = vmatprep.subr.mxu0 0.0
    %1739 = vmatpush1.msra.mxu0 0.0
    %1740 = vmatprep.subr.mxu0 0.0
    %1741 = vmatpush1.msra.mxu0 0.0
    %1742 = vmatprep.subr.mxu0 0.0
    %1743 = vmatpush1.msra.mxu0 0.0
    %1744 = vmatprep.subr.mxu0 0.0
    %1745 = vmatpush1.msra.mxu0 0.0
    %1746 = vmatprep.subr.mxu0 0.0
    %1747 = vmatpush1.msra.mxu0 0.0
    %1748 = vmatprep.subr.mxu0 0.0
    %1749 = vmatpush1.msra.mxu0 0.0
    %1750 = vmatprep.subr.mxu0 0.0
    %1751 = vmatpush1.msra.mxu0 0.0
    %1752 = vmatprep.subr.mxu0 0.0
    %1753 = vmatpush1.msra.mxu0 0.0
    %1754 = vmatprep.subr.mxu0 0.0
    %1755 = vmatpush1.msra.mxu0 0.0
    %1756 = vmatprep.subr.mxu0 0.0
    %1757 = vmatpush1.msra.mxu0 0.0
    %1758 = vmatprep.subr.mxu0 0.0
    %1759 = vmatpush1.msra.mxu0 0.0
    %1760 = vmatprep.subr.mxu0 0.0
    %1761 = vmatpush1.msra.mxu0 0.0
    %1762 = vmatprep.subr.mxu0 0.0
    %1763 = vmatpush1.msra.mxu0 0.0
    %1764 = vmatprep.subr.mxu0 0.0
    %1765 = vmatpush1.msra.mxu0 0.0
    %1766 = vmatprep.subr.mxu0 0.0
    %1767 = vmatpush1.msra.mxu0 0.0
    %1768 = vmatprep.subr.mxu0 0.0
    %1769 = vmatpush1.msra.mxu0 0.0
    %1770 = vmatprep.mubr.f32.mxu0 0.0
    %1771 = vmatmul.mubr.f32.gmra.mrb[0].mxu0 %v1704
    %v1772 = vpop.f32.mrb[0].mxu0
    %v1773 = vadd.f32 0.0, %v1772
    %v1774 = vpop.f32.mrb[0].mxu0
    %1775 = vdwg.mxu0
    %s1776 = scalar_lea.vmem %s1, 96
    %v1777 = vld [vmem:[%s1776] sm:$0xff]
    %v1778 = vld [vmem:[%s1776 + $0x8] sm:$0xff]
    %v1779 = vld [vmem:[%s1776 + $0x10] sm:$0xff]
    %v1780 = vld [vmem:[%s1776 + $0x18] sm:$0xff]
    %1781 = vmatprep.subr.mxu0 0.0
    %1782 = vmatpush1.msra.mxu0 %v1777
    %1783 = vmatprep.subr.mxu0 0.0
    %1784 = vmatpush1.msra.mxu0 %v1778
    %1785 = vmatprep.subr.mxu0 0.0
    %1786 = vmatpush1.msra.mxu0 %v1779
    %1787 = vmatprep.subr.mxu0 0.0
    %1788 = vmatpush1.msra.mxu0 %v1780
    %1789 = vmatprep.subr.mxu0 0.0
    %1790 = vmatpush1.msra.mxu0 0.0
    %1791 = vmatprep.subr.mxu0 0.0
    %1792 = vmatpush1.msra.mxu0 0.0
    %1793 = vmatprep.subr.mxu0 0.0
    %1794 = vmatpush1.msra.mxu0 0.0
    %1795 = vmatprep.subr.mxu0 0.0
    %1796 = vmatpush1.msra.mxu0 0.0
    %1797 = vmatprep.subr.mxu0 0.0
    %1798 = vmatpush1.msra.mxu0 0.0
    %1799 = vmatprep.subr.mxu0 0.0
    %1800 = vmatpush1.msra.mxu0 0.0
    %1801 = vmatprep.subr.mxu0 0.0
    %1802 = vmatpush1.msra.mxu0 0.0
    %1803 = vmatprep.subr.mxu0 0.0
    %1804 = vmatpush1.msra.mxu0 0.0
    %1805 = vmatprep.subr.mxu0 0.0
    %1806 = vmatpush1.msra.mxu0 0.0
    %1807 = vmatprep.subr.mxu0 0.0
    %1808 = vmatpush1.msra.mxu0 0.0
    %1809 = vmatprep.subr.mxu0 0.0
    %1810 = vmatpush1.msra.mxu0 0.0
    %1811 = vmatprep.subr.mxu0 0.0
    %1812 = vmatpush1.msra.mxu0 0.0
    %1813 = vmatprep.subr.mxu0 0.0
    %1814 = vmatpush1.msra.mxu0 0.0
    %1815 = vmatprep.subr.mxu0 0.0
    %1816 = vmatpush1.msra.mxu0 0.0
    %1817 = vmatprep.subr.mxu0 0.0
    %1818 = vmatpush1.msra.mxu0 0.0
    %1819 = vmatprep.subr.mxu0 0.0
    %1820 = vmatpush1.msra.mxu0 0.0
    %1821 = vmatprep.subr.mxu0 0.0
    %1822 = vmatpush1.msra.mxu0 0.0
    %1823 = vmatprep.subr.mxu0 0.0
    %1824 = vmatpush1.msra.mxu0 0.0
    %1825 = vmatprep.subr.mxu0 0.0
    %1826 = vmatpush1.msra.mxu0 0.0
    %1827 = vmatprep.subr.mxu0 0.0
    %1828 = vmatpush1.msra.mxu0 0.0
    %1829 = vmatprep.subr.mxu0 0.0
    %1830 = vmatpush1.msra.mxu0 0.0
    %1831 = vmatprep.subr.mxu0 0.0
    %1832 = vmatpush1.msra.mxu0 0.0
    %1833 = vmatprep.subr.mxu0 0.0
    %1834 = vmatpush1.msra.mxu0 0.0
    %1835 = vmatprep.subr.mxu0 0.0
    %1836 = vmatpush1.msra.mxu0 0.0
    %1837 = vmatprep.subr.mxu0 0.0
    %1838 = vmatpush1.msra.mxu0 0.0
    %1839 = vmatprep.subr.mxu0 0.0
    %1840 = vmatpush1.msra.mxu0 0.0
    %1841 = vmatprep.subr.mxu0 0.0
    %1842 = vmatpush1.msra.mxu0 0.0
    %1843 = vmatprep.subr.mxu0 0.0
    %1844 = vmatpush1.msra.mxu0 0.0
    %1845 = vmatprep.mubr.f32.mxu0 0.0
    %1846 = vmatmul.mubr.f32.gmra.mrb[0].mxu0 %v97
    %v1847 = vpop.f32.mrb[0].mxu0
    %v1848 = vadd.f32 0.0, %v1847
    %v1849 = vpop.f32.mrb[0].mxu0
    %1850 = vmatprep.mubr.f32.mxu0 0.0
    %1851 = vmatmul.mubr.f32.gmra.mrb[0].mxu0 %v100
    %v1852 = vpop.f32.mrb[0].mxu0
    %v1853 = vadd.f32 0.0, %v1852
    %v1854 = vpop.f32.mrb[0].mxu0
    %1855 = vdwg.mxu0
    %s1856 = scalar_lea.vmem %s2, 96
    %v1857 = vld [vmem:[%s1856] sm:$0xff]
    %v1858 = vld [vmem:[%s1856 + $0x8] sm:$0xff]
    %v1859 = vld [vmem:[%s1856 + $0x10] sm:$0xff]
    %v1860 = vld [vmem:[%s1856 + $0x18] sm:$0xff]
    %1861 = vmatprep.subr.mxu0 0.0
    %1862 = vmatpush1.msra.mxu0 %v1857
    %1863 = vmatprep.subr.mxu0 0.0
    %1864 = vmatpush1.msra.mxu0 %v1858
    %1865 = vmatprep.subr.mxu0 0.0
    %1866 = vmatpush1.msra.mxu0 %v1859
    %1867 = vmatprep.subr.mxu0 0.0
    %1868 = vmatpush1.msra.mxu0 %v1860
    %1869 = vmatprep.subr.mxu0 0.0
    %1870 = vmatpush1.msra.mxu0 0.0
    %1871 = vmatprep.subr.mxu0 0.0
    %1872 = vmatpush1.msra.mxu0 0.0
    %1873 = vmatprep.subr.mxu0 0.0
    %1874 = vmatpush1.msra.mxu0 0.0
    %1875 = vmatprep.subr.mxu0 0.0
    %1876 = vmatpush1.msra.mxu0 0.0
    %1877 = vmatprep.subr.mxu0 0.0
    %1878 = vmatpush1.msra.mxu0 0.0
    %1879 = vmatprep.subr.mxu0 0.0
    %1880 = vmatpush1.msra.mxu0 0.0
    %1881 = vmatprep.subr.mxu0 0.0
    %1882 = vmatpush1.msra.mxu0 0.0
    %1883 = vmatprep.subr.mxu0 0.0
    %1884 = vmatpush1.msra.mxu0 0.0
    %1885 = vmatprep.subr.mxu0 0.0
    %1886 = vmatpush1.msra.mxu0 0.0
    %1887 = vmatprep.subr.mxu0 0.0
    %1888 = vmatpush1.msra.mxu0 0.0
    %1889 = vmatprep.subr.mxu0 0.0
    %1890 = vmatpush1.msra.mxu0 0.0
    %1891 = vmatprep.subr.mxu0 0.0
    %1892 = vmatpush1.msra.mxu0 0.0
    %1893 = vmatprep.subr.mxu0 0.0
    %1894 = vmatpush1.msra.mxu0 0.0
    %1895 = vmatprep.subr.mxu0 0.0
    %1896 = vmatpush1.msra.mxu0 0.0
    %1897 = vmatprep.subr.mxu0 0.0
    %1898 = vmatpush1.msra.mxu0 0.0
    %1899 = vmatprep.subr.mxu0 0.0
    %1900 = vmatpush1.msra.mxu0 0.0
    %1901 = vmatprep.subr.mxu0 0.0
    %1902 = vmatpush1.msra.mxu0 0.0
    %1903 = vmatprep.subr.mxu0 0.0
    %1904 = vmatpush1.msra.mxu0 0.0
    %1905 = vmatprep.subr.mxu0 0.0
    %1906 = vmatpush1.msra.mxu0 0.0
    %1907 = vmatprep.subr.mxu0 0.0
    %1908 = vmatpush1.msra.mxu0 0.0
    %1909 = vmatprep.subr.mxu0 0.0
    %1910 = vmatpush1.msra.mxu0 0.0
    %1911 = vmatprep.subr.mxu0 0.0
    %1912 = vmatpush1.msra.mxu0 0.0
    %1913 = vmatprep.subr.mxu0 0.0
    %1914 = vmatpush1.msra.mxu0 0.0
    %1915 = vmatprep.subr.mxu0 0.0
    %1916 = vmatpush1.msra.mxu0 0.0
    %1917 = vmatprep.subr.mxu0 0.0
    %1918 = vmatpush1.msra.mxu0 0.0
    %1919 = vmatprep.subr.mxu0 0.0
    %1920 = vmatpush1.msra.mxu0 0.0
    %1921 = vmatprep.subr.mxu0 0.0
    %1922 = vmatpush1.msra.mxu0 0.0
    %1923 = vmatprep.subr.mxu0 0.0
    %1924 = vmatpush1.msra.mxu0 0.0
    %1925 = vmatprep.mubr.f32.mxu0 0.0
    %1926 = vmatmul.mubr.f32.gmra.mrb[0].mxu0 %v97
    %v1927 = vpop.f32.mrb[0].mxu0
    %v1928 = vadd.f32 0.0, %v1927
    %v1929 = vpop.f32.mrb[0].mxu0
    %1930 = vmatprep.mubr.f32.mxu0 0.0
    %1931 = vmatmul.mubr.f32.gmra.mrb[0].mxu0 %v100
    %v1932 = vpop.f32.mrb[0].mxu0
    %v1933 = vadd.f32 0.0, %v1932
    %v1934 = vpop.f32.mrb[0].mxu0
    %1935 = vdwg.mxu0
    %s1936 = scalar_lea.vmem [#allocation5], 96
    %v1937 = vld [vmem:[%s1936] sm:$0xff]
    %v1938 = vld [vmem:[%s1936 + $0x8] sm:$0xff]
    %v1939 = vld [vmem:[%s1936 + $0x10] sm:$0xff]
    %v1940 = vld [vmem:[%s1936 + $0x18] sm:$0xff]
    %1941 = vmatprep.subr.mxu0 0.0
    %1942 = vmatpush1.msra.mxu0 %v1937
    %1943 = vmatprep.subr.mxu0 0.0
    %1944 = vmatpush1.msra.mxu0 %v1938
    %1945 = vmatprep.subr.mxu0 0.0
    %1946 = vmatpush1.msra.mxu0 %v1939
    %1947 = vmatprep.subr.mxu0 0.0
    %1948 = vmatpush1.msra.mxu0 %v1940
    %1949 = vmatprep.subr.mxu0 0.0
    %1950 = vmatpush1.msra.mxu0 0.0
    %1951 = vmatprep.subr.mxu0 0.0
    %1952 = vmatpush1.msra.mxu0 0.0
    %1953 = vmatprep.subr.mxu0 0.0
    %1954 = vmatpush1.msra.mxu0 0.0
    %1955 = vmatprep.subr.mxu0 0.0
    %1956 = vmatpush1.msra.mxu0 0.0
    %1957 = vmatprep.subr.mxu0 0.0
    %1958 = vmatpush1.msra.mxu0 0.0
    %1959 = vmatprep.subr.mxu0 0.0
    %1960 = vmatpush1.msra.mxu0 0.0
    %1961 = vmatprep.subr.mxu0 0.0
    %1962 = vmatpush1.msra.mxu0 0.0
    %1963 = vmatprep.subr.mxu0 0.0
    %1964 = vmatpush1.msra.mxu0 0.0
    %1965 = vmatprep.subr.mxu0 0.0
    %1966 = vmatpush1.msra.mxu0 0.0
    %1967 = vmatprep.subr.mxu0 0.0
    %1968 = vmatpush1.msra.mxu0 0.0
    %1969 = vmatprep.subr.mxu0 0.0
    %1970 = vmatpush1.msra.mxu0 0.0
    %1971 = vmatprep.subr.mxu0 0.0
    %1972 = vmatpush1.msra.mxu0 0.0
    %1973 = vmatprep.subr.mxu0 0.0
    %1974 = vmatpush1.msra.mxu0 0.0
    %1975 = vmatprep.subr.mxu0 0.0
    %1976 = vmatpush1.msra.mxu0 0.0
    %1977 = vmatprep.subr.mxu0 0.0
    %1978 = vmatpush1.msra.mxu0 0.0
    %1979 = vmatprep.subr.mxu0 0.0
    %1980 = vmatpush1.msra.mxu0 0.0
    %1981 = vmatprep.subr.mxu0 0.0
    %1982 = vmatpush1.msra.mxu0 0.0
    %1983 = vmatprep.subr.mxu0 0.0
    %1984 = vmatpush1.msra.mxu0 0.0
    %1985 = vmatprep.subr.mxu0 0.0
    %1986 = vmatpush1.msra.mxu0 0.0
    %1987 = vmatprep.subr.mxu0 0.0
    %1988 = vmatpush1.msra.mxu0 0.0
    %1989 = vmatprep.subr.mxu0 0.0
    %1990 = vmatpush1.msra.mxu0 0.0
    %1991 = vmatprep.subr.mxu0 0.0
    %1992 = vmatpush1.msra.mxu0 0.0
    %1993 = vmatprep.subr.mxu0 0.0
    %1994 = vmatpush1.msra.mxu0 0.0
    %1995 = vmatprep.subr.mxu0 0.0
    %1996 = vmatpush1.msra.mxu0 0.0
    %1997 = vmatprep.subr.mxu0 0.0
    %1998 = vmatpush1.msra.mxu0 0.0
    %1999 = vmatprep.subr.mxu0 0.0
    %2000 = vmatpush1.msra.mxu0 0.0
    %2001 = vmatprep.subr.mxu0 0.0
    %2002 = vmatpush1.msra.mxu0 0.0
    %2003 = vmatprep.subr.mxu0 0.0
    %2004 = vmatpush1.msra.mxu0 0.0
    %2005 = vmatprep.mubr.f32.mxu0 0.0
    %2006 = vmatmul.mubr.f32.gmra.mrb[0].mxu0 %v97
    %v2007 = vpop.f32.mrb[0].mxu0
    %v2008 = vadd.f32 0.0, %v2007
    %v2009 = vpop.f32.mrb[0].mxu0
    %2010 = vmatprep.mubr.f32.mxu0 0.0
    %2011 = vmatmul.mubr.f32.gmra.mrb[0].mxu0 %v100
    %v2012 = vpop.f32.mrb[0].mxu0
    %v2013 = vadd.f32 0.0, %v2012
    %v2014 = vpop.f32.mrb[0].mxu0
    %2015 = vdwg.mxu0
    %v2017 = vsel %vm95, %v1848, 0
    %v2020 = vsel %vm95, %v1928, 0
    %2022 = vmatprep.subr.mxu0 0.0
    %2023 = vmatpush1.xpose.msra.mxu0 %v2020
    %2024 = vmatprep.subr.mxu0 0.0
    %2025 = vmatpush1.xpose.msra.mxu0 0.0
    %2026 = vmatprep.subr.mxu0 0.0
    %2027 = vmatpush1.xpose.msra.mxu0 0.0
    %2028 = vmatprep.subr.mxu0 0.0
    %2029 = vmatpush1.xpose.msra.mxu0 0.0
    %2030 = vmatprep.subr.mxu0 0.0
    %2031 = vmatpush1.xpose.msra.mxu0 0.0
    %2032 = vmatprep.subr.mxu0 0.0
    %2033 = vmatpush1.xpose.msra.mxu0 0.0
    %2034 = vmatprep.subr.mxu0 0.0
    %2035 = vmatpush1.xpose.msra.mxu0 0.0
    %2036 = vmatprep.subr.mxu0 0.0
    %2037 = vmatpush1.xpose.msra.mxu0 0.0
    %2038 = vmatprep.subr.mxu0 0.0
    %2039 = vmatpush1.xpose.msra.mxu0 0.0
    %2040 = vmatprep.subr.mxu0 0.0
    %2041 = vmatpush1.xpose.msra.mxu0 0.0
    %2042 = vmatprep.subr.mxu0 0.0
    %2043 = vmatpush1.xpose.msra.mxu0 0.0
    %2044 = vmatprep.subr.mxu0 0.0
    %2045 = vmatpush1.xpose.msra.mxu0 0.0
    %2046 = vmatprep.subr.mxu0 0.0
    %2047 = vmatpush1.xpose.msra.mxu0 0.0
    %2048 = vmatprep.subr.mxu0 0.0
    %2049 = vmatpush1.xpose.msra.mxu0 0.0
    %2050 = vmatprep.subr.mxu0 0.0
    %2051 = vmatpush1.xpose.msra.mxu0 0.0
    %2052 = vmatprep.subr.mxu0 0.0
    %2053 = vmatpush1.xpose.msra.mxu0 0.0
    %2054 = vmatprep.subr.mxu0 0.0
    %2055 = vmatpush1.xpose.msra.mxu0 0.0
    %2056 = vmatprep.subr.mxu0 0.0
    %2057 = vmatpush1.xpose.msra.mxu0 0.0
    %2058 = vmatprep.subr.mxu0 0.0
    %2059 = vmatpush1.xpose.msra.mxu0 0.0
    %2060 = vmatprep.subr.mxu0 0.0
    %2061 = vmatpush1.xpose.msra.mxu0 0.0
    %2062 = vmatprep.subr.mxu0 0.0
    %2063 = vmatpush1.xpose.msra.mxu0 0.0
    %2064 = vmatprep.subr.mxu0 0.0
    %2065 = vmatpush1.xpose.msra.mxu0 0.0
    %2066 = vmatprep.subr.mxu0 0.0
    %2067 = vmatpush1.xpose.msra.mxu0 0.0
    %2068 = vmatprep.subr.mxu0 0.0
    %2069 = vmatpush1.xpose.msra.mxu0 0.0
    %2070 = vmatprep.subr.mxu0 0.0
    %2071 = vmatpush1.xpose.msra.mxu0 0.0
    %2072 = vmatprep.subr.mxu0 0.0
    %2073 = vmatpush1.xpose.msra.mxu0 0.0
    %2074 = vmatprep.subr.mxu0 0.0
    %2075 = vmatpush1.xpose.msra.mxu0 0.0
    %2076 = vmatprep.subr.mxu0 0.0
    %2077 = vmatpush1.xpose.msra.mxu0 0.0
    %2078 = vmatprep.subr.mxu0 0.0
    %2079 = vmatpush1.xpose.msra.mxu0 0.0
    %2080 = vmatprep.subr.mxu0 0.0
    %2081 = vmatpush1.xpose.msra.mxu0 0.0
    %2082 = vmatprep.subr.mxu0 0.0
    %2083 = vmatpush1.xpose.msra.mxu0 0.0
    %2084 = vmatprep.subr.mxu0 0.0
    %2085 = vmatpush1.xpose.msra.mxu0 0.0
    %2086 = vmatprep.mubr.f32.mxu0 0.0
    %2087 = vmatmul.mubr.f32.gmra.mrb[0].mxu0 %v2017
    %v2088 = vpop.f32.mrb[0].mxu0
    %v2089 = vadd.f32 0.0, %v2088
    %v2090 = vpop.f32.mrb[0].mxu0
    %2091 = vdwg.mxu0
    %v2093 = vsel %vm95, %v1853, 0
    %v2096 = vsel %vm95, %v1933, 0
    %2098 = vmatprep.subr.mxu0 0.0
    %2099 = vmatpush1.xpose.msra.mxu0 %v2096
    %2100 = vmatprep.subr.mxu0 0.0
    %2101 = vmatpush1.xpose.msra.mxu0 0.0
    %2102 = vmatprep.subr.mxu0 0.0
    %2103 = vmatpush1.xpose.msra.mxu0 0.0
    %2104 = vmatprep.subr.mxu0 0.0
    %2105 = vmatpush1.xpose.msra.mxu0 0.0
    %2106 = vmatprep.subr.mxu0 0.0
    %2107 = vmatpush1.xpose.msra.mxu0 0.0
    %2108 = vmatprep.subr.mxu0 0.0
    %2109 = vmatpush1.xpose.msra.mxu0 0.0
    %2110 = vmatprep.subr.mxu0 0.0
    %2111 = vmatpush1.xpose.msra.mxu0 0.0
    %2112 = vmatprep.subr.mxu0 0.0
    %2113 = vmatpush1.xpose.msra.mxu0 0.0
    %2114 = vmatprep.subr.mxu0 0.0
    %2115 = vmatpush1.xpose.msra.mxu0 0.0
    %2116 = vmatprep.subr.mxu0 0.0
    %2117 = vmatpush1.xpose.msra.mxu0 0.0
    %2118 = vmatprep.subr.mxu0 0.0
    %2119 = vmatpush1.xpose.msra.mxu0 0.0
    %2120 = vmatprep.subr.mxu0 0.0
    %2121 = vmatpush1.xpose.msra.mxu0 0.0
    %2122 = vmatprep.subr.mxu0 0.0
    %2123 = vmatpush1.xpose.msra.mxu0 0.0
    %2124 = vmatprep.subr.mxu0 0.0
    %2125 = vmatpush1.xpose.msra.mxu0 0.0
    %2126 = vmatprep.subr.mxu0 0.0
    %2127 = vmatpush1.xpose.msra.mxu0 0.0
    %2128 = vmatprep.subr.mxu0 0.0
    %2129 = vmatpush1.xpose.msra.mxu0 0.0
    %2130 = vmatprep.subr.mxu0 0.0
    %2131 = vmatpush1.xpose.msra.mxu0 0.0
    %2132 = vmatprep.subr.mxu0 0.0
    %2133 = vmatpush1.xpose.msra.mxu0 0.0
    %2134 = vmatprep.subr.mxu0 0.0
    %2135 = vmatpush1.xpose.msra.mxu0 0.0
    %2136 = vmatprep.subr.mxu0 0.0
    %2137 = vmatpush1.xpose.msra.mxu0 0.0
    %2138 = vmatprep.subr.mxu0 0.0
    %2139 = vmatpush1.xpose.msra.mxu0 0.0
    %2140 = vmatprep.subr.mxu0 0.0
    %2141 = vmatpush1.xpose.msra.mxu0 0.0
    %2142 = vmatprep.subr.mxu0 0.0
    %2143 = vmatpush1.xpose.msra.mxu0 0.0
    %2144 = vmatprep.subr.mxu0 0.0
    %2145 = vmatpush1.xpose.msra.mxu0 0.0
    %2146 = vmatprep.subr.mxu0 0.0
    %2147 = vmatpush1.xpose.msra.mxu0 0.0
    %2148 = vmatprep.subr.mxu0 0.0
    %2149 = vmatpush1.xpose.msra.mxu0 0.0
    %2150 = vmatprep.subr.mxu0 0.0
    %2151 = vmatpush1.xpose.msra.mxu0 0.0
    %2152 = vmatprep.subr.mxu0 0.0
    %2153 = vmatpush1.xpose.msra.mxu0 0.0
    %2154 = vmatprep.subr.mxu0 0.0
    %2155 = vmatpush1.xpose.msra.mxu0 0.0
    %2156 = vmatprep.subr.mxu0 0.0
    %2157 = vmatpush1.xpose.msra.mxu0 0.0
    %2158 = vmatprep.subr.mxu0 0.0
    %2159 = vmatpush1.xpose.msra.mxu0 0.0
    %2160 = vmatprep.subr.mxu0 0.0
    %2161 = vmatpush1.xpose.msra.mxu0 0.0
    %2162 = vmatprep.mubr.f32.mxu0 0.0
    %2163 = vmatmul.mubr.f32.gmra.mrb[0].mxu0 %v2093
    %v2164 = vpop.f32.mrb[0].mxu0
    %v2165 = vadd.f32 0.0, %v2164
    %v2166 = vpop.f32.mrb[0].mxu0
    %2167 = vdwg.mxu0
    %v2168 = vsel %vm487, %v2089, -inf
    %2169 = vmax.xlane.f32.xlu0 %v2168
    %v2170 = vpop.xlane.xlu0 %2169
    %v2171 = vsel %vm487, %v2165, -inf
    %2172 = vmax.xlane.f32.xlu0 %v2171
    %v2173 = vpop.xlane.xlu0 %2172
    %v2174 = vsub.f32 %v2089, %v2170
    %v2175 = vsub.f32 %v2165, %v2173
    %v2176 = vmul.f32 %v2174, 1.442695
    %v2177 = vpow.pop %v2176
    %v2178 = vmul.f32 %v2175, 1.442695
    %v2179 = vpow.pop %v2178
    %v2180 = vsel %vm487, %v2177, 0.0
    %2181 = vadd.xlane.f32.xlu0 %v2180
    %v2182 = vpop.xlane.xlu0 %2181
    %v2183 = vsel %vm487, %v2179, 0.0
    %2184 = vadd.xlane.f32.xlu0 %v2183
    %v2185 = vpop.xlane.xlu0 %2184
    %v2186 = vrcp.pop %v2182
    %v2187 = vmul.f32 %v2177, %v2186
    %v2188 = vrcp.pop %v2185
    %v2189 = vmul.f32 %v2179, %v2188
    %v2191 = vsel %vm487, %v2187, 0
    %2193 = vmatprep.subr.mxu0 0.0
    %2194 = vmatpush1.msra.mxu0 %v2008
    %2195 = vmatprep.subr.mxu0 0.0
    %2196 = vmatpush1.msra.mxu0 0.0
    %2197 = vmatprep.subr.mxu0 0.0
    %2198 = vmatpush1.msra.mxu0 0.0
    %2199 = vmatprep.subr.mxu0 0.0
    %2200 = vmatpush1.msra.mxu0 0.0
    %2201 = vmatprep.subr.mxu0 0.0
    %2202 = vmatpush1.msra.mxu0 0.0
    %2203 = vmatprep.subr.mxu0 0.0
    %2204 = vmatpush1.msra.mxu0 0.0
    %2205 = vmatprep.subr.mxu0 0.0
    %2206 = vmatpush1.msra.mxu0 0.0
    %2207 = vmatprep.subr.mxu0 0.0
    %2208 = vmatpush1.msra.mxu0 0.0
    %2209 = vmatprep.subr.mxu0 0.0
    %2210 = vmatpush1.msra.mxu0 0.0
    %2211 = vmatprep.subr.mxu0 0.0
    %2212 = vmatpush1.msra.mxu0 0.0
    %2213 = vmatprep.subr.mxu0 0.0
    %2214 = vmatpush1.msra.mxu0 0.0
    %2215 = vmatprep.subr.mxu0 0.0
    %2216 = vmatpush1.msra.mxu0 0.0
    %2217 = vmatprep.subr.mxu0 0.0
    %2218 = vmatpush1.msra.mxu0 0.0
    %2219 = vmatprep.subr.mxu0 0.0
    %2220 = vmatpush1.msra.mxu0 0.0
    %2221 = vmatprep.subr.mxu0 0.0
    %2222 = vmatpush1.msra.mxu0 0.0
    %2223 = vmatprep.subr.mxu0 0.0
    %2224 = vmatpush1.msra.mxu0 0.0
    %2225 = vmatprep.subr.mxu0 0.0
    %2226 = vmatpush1.msra.mxu0 0.0
    %2227 = vmatprep.subr.mxu0 0.0
    %2228 = vmatpush1.msra.mxu0 0.0
    %2229 = vmatprep.subr.mxu0 0.0
    %2230 = vmatpush1.msra.mxu0 0.0
    %2231 = vmatprep.subr.mxu0 0.0
    %2232 = vmatpush1.msra.mxu0 0.0
    %2233 = vmatprep.subr.mxu0 0.0
    %2234 = vmatpush1.msra.mxu0 0.0
    %2235 = vmatprep.subr.mxu0 0.0
    %2236 = vmatpush1.msra.mxu0 0.0
    %2237 = vmatprep.subr.mxu0 0.0
    %2238 = vmatpush1.msra.mxu0 0.0
    %2239 = vmatprep.subr.mxu0 0.0
    %2240 = vmatpush1.msra.mxu0 0.0
    %2241 = vmatprep.subr.mxu0 0.0
    %2242 = vmatpush1.msra.mxu0 0.0
    %2243 = vmatprep.subr.mxu0 0.0
    %2244 = vmatpush1.msra.mxu0 0.0
    %2245 = vmatprep.subr.mxu0 0.0
    %2246 = vmatpush1.msra.mxu0 0.0
    %2247 = vmatprep.subr.mxu0 0.0
    %2248 = vmatpush1.msra.mxu0 0.0
    %2249 = vmatprep.subr.mxu0 0.0
    %2250 = vmatpush1.msra.mxu0 0.0
    %2251 = vmatprep.subr.mxu0 0.0
    %2252 = vmatpush1.msra.mxu0 0.0
    %2253 = vmatprep.subr.mxu0 0.0
    %2254 = vmatpush1.msra.mxu0 0.0
    %2255 = vmatprep.subr.mxu0 0.0
    %2256 = vmatpush1.msra.mxu0 0.0
    %2257 = vmatprep.mubr.f32.mxu0 0.0
    %2258 = vmatmul.mubr.f32.gmra.mrb[0].mxu0 %v2191
    %v2259 = vpop.f32.mrb[0].mxu0
    %v2260 = vadd.f32 0.0, %v2259
    %v2261 = vpop.f32.mrb[0].mxu0
    %2262 = vdwg.mxu0
    %v2264 = vsel %vm487, %v2189, 0
    %2266 = vmatprep.subr.mxu0 0.0
    %2267 = vmatpush1.msra.mxu0 %v2013
    %2268 = vmatprep.subr.mxu0 0.0
    %2269 = vmatpush1.msra.mxu0 0.0
    %2270 = vmatprep.subr.mxu0 0.0
    %2271 = vmatpush1.msra.mxu0 0.0
    %2272 = vmatprep.subr.mxu0 0.0
    %2273 = vmatpush1.msra.mxu0 0.0
    %2274 = vmatprep.subr.mxu0 0.0
    %2275 = vmatpush1.msra.mxu0 0.0
    %2276 = vmatprep.subr.mxu0 0.0
    %2277 = vmatpush1.msra.mxu0 0.0
    %2278 = vmatprep.subr.mxu0 0.0
    %2279 = vmatpush1.msra.mxu0 0.0
    %2280 = vmatprep.subr.mxu0 0.0
    %2281 = vmatpush1.msra.mxu0 0.0
    %2282 = vmatprep.subr.mxu0 0.0
    %2283 = vmatpush1.msra.mxu0 0.0
    %2284 = vmatprep.subr.mxu0 0.0
    %2285 = vmatpush1.msra.mxu0 0.0
    %2286 = vmatprep.subr.mxu0 0.0
    %2287 = vmatpush1.msra.mxu0 0.0
    %2288 = vmatprep.subr.mxu0 0.0
    %2289 = vmatpush1.msra.mxu0 0.0
    %2290 = vmatprep.subr.mxu0 0.0
    %2291 = vmatpush1.msra.mxu0 0.0
    %2292 = vmatprep.subr.mxu0 0.0
    %2293 = vmatpush1.msra.mxu0 0.0
    %2294 = vmatprep.subr.mxu0 0.0
    %2295 = vmatpush1.msra.mxu0 0.0
    %2296 = vmatprep.subr.mxu0 0.0
    %2297 = vmatpush1.msra.mxu0 0.0
    %2298 = vmatprep.subr.mxu0 0.0
    %2299 = vmatpush1.msra.mxu0 0.0
    %2300 = vmatprep.subr.mxu0 0.0
    %2301 = vmatpush1.msra.mxu0 0.0
    %2302 = vmatprep.subr.mxu0 0.0
    %2303 = vmatpush1.msra.mxu0 0.0
    %2304 = vmatprep.subr.mxu0 0.0
    %2305 = vmatpush1.msra.mxu0 0.0
    %2306 = vmatprep.subr.mxu0 0.0
    %2307 = vmatpush1.msra.mxu0 0.0
    %2308 = vmatprep.subr.mxu0 0.0
    %2309 = vmatpush1.msra.mxu0 0.0
    %2310 = vmatprep.subr.mxu0 0.0
    %2311 = vmatpush1.msra.mxu0 0.0
    %2312 = vmatprep.subr.mxu0 0.0
    %2313 = vmatpush1.msra.mxu0 0.0
    %2314 = vmatprep.subr.mxu0 0.0
    %2315 = vmatpush1.msra.mxu0 0.0
    %2316 = vmatprep.subr.mxu0 0.0
    %2317 = vmatpush1.msra.mxu0 0.0
    %2318 = vmatprep.subr.mxu0 0.0
    %2319 = vmatpush1.msra.mxu0 0.0
    %2320 = vmatprep.subr.mxu0 0.0
    %2321 = vmatpush1.msra.mxu0 0.0
    %2322 = vmatprep.subr.mxu0 0.0
    %2323 = vmatpush1.msra.mxu0 0.0
    %2324 = vmatprep.subr.mxu0 0.0
    %2325 = vmatpush1.msra.mxu0 0.0
    %2326 = vmatprep.subr.mxu0 0.0
    %2327 = vmatpush1.msra.mxu0 0.0
    %2328 = vmatprep.subr.mxu0 0.0
    %2329 = vmatpush1.msra.mxu0 0.0
    %2330 = vmatprep.mubr.f32.mxu0 0.0
    %2331 = vmatmul.mubr.f32.gmra.mrb[0].mxu0 %v2264
    %v2332 = vpop.f32.mrb[0].mxu0
    %v2333 = vadd.f32 0.0, %v2332
    %v2334 = vpop.f32.mrb[0].mxu0
    %2335 = vdwg.mxu0
    %2338 = vrot.lane.b32.xlu0 %v1140, 32
    %v2339 = vpop.permute.xlu0 %2338
    %2340 = vrot.lane.b32.xlu0 %v1213, 32
    %v2341 = vpop.permute.xlu0 %2340
    %2346 = vrot.lane.b32.xlu0 %v1700, 64
    %v2347 = vpop.permute.xlu0 %2346
    %2348 = vrot.lane.b32.xlu0 %v1773, 64
    %v2349 = vpop.permute.xlu0 %2348
    %2354 = vrot.lane.b32.xlu0 %v2260, 96
    %v2355 = vpop.permute.xlu0 %2354
    %2356 = vrot.lane.b32.xlu0 %v2333, 96
    %v2357 = vpop.permute.xlu0 %2356
    %v2360 = vsel %vm95, %v580, %v2339
    %v2361 = vsel %vm95, %v653, %v2341
    %vm2362 = vcmask 523264
    %v2363 = vsel %vm2362, %v2360, %v2347
    %v2364 = vsel %vm2362, %v2361, %v2349
    %vm2365 = vcmask 785408
    %v2366 = vsel %vm2365, %v2363, %v2355
    %v2367 = vsel %vm2365, %v2364, %v2357
    %v2368 = vld [vmem:[%s4] sm:$0xff]
    %v2369 = vld [vmem:[%s4 + $0x8] sm:$0xff]
    %v2370 = vld [vmem:[%s4 + $0x10] sm:$0xff]
    %v2371 = vld [vmem:[%s4 + $0x18] sm:$0xff]
    %v2372 = vld [vmem:[%s4 + $0x20] sm:$0xff]
    %v2373 = vld [vmem:[%s4 + $0x28] sm:$0xff]
    %v2374 = vld [vmem:[%s4 + $0x30] sm:$0xff]
    %v2375 = vld [vmem:[%s4 + $0x38] sm:$0xff]
    %v2376 = vld [vmem:[%s4 + $0x40] sm:$0xff]
    %v2377 = vld [vmem:[%s4 + $0x48] sm:$0xff]
    %v2378 = vld [vmem:[%s4 + $0x50] sm:$0xff]
    %v2379 = vld [vmem:[%s4 + $0x58] sm:$0xff]
    %v2380 = vld [vmem:[%s4 + $0x60] sm:$0xff]
    %v2381 = vld [vmem:[%s4 + $0x68] sm:$0xff]
    %v2382 = vld [vmem:[%s4 + $0x70] sm:$0xff]
    %v2383 = vld [vmem:[%s4 + $0x78] sm:$0xff]
    %v2384 = vld [vmem:[%s5] sm:$0x1]
    %v2386 = vlaneseq
    %v2387 = vshrl.u32 %v2386, 7
    %v2388 = vsub.s32 0, %v2387
    %v2389 = vrot.slane %v2384, %v2388
    %2391 = vmatprep.subr.mxu0 0.0
    %2392 = vmatpush1.msra.mxu0 %v2368
    %2393 = vmatprep.subr.mxu0 0.0
    %2394 = vmatpush1.msra.mxu0 %v2369
    %2395 = vmatprep.subr.mxu0 0.0
    %2396 = vmatpush1.msra.mxu0 %v2370
    %2397 = vmatprep.subr.mxu0 0.0
    %2398 = vmatpush1.msra.mxu0 %v2371
    %2399 = vmatprep.subr.mxu0 0.0
    %2400 = vmatpush1.msra.mxu0 %v2372
    %2401 = vmatprep.subr.mxu0 0.0
    %2402 = vmatpush1.msra.mxu0 %v2373
    %2403 = vmatprep.subr.mxu0 0.0
    %2404 = vmatpush1.msra.mxu0 %v2374
    %2405 = vmatprep.subr.mxu0 0.0
    %2406 = vmatpush1.msra.mxu0 %v2375
    %2407 = vmatprep.subr.mxu0 0.0
    %2408 = vmatpush1.msra.mxu0 %v2376
    %2409 = vmatprep.subr.mxu0 0.0
    %2410 = vmatpush1.msra.mxu0 %v2377
    %2411 = vmatprep.subr.mxu0 0.0
    %2412 = vmatpush1.msra.mxu0 %v2378
    %2413 = vmatprep.subr.mxu0 0.0
    %2414 = vmatpush1.msra.mxu0 %v2379
    %2415 = vmatprep.subr.mxu0 0.0
    %2416 = vmatpush1.msra.mxu0 %v2380
    %2417 = vmatprep.subr.mxu0 0.0
    %2418 = vmatpush1.msra.mxu0 %v2381
    %2419 = vmatprep.subr.mxu0 0.0
    %2420 = vmatpush1.msra.mxu0 %v2382
    %2421 = vmatprep.subr.mxu0 0.0
    %2422 = vmatpush1.msra.mxu0 %v2383
    %2423 = vmatprep.subr.mxu0 0.0
    %2424 = vmatpush1.msra.mxu0 0.0
    %2425 = vmatprep.subr.mxu0 0.0
    %2426 = vmatpush1.msra.mxu0 0.0
    %2427 = vmatprep.subr.mxu0 0.0
    %2428 = vmatpush1.msra.mxu0 0.0
    %2429 = vmatprep.subr.mxu0 0.0
    %2430 = vmatpush1.msra.mxu0 0.0
    %2431 = vmatprep.subr.mxu0 0.0
    %2432 = vmatpush1.msra.mxu0 0.0
    %2433 = vmatprep.subr.mxu0 0.0
    %2434 = vmatpush1.msra.mxu0 0.0
    %2435 = vmatprep.subr.mxu0 0.0
    %2436 = vmatpush1.msra.mxu0 0.0
    %2437 = vmatprep.subr.mxu0 0.0
    %2438 = vmatpush1.msra.mxu0 0.0
    %2439 = vmatprep.subr.mxu0 0.0
    %2440 = vmatpush1.msra.mxu0 0.0
    %2441 = vmatprep.subr.mxu0 0.0
    %2442 = vmatpush1.msra.mxu0 0.0
    %2443 = vmatprep.subr.mxu0 0.0
    %2444 = vmatpush1.msra.mxu0 0.0
    %2445 = vmatprep.subr.mxu0 0.0
    %2446 = vmatpush1.msra.mxu0 0.0
    %2447 = vmatprep.subr.mxu0 0.0
    %2448 = vmatpush1.msra.mxu0 0.0
    %2449 = vmatprep.subr.mxu0 0.0
    %2450 = vmatpush1.msra.mxu0 0.0
    %2451 = vmatprep.subr.mxu0 0.0
    %2452 = vmatpush1.msra.mxu0 0.0
    %2453 = vmatprep.subr.mxu0 0.0
    %2454 = vmatpush1.msra.mxu0 0.0
    %2455 = vmatprep.mubr.f32.mxu0 0.0
    %2456 = vmatmul.mubr.f32.gmra.mrb[0].mxu0 %v2366
    %v2457 = vpop.f32.mrb[0].mxu0
    %v2458 = vadd.f32 %v2389, %v2457
    %v2459 = vpop.f32.mrb[0].mxu0
    %2460 = vmatprep.mubr.f32.mxu0 0.0
    %2461 = vmatmul.mubr.f32.gmra.mrb[0].mxu0 %v2367
    %v2462 = vpop.f32.mrb[0].mxu0
    %v2463 = vadd.f32 %v2389, %v2462
    %v2464 = vpop.f32.mrb[0].mxu0
    %2465 = vdwg.mxu0
    %v2466 = vadd.f32 %v89, %v2458
    %v2467 = vadd.f32 %v90, %v2463
    %v2468 = vsel %vm95, %v2466, 0.0
    %2469 = vadd.xlane.f32.xlu0 %v2468
    %v2470 = vpop.xlane.xlu0 %2469
    %v2471 = vsel %vm95, %v2467, 0.0
    %2472 = vadd.xlane.f32.xlu0 %v2471
    %v2473 = vpop.xlane.xlu0 %2472
    %v2474 = vrcp.pop 32.0
    %v2475 = vmul.f32 %v2470, %v2474
    %v2476 = vmul.f32 %v2473, %v2474
    %v2477 = vsub.f32 %v2466, %v2475
    %v2478 = vsub.f32 %v2467, %v2476
    %v2479 = vmul.f32 %v2477, %v2477
    %v2480 = vmul.f32 %v2478, %v2478
    %v2481 = vsel %vm95, %v2479, 0.0
    %2482 = vadd.xlane.f32.xlu0 %v2481
    %v2483 = vpop.xlane.xlu0 %2482
    %v2484 = vsel %vm95, %v2480, 0.0
    %2485 = vadd.xlane.f32.xlu0 %v2484
    %v2486 = vpop.xlane.xlu0 %2485
    %v2487 = vmul.f32 %v2483, %v2474
    %v2488 = vmul.f32 %v2486, %v2474
    %v2489 = vadd.f32 %v2487, 1e-05
    %v2490 = vadd.f32 %v2488, 1e-05
    %v2491 = vrsqrt.pop %v2489
    %v2492 = vrsqrt.pop %v2490
    %v2493 = vmul.f32 %v2477, %v2491
    %v2494 = vmul.f32 %v2478, %v2492
    %v2495 = vld [vmem:[%s10] sm:$0x1]
    %v2497 = vlaneseq
    %v2498 = vshrl.u32 %v2497, 7
    %v2499 = vsub.s32 0, %v2498
    %v2500 = vrot.slane %v2495, %v2499
    %v2502 = vmul.f32 %v2493, %v2500
    %v2503 = vmul.f32 %v2494, %v2500
    %v2504 = vld [vmem:[%s11] sm:$0x1]
    %v2506 = vlaneseq
    %v2507 = vshrl.u32 %v2506, 7
    %v2508 = vsub.s32 0, %v2507
    %v2509 = vrot.slane %v2504, %v2508
    %v2511 = vadd.f32 %v2502, %v2509
    %v2512 = vadd.f32 %v2503, %v2509
    %v2513 = vld [vmem:[#allocation7] sm:$0xff]
    %v2514 = vld [vmem:[#allocation7 + $0x8] sm:$0xff]
    %v2515 = vld [vmem:[#allocation7 + $0x10] sm:$0xff]
    %v2516 = vld [vmem:[#allocation7 + $0x18] sm:$0xff]
    %v2517 = vld [vmem:[%s7] sm:$0x1]
    %v2519 = vlaneseq
    %v2520 = vshrl.u32 %v2519, 7
    %v2521 = vsub.s32 0, %v2520
    %v2522 = vrot.slane %v2517, %v2521
    %v2525 = vsel %vm95, %v2511, 0
    %v2528 = vsel %vm95, %v2512, 0
    %2530 = vmatprep.subr.mxu0 0.0
    %2531 = vmatpush1.msra.mxu0 %v2513
    %2532 = vmatprep.subr.mxu0 0.0
    %2533 = vmatpush1.msra.mxu0 %v2514
    %2534 = vmatprep.subr.mxu0 0.0
    %2535 = vmatpush1.msra.mxu0 %v2515
    %2536 = vmatprep.subr.mxu0 0.0
    %2537 = vmatpush1.msra.mxu0 %v2516
    %2538 = vmatprep.subr.mxu0 0.0
    %2539 = vmatpush1.msra.mxu0 0.0
    %2540 = vmatprep.subr.mxu0 0.0
    %2541 = vmatpush1.msra.mxu0 0.0
    %2542 = vmatprep.subr.mxu0 0.0
    %2543 = vmatpush1.msra.mxu0 0.0
    %2544 = vmatprep.subr.mxu0 0.0
    %2545 = vmatpush1.msra.mxu0 0.0
    %2546 = vmatprep.subr.mxu0 0.0
    %2547 = vmatpush1.msra.mxu0 0.0
    %2548 = vmatprep.subr.mxu0 0.0
    %2549 = vmatpush1.msra.mxu0 0.0
    %2550 = vmatprep.subr.mxu0 0.0
    %2551 = vmatpush1.msra.mxu0 0.0
    %2552 = vmatprep.subr.mxu0 0.0
    %2553 = vmatpush1.msra.mxu0 0.0
    %2554 = vmatprep.subr.mxu0 0.0
    %2555 = vmatpush1.msra.mxu0 0.0
    %2556 = vmatprep.subr.mxu0 0.0
    %2557 = vmatpush1.msra.mxu0 0.0
    %2558 = vmatprep.subr.mxu0 0.0
    %2559 = vmatpush1.msra.mxu0 0.0
    %2560 = vmatprep.subr.mxu0 0.0
    %2561 = vmatpush1.msra.mxu0 0.0
    %2562 = vmatprep.subr.mxu0 0.0
    %2563 = vmatpush1.msra.mxu0 0.0
    %2564 = vmatprep.subr.mxu0 0.0
    %2565 = vmatpush1.msra.mxu0 0.0
    %2566 = vmatprep.subr.mxu0 0.0
    %2567 = vmatpush1.msra.mxu0 0.0
    %2568 = vmatprep.subr.mxu0 0.0
    %2569 = vmatpush1.msra.mxu0 0.0
    %2570 = vmatprep.subr.mxu0 0.0
    %2571 = vmatpush1.msra.mxu0 0.0
    %2572 = vmatprep.subr.mxu0 0.0
    %2573 = vmatpush1.msra.mxu0 0.0
    %2574 = vmatprep.subr.mxu0 0.0
    %2575 = vmatpush1.msra.mxu0 0.0
    %2576 = vmatprep.subr.mxu0 0.0
    %2577 = vmatpush1.msra.mxu0 0.0
    %2578 = vmatprep.subr.mxu0 0.0
    %2579 = vmatpush1.msra.mxu0 0.0
    %2580 = vmatprep.subr.mxu0 0.0
    %2581 = vmatpush1.msra.mxu0 0.0
    %2582 = vmatprep.subr.mxu0 0.0
    %2583 = vmatpush1.msra.mxu0 0.0
    %2584 = vmatprep.subr.mxu0 0.0
    %2585 = vmatpush1.msra.mxu0 0.0
    %2586 = vmatprep.subr.mxu0 0.0
    %2587 = vmatpush1.msra.mxu0 0.0
    %2588 = vmatprep.subr.mxu0 0.0
    %2589 = vmatpush1.msra.mxu0 0.0
    %2590 = vmatprep.subr.mxu0 0.0
    %2591 = vmatpush1.msra.mxu0 0.0
    %2592 = vmatprep.subr.mxu0 0.0
    %2593 = vmatpush1.msra.mxu0 0.0
    %2594 = vmatprep.mubr.f32.mxu0 0.0
    %2595 = vmatmul.mubr.f32.gmra.mrb[0].mxu0 %v2525
    %v2596 = vpop.f32.mrb[0].mxu0
    %v2597 = vadd.f32 %v2522, %v2596
    %v2598 = vpop.f32.mrb[0].mxu0
    %2599 = vmatprep.mubr.f32.mxu0 0.0
    %2600 = vmatmul.mubr.f32.gmra.mrb[0].mxu0 %v2528
    %v2601 = vpop.f32.mrb[0].mxu0
    %v2602 = vadd.f32 %v2522, %v2601
    %v2603 = vpop.f32.mrb[0].mxu0
    %2604 = vdwg.mxu0
    %v2605 = vmax.f32 %v2597, 0.0
    %v2606 = vmax.f32 %v2602, 0.0
    %v2607 = vld [vmem:[%s8] sm:$0xff]
    %v2608 = vld [vmem:[%s8 + $0x8] sm:$0xff]
    %v2609 = vld [vmem:[%s8 + $0x10] sm:$0xff]
    %v2610 = vld [vmem:[%s8 + $0x18] sm:$0xff]
    %v2611 = vld [vmem:[%s8 + $0x20] sm:$0xff]
    %v2612 = vld [vmem:[%s8 + $0x28] sm:$0xff]
    %v2613 = vld [vmem:[%s8 + $0x30] sm:$0xff]
    %v2614 = vld [vmem:[%s8 + $0x38] sm:$0xff]
    %v2615 = vld [vmem:[%s9] sm:$0x1]
    %v2617 = vlaneseq
    %v2618 = vshrl.u32 %v2617, 7
    %v2619 = vsub.s32 0, %v2618
    %v2620 = vrot.slane %v2615, %v2619
    %v2623 = vsel %vm2362, %v2605, 0
    %v2626 = vsel %vm2362, %v2606, 0
    %2628 = vmatprep.subr.mxu0 0.0
    %2629 = vmatpush1.msra.mxu0 %v2607
    %2630 = vmatprep.subr.mxu0 0.0
    %2631 = vmatpush1.msra.mxu0 %v2608
    %2632 = vmatprep.subr.mxu0 0.0
    %2633 = vmatpush1.msra.mxu0 %v2609
    %2634 = vmatprep.subr.mxu0 0.0
    %2635 = vmatpush1.msra.mxu0 %v2610
    %2636 = vmatprep.subr.mxu0 0.0
    %2637 = vmatpush1.msra.mxu0 %v2611
    %2638 = vmatprep.subr.mxu0 0.0
    %2639 = vmatpush1.msra.mxu0 %v2612
    %2640 = vmatprep.subr.mxu0 0.0
    %2641 = vmatpush1.msra.mxu0 %v2613
    %2642 = vmatprep.subr.mxu0 0.0
    %2643 = vmatpush1.msra.mxu0 %v2614
    %2644 = vmatprep.subr.mxu0 0.0
    %2645 = vmatpush1.msra.mxu0 0.0
    %2646 = vmatprep.subr.mxu0 0.0
    %2647 = vmatpush1.msra.mxu0 0.0
    %2648 = vmatprep.subr.mxu0 0.0
    %2649 = vmatpush1.msra.mxu0 0.0
    %2650 = vmatprep.subr.mxu0 0.0
    %2651 = vmatpush1.msra.mxu0 0.0
    %2652 = vmatprep.subr.mxu0 0.0
    %2653 = vmatpush1.msra.mxu0 0.0
    %2654 = vmatprep.subr.mxu0 0.0
    %2655 = vmatpush1.msra.mxu0 0.0
    %2656 = vmatprep.subr.mxu0 0.0
    %2657 = vmatpush1.msra.mxu0 0.0
    %2658 = vmatprep.subr.mxu0 0.0
    %2659 = vmatpush1.msra.mxu0 0.0
    %2660 = vmatprep.subr.mxu0 0.0
    %2661 = vmatpush1.msra.mxu0 0.0
    %2662 = vmatprep.subr.mxu0 0.0
    %2663 = vmatpush1.msra.mxu0 0.0
    %2664 = vmatprep.subr.mxu0 0.0
    %2665 = vmatpush1.msra.mxu0 0.0
    %2666 = vmatprep.subr.mxu0 0.0
    %2667 = vmatpush1.msra.mxu0 0.0
    %2668 = vmatprep.subr.mxu0 0.0
    %2669 = vmatpush1.msra.mxu0 0.0
    %2670 = vmatprep.subr.mxu0 0.0
    %2671 = vmatpush1.msra.mxu0 0.0
    %2672 = vmatprep.subr.mxu0 0.0
    %2673 = vmatpush1.msra.mxu0 0.0
    %2674 = vmatprep.subr.mxu0 0.0
    %2675 = vmatpush1.msra.mxu0 0.0
    %2676 = vmatprep.subr.mxu0 0.0
    %2677 = vmatpush1.msra.mxu0 0.0
    %2678 = vmatprep.subr.mxu0 0.0
    %2679 = vmatpush1.msra.mxu0 0.0
    %2680 = vmatprep.subr.mxu0 0.0
    %2681 = vmatpush1.msra.mxu0 0.0
    %2682 = vmatprep.subr.mxu0 0.0
    %2683 = vmatpush1.msra.mxu0 0.0
    %2684 = vmatprep.subr.mxu0 0.0
    %2685 = vmatpush1.msra.mxu0 0.0
    %2686 = vmatprep.subr.mxu0 0.0
    %2687 = vmatpush1.msra.mxu0 0.0
    %2688 = vmatprep.subr.mxu0 0.0
    %2689 = vmatpush1.msra.mxu0 0.0
    %2690 = vmatprep.subr.mxu0 0.0
    %2691 = vmatpush1.msra.mxu0 0.0
    %2692 = vmatprep.mubr.f32.mxu0 0.0
    %2693 = vmatmul.mubr.f32.gmra.mrb[0].mxu0 %v2623
    %v2694 = vpop.f32.mrb[0].mxu0
    %v2695 = vadd.f32 %v2620, %v2694
    %v2696 = vpop.f32.mrb[0].mxu0
    %2697 = vmatprep.mubr.f32.mxu0 0.0
    %2698 = vmatmul.mubr.f32.gmra.mrb[0].mxu0 %v2626
    %v2699 = vpop.f32.mrb[0].mxu0
    %v2700 = vadd.f32 %v2620, %v2699
    %v2701 = vpop.f32.mrb[0].mxu0
    %2702 = vdwg.mxu0
    %v2703 = vadd.f32 %v2511, %v2695
    %v2704 = vadd.f32 %v2512, %v2700
    %v2705 = vsel %vm95, %v2703, 0.0
    %2706 = vadd.xlane.f32.xlu0 %v2705
    %v2707 = vpop.xlane.xlu0 %2706
    %v2708 = vsel %vm95, %v2704, 0.0
    %2709 = vadd.xlane.f32.xlu0 %v2708
    %v2710 = vpop.xlane.xlu0 %2709
    %v2711 = vmul.f32 %v2707, %v2474
    %v2712 = vmul.f32 %v2710, %v2474
    %v2713 = vsub.f32 %v2703, %v2711
    %v2714 = vsub.f32 %v2704, %v2712
    %v2715 = vmul.f32 %v2713, %v2713
    %v2716 = vmul.f32 %v2714, %v2714
    %v2717 = vsel %vm95, %v2715, 0.0
    %2718 = vadd.xlane.f32.xlu0 %v2717
    %v2719 = vpop.xlane.xlu0 %2718
    %v2720 = vsel %vm95, %v2716, 0.0
    %2721 = vadd.xlane.f32.xlu0 %v2720
    %v2722 = vpop.xlane.xlu0 %2721
    %v2723 = vmul.f32 %v2719, %v2474
    %v2724 = vmul.f32 %v2722, %v2474
    %v2725 = vadd.f32 %v2723, 1e-05
    %v2726 = vadd.f32 %v2724, 1e-05
    %v2727 = vrsqrt.pop %v2725
    %v2728 = vrsqrt.pop %v2726
    %v2729 = vmul.f32 %v2713, %v2727
    %v2730 = vmul.f32 %v2714, %v2728
    %v2731 = vld [vmem:[%s12] sm:$0x1]
    %v2733 = vlaneseq
    %v2734 = vshrl.u32 %v2733, 7
    %v2735 = vsub.s32 0, %v2734
    %v2736 = vrot.slane %v2731, %v2735
    %v2738 = vmul.f32 %v2729, %v2736
    %v2739 = vmul.f32 %v2730, %v2736
    %v2740 = vld [vmem:[%s13] sm:$0x1]
    %v2742 = vlaneseq
    %v2743 = vshrl.u32 %v2742, 7
    %v2744 = vsub.s32 0, %v2743
    %v2745 = vrot.slane %v2740, %v2744
    %v2747 = vadd.f32 %v2738, %v2745
    %v2748 = vadd.f32 %v2739, %v2745
    %2749 = vst.msk [vmem:[#allocation8] sm:$0xff] %vm95, %v2747
    %2750 = vst.msk [vmem:[#allocation8 + $0x8] sm:$0xff] %vm95, %v2748
    // Predicated region
    $region70: #{tpu_custom_call.1} parent=1 // pred_check
      _
    $region71: #{tpu_custom_call.1} parent=1 // pred_check_branch
      %2752 = sbr.rel (0) target = $region73
    $region72: #{tpu_custom_call.1} parent=1 // pred_region
      %s2754 = ssub.s32 256, 256
      %2755 = vsyncadd [#allocation4], %s2754
      %s2756 = sshll.u32 [#allocation8], 4
      %s2757 = int_to_ptr.vmem [resolvable:$true] %s2756
      %2762 = dma.vmem_to_hbm [thread:$0]  %s2757, 256, %s14, [#allocation4], 128, 128, 8
    $region73: #{tpu_custom_call.1} parent=1 // pred_fallthru
      _
    // Predicated region
    $region74: #{tpu_custom_call.1} parent=1 // pred_check
      _
    $region75: #{tpu_custom_call.1} parent=1 // pred_check_branch
      %2764 = sbr.rel (0) target = $region77
    $region76: #{tpu_custom_call.1} parent=1 // pred_region
      %2765 = dma.done [#allocation4], 256
    $region77: #{tpu_custom_call.1} parent=1 // pred_fallthru
      _
    %2766 = vsyncpa [#allocation3], 1
    %2767 = vsyncpa [#allocation6], 1
    %2768 = vsyncpa [#allocation4], 1

</llo_original>
